<compile_context>
chip_gen: v7x
topology: tpu7x:2x2x1
jax: 0.10.0
libtpu: 0.0.40
codegen_flags: <defaults>
</compile_context>

<pallas_src>
import jax
import jax.numpy as jnp
from jax.experimental import pallas as pl
from jax.experimental.pallas import tpu as pltpu

EPS = 1e-5
SLOPE = 0.2  # leaky_relu negative_slope


# ----------------------------------------------------------------------------
# In-kernel helpers
# ----------------------------------------------------------------------------
def _group_norm_lrelu(a, groups):
    """Non-affine GroupNorm + LeakyReLU(0.2).

    a: (BB, R, C) float32, stats taken per example over (R, C // groups).
    Heavy (BB, R, C) tensor is only touched by two reductions and one
    normalize-in-place; all group bookkeeping happens on tiny (BB, C) stats.
    """
    BB, R, C = a.shape
    gs = C // groups
    n = float(R * gs)
    s1 = jnp.sum(a, axis=1)          # (BB, C) per-channel sums
    s2 = jnp.sum(a * a, axis=1)      # (BB, C) per-channel sums of squares
    mean_cols, rstd_cols = [], []
    for g in range(groups):
        sl = slice(g * gs, (g + 1) * gs)
        m = jnp.sum(s1[:, sl], axis=1, keepdims=True) / n            # (BB, 1)
        v = jnp.sum(s2[:, sl], axis=1, keepdims=True) / n - m * m
        r = jax.lax.rsqrt(v + EPS)
        mean_cols.append(jnp.broadcast_to(m, (BB, gs)))
        rstd_cols.append(jnp.broadcast_to(r, (BB, gs)))
    mean_c = jnp.concatenate(mean_cols, axis=1)[:, None, :]           # (BB,1,C)
    rstd_c = jnp.concatenate(rstd_cols, axis=1)[:, None, :]           # (BB,1,C)
    y = (a - mean_c) * rstd_c
    return jnp.where(y >= 0.0, y, SLOPE * y)


# ----------------------------------------------------------------------------
# Fused kernel: conv1 + GN1 + lrelu + conv2 + GN2 + lrelu + FC + sigmoid
# ----------------------------------------------------------------------------
def _discriminator_kernel(p1_ref, w1_ref, b1_ref, w2_ref, b2_ref, wf_ref,
                          bf_ref, o_ref):
    BB = p1_ref.shape[0]          # examples per grid step
    R1 = p1_ref.shape[1]          # 144 = 12*12 conv1 output positions
    C1 = w1_ref.shape[1]          # 64
    C2 = w2_ref.shape[1]          # 128
    K = 5

    # ---- conv1: single GEMM over the (kh, kw, cin) contraction (275 wide) --
    p1 = p1_ref[...].reshape(BB * R1, p1_ref.shape[2])          # bf16
    acc1 = jnp.dot(p1, w1_ref[...], preferred_element_type=jnp.float32)
    acc1 = acc1 + b1_ref[...]                                   # (BB*144, 64)

    # ---- GroupNorm(4 groups) + LeakyReLU, per example ----------------------
    h1 = _group_norm_lrelu(acc1.reshape(BB, R1, C1), groups=4)

    # ---- conv2: in-kernel im2col (taps concatenated along the contraction
    #      dim) -> one GEMM. Rows were pre-ordered (b, rh, rw, qh, qw) with
    #      oh = 2*qh + rh, ow = 2*qw + rw, so every stride-2 tap of the 12x12
    #      map is a contiguous static slice of the parity planes below.
    h1 = h1.reshape(BB, 4, 6, 6, C1).astype(jnp.bfloat16)       # (b, 2rh+rw, qh, qw, c)
    cols = []
    for kh in range(K):
        for kw in range(K):
            p = (kh % 2) * 2 + (kw % 2)
            cols.append(h1[:, p, kh // 2:kh // 2 + 4, kw // 2:kw // 2 + 4, :])
    p2 = jnp.concatenate(cols, axis=-1)                         # (BB,4,4,1600)
    acc2 = jnp.dot(p2.reshape(BB * 16, K * K * C1), w2_ref[...],
                   preferred_element_type=jnp.float32)
    acc2 = acc2 + b2_ref[...]                                   # (BB*16, 128)

    # ---- GroupNorm(8 groups) + LeakyReLU ------------------------------------
    a2 = _group_norm_lrelu(acc2.reshape(BB, 16, C2), groups=8)

    # ---- FC(2048 -> 1) + sigmoid: VPU multiply+reduce against the permuted,
    #      lane-dense (16, 128) weight view (no MXU push, no runtime flatten).
    z = jnp.sum(a2 * wf_ref[...][None, :, :], axis=2)           # (BB, 16)
    z = jnp.sum(z, axis=1, keepdims=True) + bf_ref[...]         # (BB, 1)
    o_ref[...] = jax.nn.sigmoid(z).astype(o_ref.dtype)


# ----------------------------------------------------------------------------
# One-time parameter re-layout (done once at init, outside the hot path)
# ----------------------------------------------------------------------------
def prepare_params(params):
    K = 5
    w1, w2 = params["w1"], params["w2"]
    Cin, C1 = w1.shape[2], w1.shape[3]
    C2 = w2.shape[3]
    # FC weight rows permuted from NCHW-flatten order (c, oh, ow) to the
    # kernel's NHWC-flatten order (oh, ow, c), viewed lane-dense as (16, 128).
    wf2 = params["wf"].reshape(C2, 4, 4).transpose(1, 2, 0).reshape(16, C2)
    return {
        "w1r": w1.reshape(K * K * Cin, C1).astype(jnp.bfloat16),
        "b1": params["b1"].reshape(1, C1).astype(jnp.float32),
        "w2r": w2.reshape(K * K * C1, C2).astype(jnp.bfloat16),
        "b2": params["b2"].reshape(1, C2).astype(jnp.float32),
        "wf2": wf2.astype(jnp.float32),
        "bf": params["bf"].reshape(1, 1).astype(jnp.float32),
    }


# ----------------------------------------------------------------------------
# Full forward (matches torch module semantics; x, y given in NCHW)
# ----------------------------------------------------------------------------
def discriminator_forward(x_nchw, y_nchw, prepped, *, block_b=None):
    B = x_nchw.shape[0]
    if block_b is None:
        block_b = B if B <= 8 else 8
    assert B % block_b == 0, "batch must be divisible by block_b"

    K, S = 5, 2
    xy = jnp.concatenate([x_nchw, y_nchw], axis=1)              # torch.cat dim=1
    x = jnp.transpose(xy, (0, 2, 3, 1)).astype(jnp.bfloat16)    # NHWC [B,28,28,11]
    H, W, Cin = x.shape[1], x.shape[2], x.shape[3]
    Ho = (H - K) // S + 1                                       # 12
    Wo = (W - K) // S + 1                                       # 12

    # im2col for conv1 (stride 2, VALID); contraction order (kh, kw, cin)
    # matches w1.reshape(K*K*Cin, C1). Rows re-ordered to (b, rh, rw, qh, qw)
    # (oh = 2*qh+rh, ow = 2*qw+rw) so the conv1 GEMM output is already parity
    # split for conv2's stride-2 taps. This is one small XLA fusion that also
    # replaces the old NCHW->NHWC + parity-stack preprocessing.
    taps = []
    for kh in range(K):
        for kw in range(K):
            taps.append(jax.lax.slice(
                x, (0, kh, kw, 0),
                (B, kh + S * (Ho - 1) + 1, kw + S * (Wo - 1) + 1, Cin),
                (1, S, S, 1)))                                  # [B,12,12,Cin]
    pat = jnp.concatenate(taps, axis=-1)                        # [B,12,12,275]
    pat = pat.reshape(B, Ho // 2, 2, Wo // 2, 2, K * K * Cin)
    pat = pat.transpose(0, 2, 4, 1, 3, 5)                       # [B,2,2,6,6,275]
    pat = pat.reshape(B, Ho * Wo, K * K * Cin)                  # [B,144,275] bf16

    BB = block_b
    C1 = prepped["b1"].shape[1]
    C2 = prepped["b2"].shape[1]
    return pl.pallas_call(
        _discriminator_kernel,
        out_shape=jax.ShapeDtypeStruct((B, 1), jnp.float32),
        grid_spec=pltpu.PrefetchScalarGridSpec(
            num_scalar_prefetch=0,
            grid=(B // BB,),
            in_specs=[
                pl.BlockSpec((BB, Ho * Wo, K * K * Cin), lambda i: (i, 0, 0)),
                pl.BlockSpec((K * K * Cin, C1), lambda i: (0, 0)),
                pl.BlockSpec((1, C1), lambda i: (0, 0)),
                pl.BlockSpec((K * K * C1, C2), lambda i: (0, 0)),
                pl.BlockSpec((1, C2), lambda i: (0, 0)),
                pl.BlockSpec((16, C2), lambda i: (0, 0)),
                pl.BlockSpec((1, 1), lambda i: (0, 0)),
            ],
            out_specs=pl.BlockSpec((BB, 1), lambda i: (i, 0)),
        ),
        compiler_params=pltpu.CompilerParams(
            # Batch-block axis: "parallel" lets v7x shard blocks across its two
            # TensorCores when B > block_b; harmless on v5e/v6e (single TC).
            dimension_semantics=("parallel",)),
    )(pat, prepped["w1r"], prepped["b1"], prepped["w2r"], prepped["b2"],
      prepped["wf2"], prepped["bf"])


# ----------------------------------------------------------------------------
# Pure-JAX reference (f32, HIGHEST precision) for correctness check
# ----------------------------------------------------------------------------
def reference_forward(x_nchw, y_nchw, params):
    def conv(x, w, b):
        return jax.lax.conv_general_dilated(
            x, w, window_strides=(2, 2), padding="VALID",
            dimension_numbers=("NHWC", "HWIO", "NHWC"),
            precision=jax.lax.Precision.HIGHEST) + b

    def gnorm(x, groups):
        B, H, W, C = x.shape
        g = x.reshape(B, H, W, groups, C // groups)
        mu = jnp.mean(g, axis=(1, 2, 4), keepdims=True)
        var = jnp.mean(jnp.square(g - mu), axis=(1, 2, 4), keepdims=True)
        return ((g - mu) * jax.lax.rsqrt(var + EPS)).reshape(B, H, W, C)

    def lrelu(x):
        return jnp.where(x >= 0, x, SLOPE * x)

    xy = jnp.concatenate([x_nchw, y_nchw], axis=1)
    h = jnp.transpose(xy, (0, 2, 3, 1))
    h = lrelu(gnorm(conv(h, params["w1"], params["b1"]), 4))
    h = lrelu(gnorm(conv(h, params["w2"], params["b2"]), 8))
    B = h.shape[0]
    flat = jnp.transpose(h, (0, 3, 1, 2)).reshape(B, -1)   # NCHW flatten
    return jax.nn.sigmoid(flat @ params["wf"] + params["bf"])


# ----------------------------------------------------------------------------
# Deterministic parameter init (xavier_normal weights, zero biases)
# ----------------------------------------------------------------------------
def xavier_normal(key, shape, fan_in, fan_out):
    std = (2.0 / (fan_in + fan_out)) ** 0.5
    return std * jax.random.normal(key, shape, dtype=jnp.float32)


if __name__ == "__main__":
    key = jax.random.PRNGKey(0)
    k1, k2, k3, kx, ky = jax.random.split(key, 5)

    B = 2
    H = W = 28  # required by the module: fc expects 128 * 4 * 4 = 2048 features

    params = {
        # conv1: Conv2d(11, 64, k=5, s=2) -> HWIO weights
        "w1": xavier_normal(k1, (5, 5, 11, 64), 11 * 25, 64 * 25),
        "b1": jnp.zeros((64,), jnp.float32),
        # conv2: Conv2d(64, 128, k=5, s=2)
        "w2": xavier_normal(k2, (5, 5, 64, 128), 64 * 25, 128 * 25),
        "b2": jnp.zeros((128,), jnp.float32),
        # fc: Linear(2048, 1) stored as (in, out); row order = torch NCHW flatten
        "wf": xavier_normal(k3, (2048, 1), 2048, 1),
        "bf": jnp.zeros((1,), jnp.float32),
    }

    # x: image, y: per-class condition maps (one-hot broadcast over H, W), NCHW
    x = jax.random.normal(kx, (B, 1, H, W), dtype=jnp.float32)
    labels = jax.random.randint(ky, (B,), 0, 10)
    y = jnp.broadcast_to(
        jax.nn.one_hot(labels, 10, dtype=jnp.float32)[:, :, None, None],
        (B, 10, H, W))

    prepped = prepare_params(params)
    fwd = jax.jit(discriminator_forward)
    out = jax.block_until_ready(fwd(x, y, prepped))

    ref = reference_forward(x, y, params)
    assert out.shape == (B, 1), out.shape
    # Kernel uses bf16 MXU operands (f32 accumulate); reference is f32 HIGHEST.
    assert jnp.allclose(out, ref, atol=1e-2), (out, ref)

    print("KERNEL_OK")
</pallas_src>

<mosaic_0001>
module attributes {stable_mosaic.version = 11 : i64} {
  func.func @_discriminator_kernel(%arg0: i32, %arg1: memref<2x144x275xbf16, #tpu.memory_space<vmem>>, %arg2: memref<275x64xbf16, #tpu.memory_space<vmem>>, %arg3: memref<1x64xf32, #tpu.memory_space<vmem>>, %arg4: memref<1600x128xbf16, #tpu.memory_space<vmem>>, %arg5: memref<1x128xf32, #tpu.memory_space<vmem>>, %arg6: memref<16x128xf32, #tpu.memory_space<vmem>>, %arg7: memref<1x1xf32, #tpu.memory_space<vmem>>, %arg8: memref<2x1xf32, #tpu.memory_space<vmem>>) attributes {dimension_semantics = [#tpu.dimension_semantics<parallel>], iteration_bounds = array<i64: 1>, scalar_prefetch = 0 : i64, scratch_operands = 0 : i64, tpu.core_type = #tpu.core_type<tc>, window_params = [{transform_indices = @transform_0, window_bounds = array<i64: 2, 144, 275>}, {pipeline_mode = #tpu.pipeline_mode<synchronous>, transform_indices = @transform_1, window_bounds = array<i64: 275, 64>}, {pipeline_mode = #tpu.pipeline_mode<synchronous>, transform_indices = @transform_2, window_bounds = array<i64: 1, 64>}, {pipeline_mode = #tpu.pipeline_mode<synchronous>, transform_indices = @transform_3, window_bounds = array<i64: 1600, 128>}, {pipeline_mode = #tpu.pipeline_mode<synchronous>, transform_indices = @transform_4, window_bounds = array<i64: 1, 128>}, {pipeline_mode = #tpu.pipeline_mode<synchronous>, transform_indices = @transform_5, window_bounds = array<i64: 16, 128>}, {pipeline_mode = #tpu.pipeline_mode<synchronous>, transform_indices = @transform_6, window_bounds = array<i64: 1, 1>}, {transform_indices = @transform_7, window_bounds = array<i64: 2, 1>}]} {
    %c0 = arith.constant 0 : index
    %c0_0 = arith.constant 0 : index
    %c0_1 = arith.constant 0 : index
    %0 = vector.load %arg1[%c0, %c0_0, %c0_1] : memref<2x144x275xbf16, #tpu.memory_space<vmem>>, vector<2x144x275xbf16>
    %1 = vector.shape_cast %0 : vector<2x144x275xbf16> to vector<288x275xbf16>
    %c0_2 = arith.constant 0 : index
    %c0_3 = arith.constant 0 : index
    %2 = vector.load %arg2[%c0_2, %c0_3] : memref<275x64xbf16, #tpu.memory_space<vmem>>, vector<275x64xbf16>
    %cst = arith.constant dense<0.000000e+00> : vector<288x64xf32>
    %3 = tpu.matmul %1, %2, %cst {dimension_numbers = #tpu.dot_dimension_numbers<[1], [0], [0], [1], [0, 0, 1, 1], [], []>} : vector<288x275xbf16>, vector<275x64xbf16>, vector<288x64xf32> -> vector<288x64xf32>
    %c0_4 = arith.constant 0 : index
    %c0_5 = arith.constant 0 : index
    %4 = vector.load %arg3[%c0_4, %c0_5] : memref<1x64xf32, #tpu.memory_space<vmem>>, vector<1x64xf32>
    %5 = vector.broadcast %4 : vector<1x64xf32> to vector<288x64xf32>
    %6 = arith.addf %3, %5 : vector<288x64xf32>
    %7 = vector.shape_cast %6 : vector<288x64xf32> to vector<2x144x64xf32>
    %cst_6 = arith.constant dense<0.000000e+00> : vector<2x64xf32>
    %8 = vector.multi_reduction <add>, %7, %cst_6 [1] : vector<2x144x64xf32> to vector<2x64xf32>
    %9 = arith.mulf %7, %7 : vector<2x144x64xf32>
    %cst_7 = arith.constant dense<0.000000e+00> : vector<2x64xf32>
    %10 = vector.multi_reduction <add>, %9, %cst_7 [1] : vector<2x144x64xf32> to vector<2x64xf32>
    %11 = vector.extract_strided_slice %8 {offsets = [0, 0], sizes = [2, 16], strides = [1, 1]} : vector<2x64xf32> to vector<2x16xf32>
    %cst_8 = arith.constant dense<0.000000e+00> : vector<2xf32>
    %12 = vector.multi_reduction <add>, %11, %cst_8 [1] : vector<2x16xf32> to vector<2xf32>
    %13 = vector.shape_cast %12 : vector<2xf32> to vector<2x1xf32>
    %cst_9 = arith.constant 2.304000e+03 : f32
    %14 = vector.broadcast %cst_9 : f32 to vector<2x1xf32>
    %15 = arith.divf %13, %14 : vector<2x1xf32>
    %16 = vector.extract_strided_slice %10 {offsets = [0, 0], sizes = [2, 16], strides = [1, 1]} : vector<2x64xf32> to vector<2x16xf32>
    %cst_10 = arith.constant dense<0.000000e+00> : vector<2xf32>
    %17 = vector.multi_reduction <add>, %16, %cst_10 [1] : vector<2x16xf32> to vector<2xf32>
    %18 = vector.shape_cast %17 : vector<2xf32> to vector<2x1xf32>
    %cst_11 = arith.constant 2.304000e+03 : f32
    %19 = vector.broadcast %cst_11 : f32 to vector<2x1xf32>
    %20 = arith.divf %18, %19 : vector<2x1xf32>
    %21 = arith.mulf %15, %15 : vector<2x1xf32>
    %22 = arith.subf %20, %21 : vector<2x1xf32>
    %cst_12 = arith.constant 9.99999974E-6 : f32
    %23 = vector.broadcast %cst_12 : f32 to vector<2x1xf32>
    %24 = arith.addf %22, %23 : vector<2x1xf32>
    %25 = math.rsqrt %24 : vector<2x1xf32>
    %26 = vector.shape_cast %15 : vector<2x1xf32> to vector<2x1xf32>
    %27 = vector.broadcast %26 : vector<2x1xf32> to vector<2x16xf32>
    %28 = vector.shape_cast %25 : vector<2x1xf32> to vector<2x1xf32>
    %29 = vector.broadcast %28 : vector<2x1xf32> to vector<2x16xf32>
    %30 = vector.extract_strided_slice %8 {offsets = [0, 16], sizes = [2, 16], strides = [1, 1]} : vector<2x64xf32> to vector<2x16xf32>
    %cst_13 = arith.constant dense<0.000000e+00> : vector<2xf32>
    %31 = vector.multi_reduction <add>, %30, %cst_13 [1] : vector<2x16xf32> to vector<2xf32>
    %32 = vector.shape_cast %31 : vector<2xf32> to vector<2x1xf32>
    %cst_14 = arith.constant 2.304000e+03 : f32
    %33 = vector.broadcast %cst_14 : f32 to vector<2x1xf32>
    %34 = arith.divf %32, %33 : vector<2x1xf32>
    %35 = vector.extract_strided_slice %10 {offsets = [0, 16], sizes = [2, 16], strides = [1, 1]} : vector<2x64xf32> to vector<2x16xf32>
    %cst_15 = arith.constant dense<0.000000e+00> : vector<2xf32>
    %36 = vector.multi_reduction <add>, %35, %cst_15 [1] : vector<2x16xf32> to vector<2xf32>
    %37 = vector.shape_cast %36 : vector<2xf32> to vector<2x1xf32>
    %cst_16 = arith.constant 2.304000e+03 : f32
    %38 = vector.broadcast %cst_16 : f32 to vector<2x1xf32>
    %39 = arith.divf %37, %38 : vector<2x1xf32>
    %40 = arith.mulf %34, %34 : vector<2x1xf32>
    %41 = arith.subf %39, %40 : vector<2x1xf32>
    %cst_17 = arith.constant 9.99999974E-6 : f32
    %42 = vector.broadcast %cst_17 : f32 to vector<2x1xf32>
    %43 = arith.addf %41, %42 : vector<2x1xf32>
    %44 = math.rsqrt %43 : vector<2x1xf32>
    %45 = vector.shape_cast %34 : vector<2x1xf32> to vector<2x1xf32>
    %46 = vector.broadcast %45 : vector<2x1xf32> to vector<2x16xf32>
    %47 = vector.shape_cast %44 : vector<2x1xf32> to vector<2x1xf32>
    %48 = vector.broadcast %47 : vector<2x1xf32> to vector<2x16xf32>
    %49 = vector.extract_strided_slice %8 {offsets = [0, 32], sizes = [2, 16], strides = [1, 1]} : vector<2x64xf32> to vector<2x16xf32>
    %cst_18 = arith.constant dense<0.000000e+00> : vector<2xf32>
    %50 = vector.multi_reduction <add>, %49, %cst_18 [1] : vector<2x16xf32> to vector<2xf32>
    %51 = vector.shape_cast %50 : vector<2xf32> to vector<2x1xf32>
    %cst_19 = arith.constant 2.304000e+03 : f32
    %52 = vector.broadcast %cst_19 : f32 to vector<2x1xf32>
    %53 = arith.divf %51, %52 : vector<2x1xf32>
    %54 = vector.extract_strided_slice %10 {offsets = [0, 32], sizes = [2, 16], strides = [1, 1]} : vector<2x64xf32> to vector<2x16xf32>
    %cst_20 = arith.constant dense<0.000000e+00> : vector<2xf32>
    %55 = vector.multi_reduction <add>, %54, %cst_20 [1] : vector<2x16xf32> to vector<2xf32>
    %56 = vector.shape_cast %55 : vector<2xf32> to vector<2x1xf32>
    %cst_21 = arith.constant 2.304000e+03 : f32
    %57 = vector.broadcast %cst_21 : f32 to vector<2x1xf32>
    %58 = arith.divf %56, %57 : vector<2x1xf32>
    %59 = arith.mulf %53, %53 : vector<2x1xf32>
    %60 = arith.subf %58, %59 : vector<2x1xf32>
    %cst_22 = arith.constant 9.99999974E-6 : f32
    %61 = vector.broadcast %cst_22 : f32 to vector<2x1xf32>
    %62 = arith.addf %60, %61 : vector<2x1xf32>
    %63 = math.rsqrt %62 : vector<2x1xf32>
    %64 = vector.shape_cast %53 : vector<2x1xf32> to vector<2x1xf32>
    %65 = vector.broadcast %64 : vector<2x1xf32> to vector<2x16xf32>
    %66 = vector.shape_cast %63 : vector<2x1xf32> to vector<2x1xf32>
    %67 = vector.broadcast %66 : vector<2x1xf32> to vector<2x16xf32>
    %68 = vector.extract_strided_slice %8 {offsets = [0, 48], sizes = [2, 16], strides = [1, 1]} : vector<2x64xf32> to vector<2x16xf32>
    %cst_23 = arith.constant dense<0.000000e+00> : vector<2xf32>
    %69 = vector.multi_reduction <add>, %68, %cst_23 [1] : vector<2x16xf32> to vector<2xf32>
    %70 = vector.shape_cast %69 : vector<2xf32> to vector<2x1xf32>
    %cst_24 = arith.constant 2.304000e+03 : f32
    %71 = vector.broadcast %cst_24 : f32 to vector<2x1xf32>
    %72 = arith.divf %70, %71 : vector<2x1xf32>
    %73 = vector.extract_strided_slice %10 {offsets = [0, 48], sizes = [2, 16], strides = [1, 1]} : vector<2x64xf32> to vector<2x16xf32>
    %cst_25 = arith.constant dense<0.000000e+00> : vector<2xf32>
    %74 = vector.multi_reduction <add>, %73, %cst_25 [1] : vector<2x16xf32> to vector<2xf32>
    %75 = vector.shape_cast %74 : vector<2xf32> to vector<2x1xf32>
    %cst_26 = arith.constant 2.304000e+03 : f32
    %76 = vector.broadcast %cst_26 : f32 to vector<2x1xf32>
    %77 = arith.divf %75, %76 : vector<2x1xf32>
    %78 = arith.mulf %72, %72 : vector<2x1xf32>
    %79 = arith.subf %77, %78 : vector<2x1xf32>
    %cst_27 = arith.constant 9.99999974E-6 : f32
    %80 = vector.broadcast %cst_27 : f32 to vector<2x1xf32>
    %81 = arith.addf %79, %80 : vector<2x1xf32>
    %82 = math.rsqrt %81 : vector<2x1xf32>
    %83 = vector.shape_cast %72 : vector<2x1xf32> to vector<2x1xf32>
    %84 = vector.broadcast %83 : vector<2x1xf32> to vector<2x16xf32>
    %85 = vector.shape_cast %82 : vector<2x1xf32> to vector<2x1xf32>
    %86 = vector.broadcast %85 : vector<2x1xf32> to vector<2x16xf32>
    %87 = tpu.concatenate %27, %46, %65, %84 in 1 : vector<2x16xf32>, vector<2x16xf32>, vector<2x16xf32>, vector<2x16xf32> -> vector<2x64xf32>
    %88 = vector.shape_cast %87 : vector<2x64xf32> to vector<2x1x64xf32>
    %89 = tpu.concatenate %29, %48, %67, %86 in 1 : vector<2x16xf32>, vector<2x16xf32>, vector<2x16xf32>, vector<2x16xf32> -> vector<2x64xf32>
    %90 = vector.shape_cast %89 : vector<2x64xf32> to vector<2x1x64xf32>
    %91 = vector.broadcast %88 : vector<2x1x64xf32> to vector<2x144x64xf32>
    %92 = arith.subf %7, %91 : vector<2x144x64xf32>
    %93 = vector.broadcast %90 : vector<2x1x64xf32> to vector<2x144x64xf32>
    %94 = arith.mulf %92, %93 : vector<2x144x64xf32>
    %cst_28 = arith.constant 0.000000e+00 : f32
    %95 = vector.broadcast %cst_28 : f32 to vector<2x144x64xf32>
    %96 = arith.cmpf oge, %94, %95 : vector<2x144x64xf32>
    %cst_29 = arith.constant 2.000000e-01 : f32
    %97 = vector.broadcast %cst_29 : f32 to vector<2x144x64xf32>
    %98 = arith.mulf %97, %94 : vector<2x144x64xf32>
    %99 = arith.select %96, %94, %98 : vector<2x144x64xi1>, vector<2x144x64xf32>
    %100 = vector.shape_cast %99 : vector<2x144x64xf32> to vector<2x4x6x6x64xf32>
    %101 = arith.truncf %100 : vector<2x4x6x6x64xf32> to vector<2x4x6x6x64xbf16>
    %102 = vector.extract_strided_slice %101 {offsets = [0, 0, 0, 0, 0], sizes = [2, 1, 4, 4, 64], strides = [1, 1, 1, 1, 1]} : vector<2x4x6x6x64xbf16> to vector<2x1x4x4x64xbf16>
    %103 = vector.shape_cast %102 : vector<2x1x4x4x64xbf16> to vector<2x4x4x64xbf16>
    %104 = vector.extract_strided_slice %101 {offsets = [0, 1, 0, 0, 0], sizes = [2, 1, 4, 4, 64], strides = [1, 1, 1, 1, 1]} : vector<2x4x6x6x64xbf16> to vector<2x1x4x4x64xbf16>
    %105 = vector.shape_cast %104 : vector<2x1x4x4x64xbf16> to vector<2x4x4x64xbf16>
    %106 = vector.extract_strided_slice %101 {offsets = [0, 0, 0, 1, 0], sizes = [2, 1, 4, 4, 64], strides = [1, 1, 1, 1, 1]} : vector<2x4x6x6x64xbf16> to vector<2x1x4x4x64xbf16>
    %107 = vector.shape_cast %106 : vector<2x1x4x4x64xbf16> to vector<2x4x4x64xbf16>
    %108 = vector.extract_strided_slice %101 {offsets = [0, 1, 0, 1, 0], sizes = [2, 1, 4, 4, 64], strides = [1, 1, 1, 1, 1]} : vector<2x4x6x6x64xbf16> to vector<2x1x4x4x64xbf16>
    %109 = vector.shape_cast %108 : vector<2x1x4x4x64xbf16> to vector<2x4x4x64xbf16>
    %110 = vector.extract_strided_slice %101 {offsets = [0, 0, 0, 2, 0], sizes = [2, 1, 4, 4, 64], strides = [1, 1, 1, 1, 1]} : vector<2x4x6x6x64xbf16> to vector<2x1x4x4x64xbf16>
    %111 = vector.shape_cast %110 : vector<2x1x4x4x64xbf16> to vector<2x4x4x64xbf16>
    %112 = vector.extract_strided_slice %101 {offsets = [0, 2, 0, 0, 0], sizes = [2, 1, 4, 4, 64], strides = [1, 1, 1, 1, 1]} : vector<2x4x6x6x64xbf16> to vector<2x1x4x4x64xbf16>
    %113 = vector.shape_cast %112 : vector<2x1x4x4x64xbf16> to vector<2x4x4x64xbf16>
    %114 = vector.extract_strided_slice %101 {offsets = [0, 3, 0, 0, 0], sizes = [2, 1, 4, 4, 64], strides = [1, 1, 1, 1, 1]} : vector<2x4x6x6x64xbf16> to vector<2x1x4x4x64xbf16>
    %115 = vector.shape_cast %114 : vector<2x1x4x4x64xbf16> to vector<2x4x4x64xbf16>
    %116 = vector.extract_strided_slice %101 {offsets = [0, 2, 0, 1, 0], sizes = [2, 1, 4, 4, 64], strides = [1, 1, 1, 1, 1]} : vector<2x4x6x6x64xbf16> to vector<2x1x4x4x64xbf16>
    %117 = vector.shape_cast %116 : vector<2x1x4x4x64xbf16> to vector<2x4x4x64xbf16>
    %118 = vector.extract_strided_slice %101 {offsets = [0, 3, 0, 1, 0], sizes = [2, 1, 4, 4, 64], strides = [1, 1, 1, 1, 1]} : vector<2x4x6x6x64xbf16> to vector<2x1x4x4x64xbf16>
    %119 = vector.shape_cast %118 : vector<2x1x4x4x64xbf16> to vector<2x4x4x64xbf16>
    %120 = vector.extract_strided_slice %101 {offsets = [0, 2, 0, 2, 0], sizes = [2, 1, 4, 4, 64], strides = [1, 1, 1, 1, 1]} : vector<2x4x6x6x64xbf16> to vector<2x1x4x4x64xbf16>
    %121 = vector.shape_cast %120 : vector<2x1x4x4x64xbf16> to vector<2x4x4x64xbf16>
    %122 = vector.extract_strided_slice %101 {offsets = [0, 0, 1, 0, 0], sizes = [2, 1, 4, 4, 64], strides = [1, 1, 1, 1, 1]} : vector<2x4x6x6x64xbf16> to vector<2x1x4x4x64xbf16>
    %123 = vector.shape_cast %122 : vector<2x1x4x4x64xbf16> to vector<2x4x4x64xbf16>
    %124 = vector.extract_strided_slice %101 {offsets = [0, 1, 1, 0, 0], sizes = [2, 1, 4, 4, 64], strides = [1, 1, 1, 1, 1]} : vector<2x4x6x6x64xbf16> to vector<2x1x4x4x64xbf16>
    %125 = vector.shape_cast %124 : vector<2x1x4x4x64xbf16> to vector<2x4x4x64xbf16>
    %126 = vector.extract_strided_slice %101 {offsets = [0, 0, 1, 1, 0], sizes = [2, 1, 4, 4, 64], strides = [1, 1, 1, 1, 1]} : vector<2x4x6x6x64xbf16> to vector<2x1x4x4x64xbf16>
    %127 = vector.shape_cast %126 : vector<2x1x4x4x64xbf16> to vector<2x4x4x64xbf16>
    %128 = vector.extract_strided_slice %101 {offsets = [0, 1, 1, 1, 0], sizes = [2, 1, 4, 4, 64], strides = [1, 1, 1, 1, 1]} : vector<2x4x6x6x64xbf16> to vector<2x1x4x4x64xbf16>
    %129 = vector.shape_cast %128 : vector<2x1x4x4x64xbf16> to vector<2x4x4x64xbf16>
    %130 = vector.extract_strided_slice %101 {offsets = [0, 0, 1, 2, 0], sizes = [2, 1, 4, 4, 64], strides = [1, 1, 1, 1, 1]} : vector<2x4x6x6x64xbf16> to vector<2x1x4x4x64xbf16>
    %131 = vector.shape_cast %130 : vector<2x1x4x4x64xbf16> to vector<2x4x4x64xbf16>
    %132 = vector.extract_strided_slice %101 {offsets = [0, 2, 1, 0, 0], sizes = [2, 1, 4, 4, 64], strides = [1, 1, 1, 1, 1]} : vector<2x4x6x6x64xbf16> to vector<2x1x4x4x64xbf16>
    %133 = vector.shape_cast %132 : vector<2x1x4x4x64xbf16> to vector<2x4x4x64xbf16>
    %134 = vector.extract_strided_slice %101 {offsets = [0, 3, 1, 0, 0], sizes = [2, 1, 4, 4, 64], strides = [1, 1, 1, 1, 1]} : vector<2x4x6x6x64xbf16> to vector<2x1x4x4x64xbf16>
    %135 = vector.shape_cast %134 : vector<2x1x4x4x64xbf16> to vector<2x4x4x64xbf16>
    %136 = vector.extract_strided_slice %101 {offsets = [0, 2, 1, 1, 0], sizes = [2, 1, 4, 4, 64], strides = [1, 1, 1, 1, 1]} : vector<2x4x6x6x64xbf16> to vector<2x1x4x4x64xbf16>
    %137 = vector.shape_cast %136 : vector<2x1x4x4x64xbf16> to vector<2x4x4x64xbf16>
    %138 = vector.extract_strided_slice %101 {offsets = [0, 3, 1, 1, 0], sizes = [2, 1, 4, 4, 64], strides = [1, 1, 1, 1, 1]} : vector<2x4x6x6x64xbf16> to vector<2x1x4x4x64xbf16>
    %139 = vector.shape_cast %138 : vector<2x1x4x4x64xbf16> to vector<2x4x4x64xbf16>
    %140 = vector.extract_strided_slice %101 {offsets = [0, 2, 1, 2, 0], sizes = [2, 1, 4, 4, 64], strides = [1, 1, 1, 1, 1]} : vector<2x4x6x6x64xbf16> to vector<2x1x4x4x64xbf16>
    %141 = vector.shape_cast %140 : vector<2x1x4x4x64xbf16> to vector<2x4x4x64xbf16>
    %142 = vector.extract_strided_slice %101 {offsets = [0, 0, 2, 0, 0], sizes = [2, 1, 4, 4, 64], strides = [1, 1, 1, 1, 1]} : vector<2x4x6x6x64xbf16> to vector<2x1x4x4x64xbf16>
    %143 = vector.shape_cast %142 : vector<2x1x4x4x64xbf16> to vector<2x4x4x64xbf16>
    %144 = vector.extract_strided_slice %101 {offsets = [0, 1, 2, 0, 0], sizes = [2, 1, 4, 4, 64], strides = [1, 1, 1, 1, 1]} : vector<2x4x6x6x64xbf16> to vector<2x1x4x4x64xbf16>
    %145 = vector.shape_cast %144 : vector<2x1x4x4x64xbf16> to vector<2x4x4x64xbf16>
    %146 = vector.extract_strided_slice %101 {offsets = [0, 0, 2, 1, 0], sizes = [2, 1, 4, 4, 64], strides = [1, 1, 1, 1, 1]} : vector<2x4x6x6x64xbf16> to vector<2x1x4x4x64xbf16>
    %147 = vector.shape_cast %146 : vector<2x1x4x4x64xbf16> to vector<2x4x4x64xbf16>
    %148 = vector.extract_strided_slice %101 {offsets = [0, 1, 2, 1, 0], sizes = [2, 1, 4, 4, 64], strides = [1, 1, 1, 1, 1]} : vector<2x4x6x6x64xbf16> to vector<2x1x4x4x64xbf16>
    %149 = vector.shape_cast %148 : vector<2x1x4x4x64xbf16> to vector<2x4x4x64xbf16>
    %150 = vector.extract_strided_slice %101 {offsets = [0, 0, 2, 2, 0], sizes = [2, 1, 4, 4, 64], strides = [1, 1, 1, 1, 1]} : vector<2x4x6x6x64xbf16> to vector<2x1x4x4x64xbf16>
    %151 = vector.shape_cast %150 : vector<2x1x4x4x64xbf16> to vector<2x4x4x64xbf16>
    %152 = tpu.concatenate %103, %105, %107, %109, %111, %113, %115, %117, %119, %121, %123, %125, %127, %129, %131, %133 in 3 : vector<2x4x4x64xbf16>, vector<2x4x4x64xbf16>, vector<2x4x4x64xbf16>, vector<2x4x4x64xbf16>, vector<2x4x4x64xbf16>, vector<2x4x4x64xbf16>, vector<2x4x4x64xbf16>, vector<2x4x4x64xbf16>, vector<2x4x4x64xbf16>, vector<2x4x4x64xbf16>, vector<2x4x4x64xbf16>, vector<2x4x4x64xbf16>, vector<2x4x4x64xbf16>, vector<2x4x4x64xbf16>, vector<2x4x4x64xbf16>, vector<2x4x4x64xbf16> -> vector<2x4x4x1024xbf16>
    %153 = tpu.concatenate %135, %137, %139, %141, %143, %145, %147, %149, %151 in 3 : vector<2x4x4x64xbf16>, vector<2x4x4x64xbf16>, vector<2x4x4x64xbf16>, vector<2x4x4x64xbf16>, vector<2x4x4x64xbf16>, vector<2x4x4x64xbf16>, vector<2x4x4x64xbf16>, vector<2x4x4x64xbf16>, vector<2x4x4x64xbf16> -> vector<2x4x4x576xbf16>
    %154 = tpu.concatenate %152, %153 in 3 : vector<2x4x4x1024xbf16>, vector<2x4x4x576xbf16> -> vector<2x4x4x1600xbf16>
    %155 = vector.shape_cast %154 : vector<2x4x4x1600xbf16> to vector<32x1600xbf16>
    %c0_30 = arith.constant 0 : index
    %c0_31 = arith.constant 0 : index
    %156 = vector.load %arg4[%c0_30, %c0_31] : memref<1600x128xbf16, #tpu.memory_space<vmem>>, vector<1600x128xbf16>
    %cst_32 = arith.constant dense<0.000000e+00> : vector<32x128xf32>
    %157 = tpu.matmul %155, %156, %cst_32 {dimension_numbers = #tpu.dot_dimension_numbers<[1], [0], [0], [1], [0, 0, 1, 1], [], []>} : vector<32x1600xbf16>, vector<1600x128xbf16>, vector<32x128xf32> -> vector<32x128xf32>
    %c0_33 = arith.constant 0 : index
    %c0_34 = arith.constant 0 : index
    %158 = vector.load %arg5[%c0_33, %c0_34] : memref<1x128xf32, #tpu.memory_space<vmem>>, vector<1x128xf32>
    %159 = vector.broadcast %158 : vector<1x128xf32> to vector<32x128xf32>
    %160 = arith.addf %157, %159 : vector<32x128xf32>
    %161 = vector.shape_cast %160 : vector<32x128xf32> to vector<2x16x128xf32>
    %cst_35 = arith.constant dense<0.000000e+00> : vector<2x128xf32>
    %162 = vector.multi_reduction <add>, %161, %cst_35 [1] : vector<2x16x128xf32> to vector<2x128xf32>
    %163 = arith.mulf %161, %161 : vector<2x16x128xf32>
    %cst_36 = arith.constant dense<0.000000e+00> : vector<2x128xf32>
    %164 = vector.multi_reduction <add>, %163, %cst_36 [1] : vector<2x16x128xf32> to vector<2x128xf32>
    %165 = vector.extract_strided_slice %162 {offsets = [0, 0], sizes = [2, 16], strides = [1, 1]} : vector<2x128xf32> to vector<2x16xf32>
    %cst_37 = arith.constant dense<0.000000e+00> : vector<2xf32>
    %166 = vector.multi_reduction <add>, %165, %cst_37 [1] : vector<2x16xf32> to vector<2xf32>
    %167 = vector.shape_cast %166 : vector<2xf32> to vector<2x1xf32>
    %cst_38 = arith.constant 2.560000e+02 : f32
    %168 = vector.broadcast %cst_38 : f32 to vector<2x1xf32>
    %169 = arith.divf %167, %168 : vector<2x1xf32>
    %170 = vector.extract_strided_slice %164 {offsets = [0, 0], sizes = [2, 16], strides = [1, 1]} : vector<2x128xf32> to vector<2x16xf32>
    %cst_39 = arith.constant dense<0.000000e+00> : vector<2xf32>
    %171 = vector.multi_reduction <add>, %170, %cst_39 [1] : vector<2x16xf32> to vector<2xf32>
    %172 = vector.shape_cast %171 : vector<2xf32> to vector<2x1xf32>
    %cst_40 = arith.constant 2.560000e+02 : f32
    %173 = vector.broadcast %cst_40 : f32 to vector<2x1xf32>
    %174 = arith.divf %172, %173 : vector<2x1xf32>
    %175 = arith.mulf %169, %169 : vector<2x1xf32>
    %176 = arith.subf %174, %175 : vector<2x1xf32>
    %cst_41 = arith.constant 9.99999974E-6 : f32
    %177 = vector.broadcast %cst_41 : f32 to vector<2x1xf32>
    %178 = arith.addf %176, %177 : vector<2x1xf32>
    %179 = math.rsqrt %178 : vector<2x1xf32>
    %180 = vector.shape_cast %169 : vector<2x1xf32> to vector<2x1xf32>
    %181 = vector.broadcast %180 : vector<2x1xf32> to vector<2x16xf32>
    %182 = vector.shape_cast %179 : vector<2x1xf32> to vector<2x1xf32>
    %183 = vector.broadcast %182 : vector<2x1xf32> to vector<2x16xf32>
    %184 = vector.extract_strided_slice %162 {offsets = [0, 16], sizes = [2, 16], strides = [1, 1]} : vector<2x128xf32> to vector<2x16xf32>
    %cst_42 = arith.constant dense<0.000000e+00> : vector<2xf32>
    %185 = vector.multi_reduction <add>, %184, %cst_42 [1] : vector<2x16xf32> to vector<2xf32>
    %186 = vector.shape_cast %185 : vector<2xf32> to vector<2x1xf32>
    %cst_43 = arith.constant 2.560000e+02 : f32
    %187 = vector.broadcast %cst_43 : f32 to vector<2x1xf32>
    %188 = arith.divf %186, %187 : vector<2x1xf32>
    %189 = vector.extract_strided_slice %164 {offsets = [0, 16], sizes = [2, 16], strides = [1, 1]} : vector<2x128xf32> to vector<2x16xf32>
    %cst_44 = arith.constant dense<0.000000e+00> : vector<2xf32>
    %190 = vector.multi_reduction <add>, %189, %cst_44 [1] : vector<2x16xf32> to vector<2xf32>
    %191 = vector.shape_cast %190 : vector<2xf32> to vector<2x1xf32>
    %cst_45 = arith.constant 2.560000e+02 : f32
    %192 = vector.broadcast %cst_45 : f32 to vector<2x1xf32>
    %193 = arith.divf %191, %192 : vector<2x1xf32>
    %194 = arith.mulf %188, %188 : vector<2x1xf32>
    %195 = arith.subf %193, %194 : vector<2x1xf32>
    %cst_46 = arith.constant 9.99999974E-6 : f32
    %196 = vector.broadcast %cst_46 : f32 to vector<2x1xf32>
    %197 = arith.addf %195, %196 : vector<2x1xf32>
    %198 = math.rsqrt %197 : vector<2x1xf32>
    %199 = vector.shape_cast %188 : vector<2x1xf32> to vector<2x1xf32>
    %200 = vector.broadcast %199 : vector<2x1xf32> to vector<2x16xf32>
    %201 = vector.shape_cast %198 : vector<2x1xf32> to vector<2x1xf32>
    %202 = vector.broadcast %201 : vector<2x1xf32> to vector<2x16xf32>
    %203 = vector.extract_strided_slice %162 {offsets = [0, 32], sizes = [2, 16], strides = [1, 1]} : vector<2x128xf32> to vector<2x16xf32>
    %cst_47 = arith.constant dense<0.000000e+00> : vector<2xf32>
    %204 = vector.multi_reduction <add>, %203, %cst_47 [1] : vector<2x16xf32> to vector<2xf32>
    %205 = vector.shape_cast %204 : vector<2xf32> to vector<2x1xf32>
    %cst_48 = arith.constant 2.560000e+02 : f32
    %206 = vector.broadcast %cst_48 : f32 to vector<2x1xf32>
    %207 = arith.divf %205, %206 : vector<2x1xf32>
    %208 = vector.extract_strided_slice %164 {offsets = [0, 32], sizes = [2, 16], strides = [1, 1]} : vector<2x128xf32> to vector<2x16xf32>
    %cst_49 = arith.constant dense<0.000000e+00> : vector<2xf32>
    %209 = vector.multi_reduction <add>, %208, %cst_49 [1] : vector<2x16xf32> to vector<2xf32>
    %210 = vector.shape_cast %209 : vector<2xf32> to vector<2x1xf32>
    %cst_50 = arith.constant 2.560000e+02 : f32
    %211 = vector.broadcast %cst_50 : f32 to vector<2x1xf32>
    %212 = arith.divf %210, %211 : vector<2x1xf32>
    %213 = arith.mulf %207, %207 : vector<2x1xf32>
    %214 = arith.subf %212, %213 : vector<2x1xf32>
    %cst_51 = arith.constant 9.99999974E-6 : f32
    %215 = vector.broadcast %cst_51 : f32 to vector<2x1xf32>
    %216 = arith.addf %214, %215 : vector<2x1xf32>
    %217 = math.rsqrt %216 : vector<2x1xf32>
    %218 = vector.shape_cast %207 : vector<2x1xf32> to vector<2x1xf32>
    %219 = vector.broadcast %218 : vector<2x1xf32> to vector<2x16xf32>
    %220 = vector.shape_cast %217 : vector<2x1xf32> to vector<2x1xf32>
    %221 = vector.broadcast %220 : vector<2x1xf32> to vector<2x16xf32>
    %222 = vector.extract_strided_slice %162 {offsets = [0, 48], sizes = [2, 16], strides = [1, 1]} : vector<2x128xf32> to vector<2x16xf32>
    %cst_52 = arith.constant dense<0.000000e+00> : vector<2xf32>
    %223 = vector.multi_reduction <add>, %222, %cst_52 [1] : vector<2x16xf32> to vector<2xf32>
    %224 = vector.shape_cast %223 : vector<2xf32> to vector<2x1xf32>
    %cst_53 = arith.constant 2.560000e+02 : f32
    %225 = vector.broadcast %cst_53 : f32 to vector<2x1xf32>
    %226 = arith.divf %224, %225 : vector<2x1xf32>
    %227 = vector.extract_strided_slice %164 {offsets = [0, 48], sizes = [2, 16], strides = [1, 1]} : vector<2x128xf32> to vector<2x16xf32>
    %cst_54 = arith.constant dense<0.000000e+00> : vector<2xf32>
    %228 = vector.multi_reduction <add>, %227, %cst_54 [1] : vector<2x16xf32> to vector<2xf32>
    %229 = vector.shape_cast %228 : vector<2xf32> to vector<2x1xf32>
    %cst_55 = arith.constant 2.560000e+02 : f32
    %230 = vector.broadcast %cst_55 : f32 to vector<2x1xf32>
    %231 = arith.divf %229, %230 : vector<2x1xf32>
    %232 = arith.mulf %226, %226 : vector<2x1xf32>
    %233 = arith.subf %231, %232 : vector<2x1xf32>
    %cst_56 = arith.constant 9.99999974E-6 : f32
    %234 = vector.broadcast %cst_56 : f32 to vector<2x1xf32>
    %235 = arith.addf %233, %234 : vector<2x1xf32>
    %236 = math.rsqrt %235 : vector<2x1xf32>
    %237 = vector.shape_cast %226 : vector<2x1xf32> to vector<2x1xf32>
    %238 = vector.broadcast %237 : vector<2x1xf32> to vector<2x16xf32>
    %239 = vector.shape_cast %236 : vector<2x1xf32> to vector<2x1xf32>
    %240 = vector.broadcast %239 : vector<2x1xf32> to vector<2x16xf32>
    %241 = vector.extract_strided_slice %162 {offsets = [0, 64], sizes = [2, 16], strides = [1, 1]} : vector<2x128xf32> to vector<2x16xf32>
    %cst_57 = arith.constant dense<0.000000e+00> : vector<2xf32>
    %242 = vector.multi_reduction <add>, %241, %cst_57 [1] : vector<2x16xf32> to vector<2xf32>
    %243 = vector.shape_cast %242 : vector<2xf32> to vector<2x1xf32>
    %cst_58 = arith.constant 2.560000e+02 : f32
    %244 = vector.broadcast %cst_58 : f32 to vector<2x1xf32>
    %245 = arith.divf %243, %244 : vector<2x1xf32>
    %246 = vector.extract_strided_slice %164 {offsets = [0, 64], sizes = [2, 16], strides = [1, 1]} : vector<2x128xf32> to vector<2x16xf32>
    %cst_59 = arith.constant dense<0.000000e+00> : vector<2xf32>
    %247 = vector.multi_reduction <add>, %246, %cst_59 [1] : vector<2x16xf32> to vector<2xf32>
    %248 = vector.shape_cast %247 : vector<2xf32> to vector<2x1xf32>
    %cst_60 = arith.constant 2.560000e+02 : f32
    %249 = vector.broadcast %cst_60 : f32 to vector<2x1xf32>
    %250 = arith.divf %248, %249 : vector<2x1xf32>
    %251 = arith.mulf %245, %245 : vector<2x1xf32>
    %252 = arith.subf %250, %251 : vector<2x1xf32>
    %cst_61 = arith.constant 9.99999974E-6 : f32
    %253 = vector.broadcast %cst_61 : f32 to vector<2x1xf32>
    %254 = arith.addf %252, %253 : vector<2x1xf32>
    %255 = math.rsqrt %254 : vector<2x1xf32>
    %256 = vector.shape_cast %245 : vector<2x1xf32> to vector<2x1xf32>
    %257 = vector.broadcast %256 : vector<2x1xf32> to vector<2x16xf32>
    %258 = vector.shape_cast %255 : vector<2x1xf32> to vector<2x1xf32>
    %259 = vector.broadcast %258 : vector<2x1xf32> to vector<2x16xf32>
    %260 = vector.extract_strided_slice %162 {offsets = [0, 80], sizes = [2, 16], strides = [1, 1]} : vector<2x128xf32> to vector<2x16xf32>
    %cst_62 = arith.constant dense<0.000000e+00> : vector<2xf32>
    %261 = vector.multi_reduction <add>, %260, %cst_62 [1] : vector<2x16xf32> to vector<2xf32>
    %262 = vector.shape_cast %261 : vector<2xf32> to vector<2x1xf32>
    %cst_63 = arith.constant 2.560000e+02 : f32
    %263 = vector.broadcast %cst_63 : f32 to vector<2x1xf32>
    %264 = arith.divf %262, %263 : vector<2x1xf32>
    %265 = vector.extract_strided_slice %164 {offsets = [0, 80], sizes = [2, 16], strides = [1, 1]} : vector<2x128xf32> to vector<2x16xf32>
    %cst_64 = arith.constant dense<0.000000e+00> : vector<2xf32>
    %266 = vector.multi_reduction <add>, %265, %cst_64 [1] : vector<2x16xf32> to vector<2xf32>
    %267 = vector.shape_cast %266 : vector<2xf32> to vector<2x1xf32>
    %cst_65 = arith.constant 2.560000e+02 : f32
    %268 = vector.broadcast %cst_65 : f32 to vector<2x1xf32>
    %269 = arith.divf %267, %268 : vector<2x1xf32>
    %270 = arith.mulf %264, %264 : vector<2x1xf32>
    %271 = arith.subf %269, %270 : vector<2x1xf32>
    %cst_66 = arith.constant 9.99999974E-6 : f32
    %272 = vector.broadcast %cst_66 : f32 to vector<2x1xf32>
    %273 = arith.addf %271, %272 : vector<2x1xf32>
    %274 = math.rsqrt %273 : vector<2x1xf32>
    %275 = vector.shape_cast %264 : vector<2x1xf32> to vector<2x1xf32>
    %276 = vector.broadcast %275 : vector<2x1xf32> to vector<2x16xf32>
    %277 = vector.shape_cast %274 : vector<2x1xf32> to vector<2x1xf32>
    %278 = vector.broadcast %277 : vector<2x1xf32> to vector<2x16xf32>
    %279 = vector.extract_strided_slice %162 {offsets = [0, 96], sizes = [2, 16], strides = [1, 1]} : vector<2x128xf32> to vector<2x16xf32>
    %cst_67 = arith.constant dense<0.000000e+00> : vector<2xf32>
    %280 = vector.multi_reduction <add>, %279, %cst_67 [1] : vector<2x16xf32> to vector<2xf32>
    %281 = vector.shape_cast %280 : vector<2xf32> to vector<2x1xf32>
    %cst_68 = arith.constant 2.560000e+02 : f32
    %282 = vector.broadcast %cst_68 : f32 to vector<2x1xf32>
    %283 = arith.divf %281, %282 : vector<2x1xf32>
    %284 = vector.extract_strided_slice %164 {offsets = [0, 96], sizes = [2, 16], strides = [1, 1]} : vector<2x128xf32> to vector<2x16xf32>
    %cst_69 = arith.constant dense<0.000000e+00> : vector<2xf32>
    %285 = vector.multi_reduction <add>, %284, %cst_69 [1] : vector<2x16xf32> to vector<2xf32>
    %286 = vector.shape_cast %285 : vector<2xf32> to vector<2x1xf32>
    %cst_70 = arith.constant 2.560000e+02 : f32
    %287 = vector.broadcast %cst_70 : f32 to vector<2x1xf32>
    %288 = arith.divf %286, %287 : vector<2x1xf32>
    %289 = arith.mulf %283, %283 : vector<2x1xf32>
    %290 = arith.subf %288, %289 : vector<2x1xf32>
    %cst_71 = arith.constant 9.99999974E-6 : f32
    %291 = vector.broadcast %cst_71 : f32 to vector<2x1xf32>
    %292 = arith.addf %290, %291 : vector<2x1xf32>
    %293 = math.rsqrt %292 : vector<2x1xf32>
    %294 = vector.shape_cast %283 : vector<2x1xf32> to vector<2x1xf32>
    %295 = vector.broadcast %294 : vector<2x1xf32> to vector<2x16xf32>
    %296 = vector.shape_cast %293 : vector<2x1xf32> to vector<2x1xf32>
    %297 = vector.broadcast %296 : vector<2x1xf32> to vector<2x16xf32>
    %298 = vector.extract_strided_slice %162 {offsets = [0, 112], sizes = [2, 16], strides = [1, 1]} : vector<2x128xf32> to vector<2x16xf32>
    %cst_72 = arith.constant dense<0.000000e+00> : vector<2xf32>
    %299 = vector.multi_reduction <add>, %298, %cst_72 [1] : vector<2x16xf32> to vector<2xf32>
    %300 = vector.shape_cast %299 : vector<2xf32> to vector<2x1xf32>
    %cst_73 = arith.constant 2.560000e+02 : f32
    %301 = vector.broadcast %cst_73 : f32 to vector<2x1xf32>
    %302 = arith.divf %300, %301 : vector<2x1xf32>
    %303 = vector.extract_strided_slice %164 {offsets = [0, 112], sizes = [2, 16], strides = [1, 1]} : vector<2x128xf32> to vector<2x16xf32>
    %cst_74 = arith.constant dense<0.000000e+00> : vector<2xf32>
    %304 = vector.multi_reduction <add>, %303, %cst_74 [1] : vector<2x16xf32> to vector<2xf32>
    %305 = vector.shape_cast %304 : vector<2xf32> to vector<2x1xf32>
    %cst_75 = arith.constant 2.560000e+02 : f32
    %306 = vector.broadcast %cst_75 : f32 to vector<2x1xf32>
    %307 = arith.divf %305, %306 : vector<2x1xf32>
    %308 = arith.mulf %302, %302 : vector<2x1xf32>
    %309 = arith.subf %307, %308 : vector<2x1xf32>
    %cst_76 = arith.constant 9.99999974E-6 : f32
    %310 = vector.broadcast %cst_76 : f32 to vector<2x1xf32>
    %311 = arith.addf %309, %310 : vector<2x1xf32>
    %312 = math.rsqrt %311 : vector<2x1xf32>
    %313 = vector.shape_cast %302 : vector<2x1xf32> to vector<2x1xf32>
    %314 = vector.broadcast %313 : vector<2x1xf32> to vector<2x16xf32>
    %315 = vector.shape_cast %312 : vector<2x1xf32> to vector<2x1xf32>
    %316 = vector.broadcast %315 : vector<2x1xf32> to vector<2x16xf32>
    %317 = tpu.concatenate %181, %200, %219, %238, %257, %276, %295, %314 in 1 : vector<2x16xf32>, vector<2x16xf32>, vector<2x16xf32>, vector<2x16xf32>, vector<2x16xf32>, vector<2x16xf32>, vector<2x16xf32>, vector<2x16xf32> -> vector<2x128xf32>
    %318 = vector.shape_cast %317 : vector<2x128xf32> to vector<2x1x128xf32>
    %319 = tpu.concatenate %183, %202, %221, %240, %259, %278, %297, %316 in 1 : vector<2x16xf32>, vector<2x16xf32>, vector<2x16xf32>, vector<2x16xf32>, vector<2x16xf32>, vector<2x16xf32>, vector<2x16xf32>, vector<2x16xf32> -> vector<2x128xf32>
    %320 = vector.shape_cast %319 : vector<2x128xf32> to vector<2x1x128xf32>
    %321 = vector.broadcast %318 : vector<2x1x128xf32> to vector<2x16x128xf32>
    %322 = arith.subf %161, %321 : vector<2x16x128xf32>
    %323 = vector.broadcast %320 : vector<2x1x128xf32> to vector<2x16x128xf32>
    %324 = arith.mulf %322, %323 : vector<2x16x128xf32>
    %cst_77 = arith.constant 0.000000e+00 : f32
    %325 = vector.broadcast %cst_77 : f32 to vector<2x16x128xf32>
    %326 = arith.cmpf oge, %324, %325 : vector<2x16x128xf32>
    %cst_78 = arith.constant 2.000000e-01 : f32
    %327 = vector.broadcast %cst_78 : f32 to vector<2x16x128xf32>
    %328 = arith.mulf %327, %324 : vector<2x16x128xf32>
    %329 = arith.select %326, %324, %328 : vector<2x16x128xi1>, vector<2x16x128xf32>
    %c0_79 = arith.constant 0 : index
    %c0_80 = arith.constant 0 : index
    %330 = vector.load %arg6[%c0_79, %c0_80] : memref<16x128xf32, #tpu.memory_space<vmem>>, vector<16x128xf32>
    %331 = vector.shape_cast %330 : vector<16x128xf32> to vector<1x16x128xf32>
    %332 = vector.broadcast %331 : vector<1x16x128xf32> to vector<2x16x128xf32>
    %333 = arith.mulf %329, %332 : vector<2x16x128xf32>
    %cst_81 = arith.constant dense<0.000000e+00> : vector<2x16xf32>
    %334 = vector.multi_reduction <add>, %333, %cst_81 [2] : vector<2x16x128xf32> to vector<2x16xf32>
    %cst_82 = arith.constant dense<0.000000e+00> : vector<2xf32>
    %335 = vector.multi_reduction <add>, %334, %cst_82 [1] : vector<2x16xf32> to vector<2xf32>
    %336 = vector.shape_cast %335 : vector<2xf32> to vector<2x1xf32>
    %c0_83 = arith.constant 0 : index
    %c0_84 = arith.constant 0 : index
    %337 = vector.load %arg7[%c0_83, %c0_84] : memref<1x1xf32, #tpu.memory_space<vmem>>, vector<1x1xf32>
    %338 = vector.broadcast %337 : vector<1x1xf32> to vector<2x1xf32>
    %339 = arith.addf %336, %338 : vector<2x1xf32>
    %340 = arith.negf %339 : vector<2x1xf32>
    %341 = math.exp %340 : vector<2x1xf32>
    %cst_85 = arith.constant 1.000000e+00 : f32
    %342 = vector.broadcast %cst_85 : f32 to vector<2x1xf32>
    %343 = arith.addf %342, %341 : vector<2x1xf32>
    %344 = arith.divf %342, %343 : vector<2x1xf32>
    %c0_86 = arith.constant 0 : index
    %c0_87 = arith.constant 0 : index
    %345 = vector.load %arg8[%c0_86, %c0_87] : memref<2x1xf32, #tpu.memory_space<vmem>>, vector<2x1xf32>
    tpu.vector_store %arg8[%c0_86, %c0_87], %344 {strides = array<i32>} : memref<2x1xf32, #tpu.memory_space<vmem>>, vector<2x1xf32>,
    return
  }
  func.func @transform_0(%arg0: i32) -> (i32, i32, i32) {
    %c0_i32 = arith.constant 0 : i32
    %c0_i32_0 = arith.constant 0 : i32
    %c0_i32_1 = arith.constant 0 : i32
    return %arg0, %c0_i32, %c0_i32_0 : i32, i32, i32
  }
  func.func @transform_1(%arg0: i32) -> (i32, i32) {
    %c0_i32 = arith.constant 0 : i32
    %c0_i32_0 = arith.constant 0 : i32
    %c0_i32_1 = arith.constant 0 : i32
    return %c0_i32, %c0_i32_0 : i32, i32
  }
  func.func @transform_2(%arg0: i32) -> (i32, i32) {
    %c0_i32 = arith.constant 0 : i32
    %c0_i32_0 = arith.constant 0 : i32
    %c0_i32_1 = arith.constant 0 : i32
    return %c0_i32, %c0_i32_0 : i32, i32
  }
  func.func @transform_3(%arg0: i32) -> (i32, i32) {
    %c0_i32 = arith.constant 0 : i32
    %c0_i32_0 = arith.constant 0 : i32
    %c0_i32_1 = arith.constant 0 : i32
    return %c0_i32, %c0_i32_0 : i32, i32
  }
  func.func @transform_4(%arg0: i32) -> (i32, i32) {
    %c0_i32 = arith.constant 0 : i32
    %c0_i32_0 = arith.constant 0 : i32
    %c0_i32_1 = arith.constant 0 : i32
    return %c0_i32, %c0_i32_0 : i32, i32
  }
  func.func @transform_5(%arg0: i32) -> (i32, i32) {
    %c0_i32 = arith.constant 0 : i32
    %c0_i32_0 = arith.constant 0 : i32
    %c0_i32_1 = arith.constant 0 : i32
    return %c0_i32, %c0_i32_0 : i32, i32
  }
  func.func @transform_6(%arg0: i32) -> (i32, i32) {
    %c0_i32 = arith.constant 0 : i32
    %c0_i32_0 = arith.constant 0 : i32
    %c0_i32_1 = arith.constant 0 : i32
    return %c0_i32, %c0_i32_0 : i32, i32
  }
  func.func @transform_7(%arg0: i32) -> (i32, i32) {
    %c0_i32 = arith.constant 0 : i32
    %c0_i32_0 = arith.constant 0 : i32
    return %arg0, %c0_i32 : i32, i32
  }
}

</mosaic_0001>

<llo_original>
// kernel: discriminator_forward.1
$region0: #{discriminator_forward.1}
  #allocation0 [shape = 'u32[]', space=smem, size = 0x4, offset = 0x4, fixed_abs, tag = 'smem constant byte address 0x4 - core index']
  #allocation1 [shape = 'u32[144,128]{1,0:T(1,128)}', space=vmem, size = 0x12000, scoped, tag = 'internal scratch']
  #allocation2 [shape = 'f32[1,1]{1,0:T(1,128)S(1)}', space=vmem, size = 0x200, scoped, tag = 'scoped memory for discriminator_forward.1']
  %s0 = inlined_call_operand.vmem [shape: bf16[2,144,275], index: 0, kind: input, shape index: {}]
  %s1 = inlined_call_operand.vmem [shape: bf16[275,64], index: 1, kind: input, shape index: {}]
  %s2 = inlined_call_operand.vmem [shape: f32[1,64], index: 2, kind: input, shape index: {}]
  %s3 = inlined_call_operand.vmem [shape: bf16[1600,128], index: 3, kind: input, shape index: {}]
  %s4 = inlined_call_operand.vmem [shape: f32[1,128], index: 4, kind: input, shape index: {}]
  %s5 = inlined_call_operand.vmem [shape: f32[16,128], index: 5, kind: input, shape index: {}]
  %s6 = inlined_call_operand.<no memory space> [shape: f32[1,1], index: 6, kind: input, shape index: {}]
  %s7 = inlined_call_operand.vmem [shape: f32[2,1], index: 7, kind: output, shape index: {}]
  %s8 = sld [smem:[#allocation0]]
  $region38: #{discriminator_forward.1} parent=0
    _
  %s10 = ssub.s32 1, %s8
  %s11 = scalar_select 0, %s10, %s8
  %v12 = vstv %s6
  %13 = vst [vmem:[#allocation2] sm:$0x1] %v12
  // Predicated region
  $region2: #{discriminator_forward.1} parent=0 // pred_check
    _
  $region3: #{discriminator_forward.1} parent=0 // pred_check_branch
    %15 = sbr.rel (0) target = $region5
  $region4: #{discriminator_forward.1} parent=0 // pred_region
    _
  $region5: #{discriminator_forward.1} parent=0 // pred_fallthru
    _
  // Predicated region
  $region6: #{discriminator_forward.1} parent=0 // pred_check
    _
  $region7: #{discriminator_forward.1} parent=0 // pred_check_branch
    %17 = sbr.rel (0) target = $region9
  $region8: #{discriminator_forward.1} parent=0 // pred_region
    _
  $region9: #{discriminator_forward.1} parent=0 // pred_fallthru
    _
  // Predicated region
  $region10: #{discriminator_forward.1} parent=0 // pred_check
    _
  $region11: #{discriminator_forward.1} parent=0 // pred_check_branch
    %19 = sbr.rel (0) target = $region13
  $region12: #{discriminator_forward.1} parent=0 // pred_region
    _
  $region13: #{discriminator_forward.1} parent=0 // pred_fallthru
    _
  // Predicated region
  $region14: #{discriminator_forward.1} parent=0 // pred_check
    _
  $region15: #{discriminator_forward.1} parent=0 // pred_check_branch
    %21 = sbr.rel (0) target = $region17
  $region16: #{discriminator_forward.1} parent=0 // pred_region
    _
  $region17: #{discriminator_forward.1} parent=0 // pred_fallthru
    _
  // Predicated region
  $region18: #{discriminator_forward.1} parent=0 // pred_check
    _
  $region19: #{discriminator_forward.1} parent=0 // pred_check_branch
    %23 = sbr.rel (0) target = $region21
  $region20: #{discriminator_forward.1} parent=0 // pred_region
    _
  $region21: #{discriminator_forward.1} parent=0 // pred_fallthru
    _
  // Predicated region
  $region22: #{discriminator_forward.1} parent=0 // pred_check
    _
  $region23: #{discriminator_forward.1} parent=0 // pred_check_branch
    %25 = sbr.rel (0) target = $region25
  $region24: #{discriminator_forward.1} parent=0 // pred_region
    _
  $region25: #{discriminator_forward.1} parent=0 // pred_fallthru
    _
  // Predicated region
  $region26: #{discriminator_forward.1} parent=0 // pred_check
    _
  $region27: #{discriminator_forward.1} parent=0 // pred_check_branch
    %27 = sbr.rel (0) target = $region29
  $region28: #{discriminator_forward.1} parent=0 // pred_region
    _
  $region29: #{discriminator_forward.1} parent=0 // pred_fallthru
    _
  %v29 = vld [vmem:[%s0] sm:$0xff]
  %v30 = vld [vmem:[%s0 + $0x8] sm:$0xf]
  %v31 = vld [vmem:[%s0 + $0xc] sm:$0xff]
  %v32 = vld [vmem:[%s0 + $0x14] sm:$0xf]
  %v33 = vld [vmem:[%s0 + $0x18] sm:$0xff]
  %v34 = vld [vmem:[%s0 + $0x20] sm:$0xf]
  %v35 = vld [vmem:[%s0 + $0x24] sm:$0xff]
  %v36 = vld [vmem:[%s0 + $0x2c] sm:$0xf]
  %v37 = vld [vmem:[%s0 + $0x30] sm:$0xff]
  %v38 = vld [vmem:[%s0 + $0x38] sm:$0xf]
  %v39 = vld [vmem:[%s0 + $0x3c] sm:$0xff]
  %v40 = vld [vmem:[%s0 + $0x44] sm:$0xf]
  %v41 = vld [vmem:[%s0 + $0x48] sm:$0xff]
  %v42 = vld [vmem:[%s0 + $0x50] sm:$0xf]
  %v43 = vld [vmem:[%s0 + $0x54] sm:$0xff]
  %v44 = vld [vmem:[%s0 + $0x5c] sm:$0xf]
  %v45 = vld [vmem:[%s0 + $0x60] sm:$0xff]
  %v46 = vld [vmem:[%s0 + $0x68] sm:$0xf]
  %v47 = vld [vmem:[%s0 + $0x6c] sm:$0xff]
  %v48 = vld [vmem:[%s0 + $0x74] sm:$0xf]
  %v49 = vld [vmem:[%s0 + $0x78] sm:$0xff]
  %v50 = vld [vmem:[%s0 + $0x80] sm:$0xf]
  %v51 = vld [vmem:[%s0 + $0x84] sm:$0xff]
  %v52 = vld [vmem:[%s0 + $0x8c] sm:$0xf]
  %v53 = vld [vmem:[%s0 + $0x90] sm:$0xff]
  %v54 = vld [vmem:[%s0 + $0x98] sm:$0xf]
  %v55 = vld [vmem:[%s0 + $0x9c] sm:$0xff]
  %v56 = vld [vmem:[%s0 + $0xa4] sm:$0xf]
  %v57 = vld [vmem:[%s0 + $0xa8] sm:$0xff]
  %v58 = vld [vmem:[%s0 + $0xb0] sm:$0xf]
  %v59 = vld [vmem:[%s0 + $0xb4] sm:$0xff]
  %v60 = vld [vmem:[%s0 + $0xbc] sm:$0xf]
  %v61 = vld [vmem:[%s0 + $0xc0] sm:$0xff]
  %v62 = vld [vmem:[%s0 + $0xc8] sm:$0xf]
  %v63 = vld [vmem:[%s0 + $0xcc] sm:$0xff]
  %v64 = vld [vmem:[%s0 + $0xd4] sm:$0xf]
  %v65 = vld [vmem:[%s0 + $0xd8] sm:$0xff]
  %v66 = vld [vmem:[%s0 + $0xe0] sm:$0xf]
  %v67 = vld [vmem:[%s0 + $0xe4] sm:$0xff]
  %v68 = vld [vmem:[%s0 + $0xec] sm:$0xf]
  %v69 = vld [vmem:[%s0 + $0xf0] sm:$0xff]
  %v70 = vld [vmem:[%s0 + $0xf8] sm:$0xf]
  %v71 = vld [vmem:[%s0 + $0xfc] sm:$0xff]
  %v72 = vld [vmem:[%s0 + $0x104] sm:$0xf]
  %v73 = vld [vmem:[%s0 + $0x108] sm:$0xff]
  %v74 = vld [vmem:[%s0 + $0x110] sm:$0xf]
  %v75 = vld [vmem:[%s0 + $0x114] sm:$0xff]
  %v76 = vld [vmem:[%s0 + $0x11c] sm:$0xf]
  %v77 = vld [vmem:[%s0 + $0x120] sm:$0xff]
  %v78 = vld [vmem:[%s0 + $0x128] sm:$0xf]
  %v79 = vld [vmem:[%s0 + $0x12c] sm:$0xff]
  %v80 = vld [vmem:[%s0 + $0x134] sm:$0xf]
  %v81 = vld [vmem:[%s0 + $0x138] sm:$0xff]
  %v82 = vld [vmem:[%s0 + $0x140] sm:$0xf]
  %v83 = vld [vmem:[%s0 + $0x144] sm:$0xff]
  %v84 = vld [vmem:[%s0 + $0x14c] sm:$0xf]
  %v85 = vld [vmem:[%s0 + $0x150] sm:$0xff]
  %v86 = vld [vmem:[%s0 + $0x158] sm:$0xf]
  %v87 = vld [vmem:[%s0 + $0x15c] sm:$0xff]
  %v88 = vld [vmem:[%s0 + $0x164] sm:$0xf]
  %v89 = vld [vmem:[%s0 + $0x168] sm:$0xff]
  %v90 = vld [vmem:[%s0 + $0x170] sm:$0xf]
  %v91 = vld [vmem:[%s0 + $0x174] sm:$0xff]
  %v92 = vld [vmem:[%s0 + $0x17c] sm:$0xf]
  %v93 = vld [vmem:[%s0 + $0x180] sm:$0xff]
  %v94 = vld [vmem:[%s0 + $0x188] sm:$0xf]
  %v95 = vld [vmem:[%s0 + $0x18c] sm:$0xff]
  %v96 = vld [vmem:[%s0 + $0x194] sm:$0xf]
  %v97 = vld [vmem:[%s0 + $0x198] sm:$0xff]
  %v98 = vld [vmem:[%s0 + $0x1a0] sm:$0xf]
  %v99 = vld [vmem:[%s0 + $0x1a4] sm:$0xff]
  %v100 = vld [vmem:[%s0 + $0x1ac] sm:$0xf]
  %v101 = vld [vmem:[%s1] sm:$0xf]
  %v102 = vld [vmem:[%s1 + $0x4] sm:$0xf]
  %v103 = vld [vmem:[%s1 + $0x8] sm:$0xf]
  %v104 = vld [vmem:[%s1 + $0xc] sm:$0xf]
  %v105 = vld [vmem:[%s1 + $0x10] sm:$0xf]
  %v106 = vld [vmem:[%s1 + $0x14] sm:$0xf]
  %v107 = vld [vmem:[%s1 + $0x18] sm:$0xf]
  %v108 = vld [vmem:[%s1 + $0x1c] sm:$0xf]
  %v109 = vld [vmem:[%s1 + $0x20] sm:$0xf]
  %v110 = vld [vmem:[%s1 + $0x24] sm:$0xf]
  %v111 = vld [vmem:[%s1 + $0x28] sm:$0xf]
  %v112 = vld [vmem:[%s1 + $0x2c] sm:$0xf]
  %v113 = vld [vmem:[%s1 + $0x30] sm:$0xf]
  %v114 = vld [vmem:[%s1 + $0x34] sm:$0xf]
  %v115 = vld [vmem:[%s1 + $0x38] sm:$0xf]
  %v116 = vld [vmem:[%s1 + $0x3c] sm:$0xf]
  %v117 = vld [vmem:[%s1 + $0x40] sm:$0xf]
  %v118 = vld [vmem:[%s1 + $0x44] sm:$0xf]
  %v119 = vld [vmem:[%s1 + $0x48] sm:$0xf]
  %v120 = vld [vmem:[%s1 + $0x4c] sm:$0xf]
  %v121 = vld [vmem:[%s1 + $0x50] sm:$0xf]
  %v122 = vld [vmem:[%s1 + $0x54] sm:$0xf]
  %v123 = vld [vmem:[%s1 + $0x58] sm:$0xf]
  %v124 = vld [vmem:[%s1 + $0x5c] sm:$0xf]
  %v125 = vld [vmem:[%s1 + $0x60] sm:$0xf]
  %v126 = vld [vmem:[%s1 + $0x64] sm:$0xf]
  %v127 = vld [vmem:[%s1 + $0x68] sm:$0xf]
  %v128 = vld [vmem:[%s1 + $0x6c] sm:$0xf]
  %v129 = vld [vmem:[%s1 + $0x70] sm:$0xf]
  %v130 = vld [vmem:[%s1 + $0x74] sm:$0xf]
  %v131 = vld [vmem:[%s1 + $0x78] sm:$0xf]
  %v132 = vld [vmem:[%s1 + $0x7c] sm:$0xf]
  %v133 = vld [vmem:[%s1 + $0x80] sm:$0xf]
  %v134 = vld [vmem:[%s1 + $0x84] sm:$0xf]
  %v135 = vld [vmem:[%s1 + $0x88] sm:$0x3]
  %v136 = vld [vmem:[%s2] sm:$0x1]
  %v138 = vlaneseq
  %v139 = vshrl.u32 %v138, 7
  %v140 = vsub.s32 0, %v139
  %v141 = vrot.slane %v136, %v140
  %v215 = vunpack.c.l.b16 %v29
  %v216 = vunpack.c.h.b16 %v29
  %v217 = vunpack.c.l.b16 %v30
  %v218 = vunpack.c.l.b16 %v31
  %v219 = vunpack.c.h.b16 %v31
  %v220 = vunpack.c.l.b16 %v32
  %v221 = vunpack.c.l.b16 %v33
  %v222 = vunpack.c.h.b16 %v33
  %v223 = vunpack.c.l.b16 %v34
  %v224 = vunpack.c.l.b16 %v35
  %v225 = vunpack.c.h.b16 %v35
  %v226 = vunpack.c.l.b16 %v36
  %v227 = vunpack.c.l.b16 %v37
  %v228 = vunpack.c.h.b16 %v37
  %v229 = vunpack.c.l.b16 %v38
  %v230 = vunpack.c.l.b16 %v39
  %v231 = vunpack.c.h.b16 %v39
  %v232 = vunpack.c.l.b16 %v40
  %v233 = vunpack.c.l.b16 %v41
  %v234 = vunpack.c.h.b16 %v41
  %v235 = vunpack.c.l.b16 %v42
  %v236 = vunpack.c.l.b16 %v43
  %v237 = vunpack.c.h.b16 %v43
  %v238 = vunpack.c.l.b16 %v44
  %v239 = vunpack.c.l.b16 %v45
  %v240 = vunpack.c.h.b16 %v45
  %v241 = vunpack.c.l.b16 %v46
  %v242 = vunpack.c.l.b16 %v47
  %v243 = vunpack.c.h.b16 %v47
  %v244 = vunpack.c.l.b16 %v48
  %v245 = vunpack.c.l.b16 %v49
  %v246 = vunpack.c.h.b16 %v49
  %v247 = vunpack.c.l.b16 %v50
  %v248 = vunpack.c.l.b16 %v51
  %v249 = vunpack.c.h.b16 %v51
  %v250 = vunpack.c.l.b16 %v52
  %v251 = vunpack.c.l.b16 %v53
  %v252 = vunpack.c.h.b16 %v53
  %v253 = vunpack.c.l.b16 %v54
  %v254 = vunpack.c.l.b16 %v55
  %v255 = vunpack.c.h.b16 %v55
  %v256 = vunpack.c.l.b16 %v56
  %v257 = vunpack.c.l.b16 %v57
  %v258 = vunpack.c.h.b16 %v57
  %v259 = vunpack.c.l.b16 %v58
  %v260 = vunpack.c.l.b16 %v59
  %v261 = vunpack.c.h.b16 %v59
  %v262 = vunpack.c.l.b16 %v60
  %v263 = vunpack.c.l.b16 %v61
  %v264 = vunpack.c.h.b16 %v61
  %v265 = vunpack.c.l.b16 %v62
  %v266 = vunpack.c.l.b16 %v63
  %v267 = vunpack.c.h.b16 %v63
  %v268 = vunpack.c.l.b16 %v64
  %v269 = vunpack.c.l.b16 %v65
  %v270 = vunpack.c.h.b16 %v65
  %v271 = vunpack.c.l.b16 %v66
  %v272 = vunpack.c.l.b16 %v67
  %v273 = vunpack.c.h.b16 %v67
  %v274 = vunpack.c.l.b16 %v68
  %v275 = vunpack.c.l.b16 %v69
  %v276 = vunpack.c.h.b16 %v69
  %v277 = vunpack.c.l.b16 %v70
  %v278 = vunpack.c.l.b16 %v71
  %v279 = vunpack.c.h.b16 %v71
  %v280 = vunpack.c.l.b16 %v72
  %v281 = vunpack.c.l.b16 %v73
  %v282 = vunpack.c.h.b16 %v73
  %v283 = vunpack.c.l.b16 %v74
  %v284 = vunpack.c.l.b16 %v75
  %v285 = vunpack.c.h.b16 %v75
  %v286 = vunpack.c.l.b16 %v76
  %v287 = vunpack.c.l.b16 %v77
  %v288 = vunpack.c.h.b16 %v77
  %v289 = vunpack.c.l.b16 %v78
  %v290 = vunpack.c.l.b16 %v79
  %v291 = vunpack.c.h.b16 %v79
  %v292 = vunpack.c.l.b16 %v80
  %v293 = vunpack.c.l.b16 %v81
  %v294 = vunpack.c.h.b16 %v81
  %v295 = vunpack.c.l.b16 %v82
  %v296 = vunpack.c.l.b16 %v83
  %v297 = vunpack.c.h.b16 %v83
  %v298 = vunpack.c.l.b16 %v84
  %v299 = vunpack.c.l.b16 %v85
  %v300 = vunpack.c.h.b16 %v85
  %v301 = vunpack.c.l.b16 %v86
  %v302 = vunpack.c.l.b16 %v87
  %v303 = vunpack.c.h.b16 %v87
  %v304 = vunpack.c.l.b16 %v88
  %v305 = vunpack.c.l.b16 %v89
  %v306 = vunpack.c.h.b16 %v89
  %v307 = vunpack.c.l.b16 %v90
  %v308 = vunpack.c.l.b16 %v91
  %v309 = vunpack.c.h.b16 %v91
  %v310 = vunpack.c.l.b16 %v92
  %v311 = vunpack.c.l.b16 %v93
  %v312 = vunpack.c.h.b16 %v93
  %v313 = vunpack.c.l.b16 %v94
  %v314 = vunpack.c.l.b16 %v95
  %v315 = vunpack.c.h.b16 %v95
  %v316 = vunpack.c.l.b16 %v96
  %v317 = vunpack.c.l.b16 %v97
  %v318 = vunpack.c.h.b16 %v97
  %v319 = vunpack.c.l.b16 %v98
  %v320 = vunpack.c.l.b16 %v99
  %v321 = vunpack.c.h.b16 %v99
  %v322 = vunpack.c.l.b16 %v100
  %v323 = vpack.c.b16 %v218, %v215
  %v324 = vpack.c.b16 %v219, %v216
  %v325 = vpack.c.b16 %v220, %v217
  %v326 = vpack.c.b16 %v224, %v221
  %v327 = vpack.c.b16 %v225, %v222
  %v328 = vpack.c.b16 %v226, %v223
  %v329 = vpack.c.b16 %v230, %v227
  %v330 = vpack.c.b16 %v231, %v228
  %v331 = vpack.c.b16 %v232, %v229
  %v332 = vpack.c.b16 %v236, %v233
  %v333 = vpack.c.b16 %v237, %v234
  %v334 = vpack.c.b16 %v238, %v235
  %v335 = vpack.c.b16 %v242, %v239
  %v336 = vpack.c.b16 %v243, %v240
  %v337 = vpack.c.b16 %v244, %v241
  %v338 = vpack.c.b16 %v248, %v245
  %v339 = vpack.c.b16 %v249, %v246
  %v340 = vpack.c.b16 %v250, %v247
  %v341 = vpack.c.b16 %v254, %v251
  %v342 = vpack.c.b16 %v255, %v252
  %v343 = vpack.c.b16 %v256, %v253
  %v344 = vpack.c.b16 %v260, %v257
  %v345 = vpack.c.b16 %v261, %v258
  %v346 = vpack.c.b16 %v262, %v259
  %v347 = vpack.c.b16 %v266, %v263
  %v348 = vpack.c.b16 %v267, %v264
  %v349 = vpack.c.b16 %v268, %v265
  %v350 = vpack.c.b16 %v272, %v269
  %v351 = vpack.c.b16 %v273, %v270
  %v352 = vpack.c.b16 %v274, %v271
  %v353 = vpack.c.b16 %v278, %v275
  %v354 = vpack.c.b16 %v279, %v276
  %v355 = vpack.c.b16 %v280, %v277
  %v356 = vpack.c.b16 %v284, %v281
  %v357 = vpack.c.b16 %v285, %v282
  %v358 = vpack.c.b16 %v286, %v283
  %v359 = vpack.c.b16 %v290, %v287
  %v360 = vpack.c.b16 %v291, %v288
  %v361 = vpack.c.b16 %v292, %v289
  %v362 = vpack.c.b16 %v296, %v293
  %v363 = vpack.c.b16 %v297, %v294
  %v364 = vpack.c.b16 %v298, %v295
  %v365 = vpack.c.b16 %v302, %v299
  %v366 = vpack.c.b16 %v303, %v300
  %v367 = vpack.c.b16 %v304, %v301
  %v368 = vpack.c.b16 %v308, %v305
  %v369 = vpack.c.b16 %v309, %v306
  %v370 = vpack.c.b16 %v310, %v307
  %v371 = vpack.c.b16 %v314, %v311
  %v372 = vpack.c.b16 %v315, %v312
  %v373 = vpack.c.b16 %v316, %v313
  %v374 = vpack.c.b16 %v320, %v317
  %v375 = vpack.c.b16 %v321, %v318
  %v376 = vpack.c.b16 %v322, %v319
  %v448 = vunpack.c.l.b16 %v101
  %v449 = vunpack.c.l.b16 %v102
  %v450 = vunpack.c.l.b16 %v103
  %v451 = vunpack.c.l.b16 %v104
  %v452 = vunpack.c.l.b16 %v105
  %v453 = vunpack.c.l.b16 %v106
  %v454 = vunpack.c.l.b16 %v107
  %v455 = vunpack.c.l.b16 %v108
  %v456 = vunpack.c.l.b16 %v109
  %v457 = vunpack.c.l.b16 %v110
  %v458 = vunpack.c.l.b16 %v111
  %v459 = vunpack.c.l.b16 %v112
  %v460 = vunpack.c.l.b16 %v113
  %v461 = vunpack.c.l.b16 %v114
  %v462 = vunpack.c.l.b16 %v115
  %v463 = vunpack.c.l.b16 %v116
  %v464 = vunpack.c.l.b16 %v117
  %v465 = vunpack.c.l.b16 %v118
  %v466 = vunpack.c.l.b16 %v119
  %v467 = vunpack.c.l.b16 %v120
  %v468 = vunpack.c.l.b16 %v121
  %v469 = vunpack.c.l.b16 %v122
  %v470 = vunpack.c.l.b16 %v123
  %v471 = vunpack.c.l.b16 %v124
  %v472 = vunpack.c.l.b16 %v125
  %v473 = vunpack.c.l.b16 %v126
  %v474 = vunpack.c.l.b16 %v127
  %v475 = vunpack.c.l.b16 %v128
  %v476 = vunpack.c.l.b16 %v129
  %v477 = vunpack.c.l.b16 %v130
  %v478 = vunpack.c.l.b16 %v131
  %v479 = vunpack.c.l.b16 %v132
  %v480 = vunpack.c.l.b16 %v133
  %v481 = vunpack.c.l.b16 %v134
  %v482 = vunpack.c.l.b16 %v135
  %v483 = vpack.c.b16 %v449, %v448
  %v484 = vpack.c.b16 %v451, %v450
  %v485 = vpack.c.b16 %v453, %v452
  %v486 = vpack.c.b16 %v455, %v454
  %v487 = vpack.c.b16 %v457, %v456
  %v488 = vpack.c.b16 %v459, %v458
  %v489 = vpack.c.b16 %v461, %v460
  %v490 = vpack.c.b16 %v463, %v462
  %v491 = vpack.c.b16 %v465, %v464
  %v492 = vpack.c.b16 %v467, %v466
  %v493 = vpack.c.b16 %v469, %v468
  %v494 = vpack.c.b16 %v471, %v470
  %v495 = vpack.c.b16 %v473, %v472
  %v496 = vpack.c.b16 %v475, %v474
  %v497 = vpack.c.b16 %v477, %v476
  %v498 = vpack.c.b16 %v479, %v478
  %v499 = vpack.c.b16 %v481, %v480
  %v500 = vpack.c.b16 %v482, %v482
  %vm518 = vcmask 154624
  %v520 = vsel %vm518, %v325, 0
  %v523 = vsel %vm518, %v328, 0
  %v526 = vsel %vm518, %v331, 0
  %v529 = vsel %vm518, %v334, 0
  %v532 = vsel %vm518, %v337, 0
  %v535 = vsel %vm518, %v340, 0
  %v538 = vsel %vm518, %v343, 0
  %v541 = vsel %vm518, %v346, 0
  %v544 = vsel %vm518, %v349, 0
  %v547 = vsel %vm518, %v352, 0
  %v550 = vsel %vm518, %v355, 0
  %v553 = vsel %vm518, %v358, 0
  %v556 = vsel %vm518, %v361, 0
  %v559 = vsel %vm518, %v364, 0
  %v562 = vsel %vm518, %v367, 0
  %v565 = vsel %vm518, %v370, 0
  %v568 = vsel %vm518, %v373, 0
  %v571 = vsel %vm518, %v376, 0
  %vm573 = vcmask 1040384
  %vm574 = vcmask 1041408
  %v575 = vsel %vm573, 4294967295, 65535
  %v576 = vsel %vm574, %v575, 0
  %v578 = vand.u32 %v500, %v576
  %580 = vmatprep.subr.bf16.mxu0 0
  %581 = vmatpush1.bf16.msra.mxu0 %v483
  %582 = vmatprep.subr.bf16.mxu0 0
  %583 = vmatpush1.bf16.msra.mxu0 %v484
  %584 = vmatprep.subr.bf16.mxu0 0
  %585 = vmatpush1.bf16.msra.mxu0 %v485
  %586 = vmatprep.subr.bf16.mxu0 0
  %587 = vmatpush1.bf16.msra.mxu0 %v486
  %588 = vmatprep.subr.bf16.mxu0 0
  %589 = vmatpush1.bf16.msra.mxu0 %v487
  %590 = vmatprep.subr.bf16.mxu0 0
  %591 = vmatpush1.bf16.msra.mxu0 %v488
  %592 = vmatprep.subr.bf16.mxu0 0
  %593 = vmatpush1.bf16.msra.mxu0 %v489
  %594 = vmatprep.subr.bf16.mxu0 0
  %595 = vmatpush1.bf16.msra.mxu0 %v490
  %596 = vmatprep.subr.bf16.mxu0 0
  %597 = vmatpush1.bf16.msra.mxu0 %v491
  %598 = vmatprep.subr.bf16.mxu0 0
  %599 = vmatpush1.bf16.msra.mxu0 %v492
  %600 = vmatprep.subr.bf16.mxu0 0
  %601 = vmatpush1.bf16.msra.mxu0 %v493
  %602 = vmatprep.subr.bf16.mxu0 0
  %603 = vmatpush1.bf16.msra.mxu0 %v494
  %604 = vmatprep.subr.bf16.mxu0 0
  %605 = vmatpush1.bf16.msra.mxu0 %v495
  %606 = vmatprep.subr.bf16.mxu0 0
  %607 = vmatpush1.bf16.msra.mxu0 %v496
  %608 = vmatprep.subr.bf16.mxu0 0
  %609 = vmatpush1.bf16.msra.mxu0 %v497
  %610 = vmatprep.subr.bf16.mxu0 0
  %611 = vmatpush1.bf16.msra.mxu0 %v498
  %612 = vmatprep.mubr.bf16.mxu0 %v324
  %613 = vmatmul.mubr.bf16.gmra.mrb[0].mxu0 %v323
  %v614 = vpop.f32.mrb[0].mxu0
  %v615 = vadd.f32 %v141, %v614
  %v616 = vpop.f32.mrb[0].mxu0
  %v617 = vpop.f32.mrb[0].mxu0
  %v618 = vadd.f32 %v141, %v617
  %v619 = vpop.f32.mrb[0].mxu0
  %620 = vmatprep.mubr.bf16.mxu0 %v327
  %621 = vmatmul.mubr.bf16.gmra.mrb[0].mxu0 %v326
  %v622 = vpop.f32.mrb[0].mxu0
  %v623 = vadd.f32 %v141, %v622
  %v624 = vpop.f32.mrb[0].mxu0
  %v625 = vpop.f32.mrb[0].mxu0
  %v626 = vadd.f32 %v141, %v625
  %v627 = vpop.f32.mrb[0].mxu0
  %628 = vmatprep.mubr.bf16.mxu0 %v330
  %629 = vmatmul.mubr.bf16.gmra.mrb[0].mxu0 %v329
  %v630 = vpop.f32.mrb[0].mxu0
  %v631 = vadd.f32 %v141, %v630
  %v632 = vpop.f32.mrb[0].mxu0
  %v633 = vpop.f32.mrb[0].mxu0
  %v634 = vadd.f32 %v141, %v633
  %v635 = vpop.f32.mrb[0].mxu0
  %636 = vmatprep.mubr.bf16.mxu0 %v333
  %637 = vmatmul.mubr.bf16.gmra.mrb[0].mxu0 %v332
  %v638 = vpop.f32.mrb[0].mxu0
  %v639 = vadd.f32 %v141, %v638
  %v640 = vpop.f32.mrb[0].mxu0
  %v641 = vpop.f32.mrb[0].mxu0
  %v642 = vadd.f32 %v141, %v641
  %v643 = vpop.f32.mrb[0].mxu0
  %644 = vmatprep.mubr.bf16.mxu0 %v336
  %645 = vmatmul.mubr.bf16.gmra.mrb[0].mxu0 %v335
  %v646 = vpop.f32.mrb[0].mxu0
  %v647 = vadd.f32 %v141, %v646
  %v648 = vpop.f32.mrb[0].mxu0
  %v649 = vpop.f32.mrb[0].mxu0
  %v650 = vadd.f32 %v141, %v649
  %v651 = vpop.f32.mrb[0].mxu0
  %652 = vmatprep.mubr.bf16.mxu0 %v339
  %653 = vmatmul.mubr.bf16.gmra.mrb[0].mxu0 %v338
  %v654 = vpop.f32.mrb[0].mxu0
  %v655 = vadd.f32 %v141, %v654
  %v656 = vpop.f32.mrb[0].mxu0
  %v657 = vpop.f32.mrb[0].mxu0
  %v658 = vadd.f32 %v141, %v657
  %v659 = vpop.f32.mrb[0].mxu0
  %660 = vmatprep.mubr.bf16.mxu0 %v342
  %661 = vmatmul.mubr.bf16.gmra.mrb[0].mxu0 %v341
  %v662 = vpop.f32.mrb[0].mxu0
  %v663 = vadd.f32 %v141, %v662
  %v664 = vpop.f32.mrb[0].mxu0
  %v665 = vpop.f32.mrb[0].mxu0
  %v666 = vadd.f32 %v141, %v665
  %v667 = vpop.f32.mrb[0].mxu0
  %668 = vmatprep.mubr.bf16.mxu0 %v345
  %669 = vmatmul.mubr.bf16.gmra.mrb[0].mxu0 %v344
  %v670 = vpop.f32.mrb[0].mxu0
  %v671 = vadd.f32 %v141, %v670
  %v672 = vpop.f32.mrb[0].mxu0
  %v673 = vpop.f32.mrb[0].mxu0
  %v674 = vadd.f32 %v141, %v673
  %v675 = vpop.f32.mrb[0].mxu0
  %676 = vmatprep.mubr.bf16.mxu0 %v348
  %677 = vmatmul.mubr.bf16.gmra.mrb[0].mxu0 %v347
  %v678 = vpop.f32.mrb[0].mxu0
  %v679 = vadd.f32 %v141, %v678
  %v680 = vpop.f32.mrb[0].mxu0
  %v681 = vpop.f32.mrb[0].mxu0
  %v682 = vadd.f32 %v141, %v681
  %v683 = vpop.f32.mrb[0].mxu0
  %684 = vmatprep.mubr.bf16.mxu0 %v351
  %685 = vmatmul.mubr.bf16.gmra.mrb[0].mxu0 %v350
  %v686 = vpop.f32.mrb[0].mxu0
  %v687 = vadd.f32 %v141, %v686
  %v688 = vpop.f32.mrb[0].mxu0
  %v689 = vpop.f32.mrb[0].mxu0
  %v690 = vadd.f32 %v141, %v689
  %v691 = vpop.f32.mrb[0].mxu0
  %692 = vmatprep.mubr.bf16.mxu0 %v354
  %693 = vmatmul.mubr.bf16.gmra.mrb[0].mxu0 %v353
  %v694 = vpop.f32.mrb[0].mxu0
  %v695 = vadd.f32 %v141, %v694
  %v696 = vpop.f32.mrb[0].mxu0
  %v697 = vpop.f32.mrb[0].mxu0
  %v698 = vadd.f32 %v141, %v697
  %v699 = vpop.f32.mrb[0].mxu0
  %700 = vmatprep.mubr.bf16.mxu0 %v357
  %701 = vmatmul.mubr.bf16.gmra.mrb[0].mxu0 %v356
  %v702 = vpop.f32.mrb[0].mxu0
  %v703 = vadd.f32 %v141, %v702
  %v704 = vpop.f32.mrb[0].mxu0
  %v705 = vpop.f32.mrb[0].mxu0
  %v706 = vadd.f32 %v141, %v705
  %v707 = vpop.f32.mrb[0].mxu0
  %708 = vmatprep.mubr.bf16.mxu0 %v360
  %709 = vmatmul.mubr.bf16.gmra.mrb[0].mxu0 %v359
  %v710 = vpop.f32.mrb[0].mxu0
  %v711 = vadd.f32 %v141, %v710
  %v712 = vpop.f32.mrb[0].mxu0
  %v713 = vpop.f32.mrb[0].mxu0
  %v714 = vadd.f32 %v141, %v713
  %v715 = vpop.f32.mrb[0].mxu0
  %716 = vmatprep.mubr.bf16.mxu0 %v363
  %717 = vmatmul.mubr.bf16.gmra.mrb[0].mxu0 %v362
  %v718 = vpop.f32.mrb[0].mxu0
  %v719 = vadd.f32 %v141, %v718
  %v720 = vpop.f32.mrb[0].mxu0
  %v721 = vpop.f32.mrb[0].mxu0
  %v722 = vadd.f32 %v141, %v721
  %v723 = vpop.f32.mrb[0].mxu0
  %724 = vmatprep.mubr.bf16.mxu0 %v366
  %725 = vmatmul.mubr.bf16.gmra.mrb[0].mxu0 %v365
  %v726 = vpop.f32.mrb[0].mxu0
  %v727 = vadd.f32 %v141, %v726
  %v728 = vpop.f32.mrb[0].mxu0
  %v729 = vpop.f32.mrb[0].mxu0
  %v730 = vadd.f32 %v141, %v729
  %v731 = vpop.f32.mrb[0].mxu0
  %732 = vmatprep.mubr.bf16.mxu0 %v369
  %733 = vmatmul.mubr.bf16.gmra.mrb[0].mxu0 %v368
  %v734 = vpop.f32.mrb[0].mxu0
  %v735 = vadd.f32 %v141, %v734
  %v736 = vpop.f32.mrb[0].mxu0
  %v737 = vpop.f32.mrb[0].mxu0
  %v738 = vadd.f32 %v141, %v737
  %v739 = vpop.f32.mrb[0].mxu0
  %740 = vmatprep.mubr.bf16.mxu0 %v372
  %741 = vmatmul.mubr.bf16.gmra.mrb[0].mxu0 %v371
  %v742 = vpop.f32.mrb[0].mxu0
  %v743 = vadd.f32 %v141, %v742
  %v744 = vpop.f32.mrb[0].mxu0
  %v745 = vpop.f32.mrb[0].mxu0
  %v746 = vadd.f32 %v141, %v745
  %v747 = vpop.f32.mrb[0].mxu0
  %748 = vmatprep.mubr.bf16.mxu0 %v375
  %749 = vmatmul.mubr.bf16.gmra.mrb[0].mxu0 %v374
  %v750 = vpop.f32.mrb[0].mxu0
  %v751 = vadd.f32 %v141, %v750
  %v752 = vpop.f32.mrb[0].mxu0
  %v753 = vpop.f32.mrb[0].mxu0
  %v754 = vadd.f32 %v141, %v753
  %v755 = vpop.f32.mrb[0].mxu0
  %756 = vdwg.mxu0
  %757 = vmatprep.subr.bf16.mxu0 0
  %758 = vmatpush1.bf16.msra.mxu0 %v499
  %759 = vmatprep.subr.bf16.mxu0 0
  %760 = vmatpush1.bf16.msra.mxu0 %v578
  %761 = vmatprep.subr.bf16.mxu0 0
  %762 = vmatpush1.bf16.msra.mxu0 0
  %763 = vmatprep.subr.bf16.mxu0 0
  %764 = vmatpush1.bf16.msra.mxu0 0
  %765 = vmatprep.subr.bf16.mxu0 0
  %766 = vmatpush1.bf16.msra.mxu0 0
  %767 = vmatprep.subr.bf16.mxu0 0
  %768 = vmatpush1.bf16.msra.mxu0 0
  %769 = vmatprep.subr.bf16.mxu0 0
  %770 = vmatpush1.bf16.msra.mxu0 0
  %771 = vmatprep.subr.bf16.mxu0 0
  %772 = vmatpush1.bf16.msra.mxu0 0
  %773 = vmatprep.subr.bf16.mxu0 0
  %774 = vmatpush1.bf16.msra.mxu0 0
  %775 = vmatprep.subr.bf16.mxu0 0
  %776 = vmatpush1.bf16.msra.mxu0 0
  %777 = vmatprep.subr.bf16.mxu0 0
  %778 = vmatpush1.bf16.msra.mxu0 0
  %779 = vmatprep.subr.bf16.mxu0 0
  %780 = vmatpush1.bf16.msra.mxu0 0
  %781 = vmatprep.subr.bf16.mxu0 0
  %782 = vmatpush1.bf16.msra.mxu0 0
  %783 = vmatprep.subr.bf16.mxu0 0
  %784 = vmatpush1.bf16.msra.mxu0 0
  %785 = vmatprep.subr.bf16.mxu0 0
  %786 = vmatpush1.bf16.msra.mxu0 0
  %787 = vmatprep.subr.bf16.mxu0 0
  %788 = vmatpush1.bf16.msra.mxu0 0
  %789 = vmatprep.mubr.bf16.mxu0 0
  %790 = vmatmul.mubr.bf16.gmra.mrb[0].mxu0 %v520
  %v791 = vpop.f32.mrb[0].mxu0
  %v792 = vadd.f32 %v615, %v791
  %v793 = vpop.f32.mrb[0].mxu0
  %v794 = vpop.f32.mrb[0].mxu0
  %v795 = vadd.f32 %v618, %v794
  %v796 = vpop.f32.mrb[0].mxu0
  %797 = vmatprep.mubr.bf16.mxu0 0
  %798 = vmatmul.mubr.bf16.gmra.mrb[0].mxu0 %v523
  %v799 = vpop.f32.mrb[0].mxu0
  %v800 = vadd.f32 %v623, %v799
  %v801 = vpop.f32.mrb[0].mxu0
  %v802 = vpop.f32.mrb[0].mxu0
  %v803 = vadd.f32 %v626, %v802
  %v804 = vpop.f32.mrb[0].mxu0
  %805 = vmatprep.mubr.bf16.mxu0 0
  %806 = vmatmul.mubr.bf16.gmra.mrb[0].mxu0 %v526
  %v807 = vpop.f32.mrb[0].mxu0
  %v808 = vadd.f32 %v631, %v807
  %v809 = vpop.f32.mrb[0].mxu0
  %v810 = vpop.f32.mrb[0].mxu0
  %v811 = vadd.f32 %v634, %v810
  %v812 = vpop.f32.mrb[0].mxu0
  %813 = vmatprep.mubr.bf16.mxu0 0
  %814 = vmatmul.mubr.bf16.gmra.mrb[0].mxu0 %v529
  %v815 = vpop.f32.mrb[0].mxu0
  %v816 = vadd.f32 %v639, %v815
  %v817 = vpop.f32.mrb[0].mxu0
  %v818 = vpop.f32.mrb[0].mxu0
  %v819 = vadd.f32 %v642, %v818
  %v820 = vpop.f32.mrb[0].mxu0
  %821 = vmatprep.mubr.bf16.mxu0 0
  %822 = vmatmul.mubr.bf16.gmra.mrb[0].mxu0 %v532
  %v823 = vpop.f32.mrb[0].mxu0
  %v824 = vadd.f32 %v647, %v823
  %v825 = vpop.f32.mrb[0].mxu0
  %v826 = vpop.f32.mrb[0].mxu0
  %v827 = vadd.f32 %v650, %v826
  %v828 = vpop.f32.mrb[0].mxu0
  %829 = vmatprep.mubr.bf16.mxu0 0
  %830 = vmatmul.mubr.bf16.gmra.mrb[0].mxu0 %v535
  %v831 = vpop.f32.mrb[0].mxu0
  %v832 = vadd.f32 %v655, %v831
  %v833 = vpop.f32.mrb[0].mxu0
  %v834 = vpop.f32.mrb[0].mxu0
  %v835 = vadd.f32 %v658, %v834
  %v836 = vpop.f32.mrb[0].mxu0
  %837 = vmatprep.mubr.bf16.mxu0 0
  %838 = vmatmul.mubr.bf16.gmra.mrb[0].mxu0 %v538
  %v839 = vpop.f32.mrb[0].mxu0
  %v840 = vadd.f32 %v663, %v839
  %v841 = vpop.f32.mrb[0].mxu0
  %v842 = vpop.f32.mrb[0].mxu0
  %v843 = vadd.f32 %v666, %v842
  %v844 = vpop.f32.mrb[0].mxu0
  %845 = vmatprep.mubr.bf16.mxu0 0
  %846 = vmatmul.mubr.bf16.gmra.mrb[0].mxu0 %v541
  %v847 = vpop.f32.mrb[0].mxu0
  %v848 = vadd.f32 %v671, %v847
  %v849 = vpop.f32.mrb[0].mxu0
  %v850 = vpop.f32.mrb[0].mxu0
  %v851 = vadd.f32 %v674, %v850
  %v852 = vpop.f32.mrb[0].mxu0
  %853 = vmatprep.mubr.bf16.mxu0 0
  %854 = vmatmul.mubr.bf16.gmra.mrb[0].mxu0 %v544
  %v855 = vpop.f32.mrb[0].mxu0
  %v856 = vadd.f32 %v679, %v855
  %v857 = vpop.f32.mrb[0].mxu0
  %v858 = vpop.f32.mrb[0].mxu0
  %v859 = vadd.f32 %v682, %v858
  %v860 = vpop.f32.mrb[0].mxu0
  %861 = vmatprep.mubr.bf16.mxu0 0
  %862 = vmatmul.mubr.bf16.gmra.mrb[0].mxu0 %v547
  %v863 = vpop.f32.mrb[0].mxu0
  %v864 = vadd.f32 %v687, %v863
  %v865 = vpop.f32.mrb[0].mxu0
  %v866 = vpop.f32.mrb[0].mxu0
  %v867 = vadd.f32 %v690, %v866
  %v868 = vpop.f32.mrb[0].mxu0
  %869 = vmatprep.mubr.bf16.mxu0 0
  %870 = vmatmul.mubr.bf16.gmra.mrb[0].mxu0 %v550
  %v871 = vpop.f32.mrb[0].mxu0
  %v872 = vadd.f32 %v695, %v871
  %v873 = vpop.f32.mrb[0].mxu0
  %v874 = vpop.f32.mrb[0].mxu0
  %v875 = vadd.f32 %v698, %v874
  %v876 = vpop.f32.mrb[0].mxu0
  %877 = vmatprep.mubr.bf16.mxu0 0
  %878 = vmatmul.mubr.bf16.gmra.mrb[0].mxu0 %v553
  %v879 = vpop.f32.mrb[0].mxu0
  %v880 = vadd.f32 %v703, %v879
  %v881 = vpop.f32.mrb[0].mxu0
  %v882 = vpop.f32.mrb[0].mxu0
  %v883 = vadd.f32 %v706, %v882
  %v884 = vpop.f32.mrb[0].mxu0
  %885 = vmatprep.mubr.bf16.mxu0 0
  %886 = vmatmul.mubr.bf16.gmra.mrb[0].mxu0 %v556
  %v887 = vpop.f32.mrb[0].mxu0
  %v888 = vadd.f32 %v711, %v887
  %v889 = vpop.f32.mrb[0].mxu0
  %v890 = vpop.f32.mrb[0].mxu0
  %v891 = vadd.f32 %v714, %v890
  %v892 = vpop.f32.mrb[0].mxu0
  %893 = vmatprep.mubr.bf16.mxu0 0
  %894 = vmatmul.mubr.bf16.gmra.mrb[0].mxu0 %v559
  %v895 = vpop.f32.mrb[0].mxu0
  %v896 = vadd.f32 %v719, %v895
  %v897 = vpop.f32.mrb[0].mxu0
  %v898 = vpop.f32.mrb[0].mxu0
  %v899 = vadd.f32 %v722, %v898
  %v900 = vpop.f32.mrb[0].mxu0
  %901 = vmatprep.mubr.bf16.mxu0 0
  %902 = vmatmul.mubr.bf16.gmra.mrb[0].mxu0 %v562
  %v903 = vpop.f32.mrb[0].mxu0
  %v904 = vadd.f32 %v727, %v903
  %v905 = vpop.f32.mrb[0].mxu0
  %v906 = vpop.f32.mrb[0].mxu0
  %v907 = vadd.f32 %v730, %v906
  %v908 = vpop.f32.mrb[0].mxu0
  %909 = vmatprep.mubr.bf16.mxu0 0
  %910 = vmatmul.mubr.bf16.gmra.mrb[0].mxu0 %v565
  %v911 = vpop.f32.mrb[0].mxu0
  %v912 = vadd.f32 %v735, %v911
  %v913 = vpop.f32.mrb[0].mxu0
  %v914 = vpop.f32.mrb[0].mxu0
  %v915 = vadd.f32 %v738, %v914
  %v916 = vpop.f32.mrb[0].mxu0
  %917 = vmatprep.mubr.bf16.mxu0 0
  %918 = vmatmul.mubr.bf16.gmra.mrb[0].mxu0 %v568
  %v919 = vpop.f32.mrb[0].mxu0
  %v920 = vadd.f32 %v743, %v919
  %v921 = vpop.f32.mrb[0].mxu0
  %v922 = vpop.f32.mrb[0].mxu0
  %v923 = vadd.f32 %v746, %v922
  %v924 = vpop.f32.mrb[0].mxu0
  %925 = vmatprep.mubr.bf16.mxu0 0
  %926 = vmatmul.mubr.bf16.gmra.mrb[0].mxu0 %v571
  %v927 = vpop.f32.mrb[0].mxu0
  %v928 = vadd.f32 %v751, %v927
  %v929 = vpop.f32.mrb[0].mxu0
  %v930 = vpop.f32.mrb[0].mxu0
  %v931 = vadd.f32 %v754, %v930
  %v932 = vpop.f32.mrb[0].mxu0
  %933 = vdwg.mxu0
  %vm934 = vcmask 523264
  %v935 = vsel %vm934, %v792, 0.0
  %v936 = vsel %vm934, %v795, 0.0
  %v937 = vadd.f32 %v935, %v936
  %v938 = vsel %vm934, %v800, 0.0
  %v939 = vadd.f32 %v937, %v938
  %v940 = vsel %vm934, %v803, 0.0
  %v941 = vadd.f32 %v939, %v940
  %v942 = vsel %vm934, %v808, 0.0
  %v943 = vadd.f32 %v941, %v942
  %v944 = vsel %vm934, %v811, 0.0
  %v945 = vadd.f32 %v943, %v944
  %v946 = vsel %vm934, %v816, 0.0
  %v947 = vadd.f32 %v945, %v946
  %v948 = vsel %vm934, %v819, 0.0
  %v949 = vadd.f32 %v947, %v948
  %v950 = vsel %vm934, %v824, 0.0
  %v951 = vadd.f32 %v949, %v950
  %v952 = vsel %vm934, %v827, 0.0
  %v953 = vadd.f32 %v951, %v952
  %v954 = vsel %vm934, %v832, 0.0
  %v955 = vadd.f32 %v953, %v954
  %v956 = vsel %vm934, %v835, 0.0
  %v957 = vadd.f32 %v955, %v956
  %v958 = vsel %vm934, %v840, 0.0
  %v959 = vadd.f32 %v957, %v958
  %v960 = vsel %vm934, %v843, 0.0
  %v961 = vadd.f32 %v959, %v960
  %v962 = vsel %vm934, %v848, 0.0
  %v963 = vadd.f32 %v961, %v962
  %v964 = vsel %vm934, %v851, 0.0
  %v965 = vadd.f32 %v963, %v964
  %v966 = vsel %vm934, %v856, 0.0
  %v967 = vadd.f32 %v965, %v966
  %v968 = vsel %vm934, %v859, 0.0
  %v969 = vadd.f32 %v967, %v968
  %v970 = vrot.slane %v969, 4
  %v971 = vadd.f32 %v969, %v970
  %v972 = vrot.slane %v971, 2
  %v973 = vadd.f32 %v971, %v972
  %v974 = vrot.slane %v973, 1
  %v975 = vadd.f32 %v973, %v974
  %v976 = vsel %vm934, %v864, 0.0
  %v977 = vsel %vm934, %v867, 0.0
  %v978 = vadd.f32 %v976, %v977
  %v979 = vsel %vm934, %v872, 0.0
  %v980 = vadd.f32 %v978, %v979
  %v981 = vsel %vm934, %v875, 0.0
  %v982 = vadd.f32 %v980, %v981
  %v983 = vsel %vm934, %v880, 0.0
  %v984 = vadd.f32 %v982, %v983
  %v985 = vsel %vm934, %v883, 0.0
  %v986 = vadd.f32 %v984, %v985
  %v987 = vsel %vm934, %v888, 0.0
  %v988 = vadd.f32 %v986, %v987
  %v989 = vsel %vm934, %v891, 0.0
  %v990 = vadd.f32 %v988, %v989
  %v991 = vsel %vm934, %v896, 0.0
  %v992 = vadd.f32 %v990, %v991
  %v993 = vsel %vm934, %v899, 0.0
  %v994 = vadd.f32 %v992, %v993
  %v995 = vsel %vm934, %v904, 0.0
  %v996 = vadd.f32 %v994, %v995
  %v997 = vsel %vm934, %v907, 0.0
  %v998 = vadd.f32 %v996, %v997
  %v999 = vsel %vm934, %v912, 0.0
  %v1000 = vadd.f32 %v998, %v999
  %v1001 = vsel %vm934, %v915, 0.0
  %v1002 = vadd.f32 %v1000, %v1001
  %v1003 = vsel %vm934, %v920, 0.0
  %v1004 = vadd.f32 %v1002, %v1003
  %v1005 = vsel %vm934, %v923, 0.0
  %v1006 = vadd.f32 %v1004, %v1005
  %v1007 = vsel %vm934, %v928, 0.0
  %v1008 = vadd.f32 %v1006, %v1007
  %v1009 = vsel %vm934, %v931, 0.0
  %v1010 = vadd.f32 %v1008, %v1009
  %v1011 = vrot.slane %v1010, 4
  %v1012 = vadd.f32 %v1010, %v1011
  %v1013 = vrot.slane %v1012, 2
  %v1014 = vadd.f32 %v1012, %v1013
  %v1015 = vrot.slane %v1014, 1
  %v1016 = vadd.f32 %v1014, %v1015
  %v1017 = vmul.f32 %v792, %v792
  %v1018 = vmul.f32 %v795, %v795
  %v1019 = vmul.f32 %v800, %v800
  %v1020 = vmul.f32 %v803, %v803
  %v1021 = vmul.f32 %v808, %v808
  %v1022 = vmul.f32 %v811, %v811
  %v1023 = vmul.f32 %v816, %v816
  %v1024 = vmul.f32 %v819, %v819
  %v1025 = vmul.f32 %v824, %v824
  %v1026 = vmul.f32 %v827, %v827
  %v1027 = vmul.f32 %v832, %v832
  %v1028 = vmul.f32 %v835, %v835
  %v1029 = vmul.f32 %v840, %v840
  %v1030 = vmul.f32 %v843, %v843
  %v1031 = vmul.f32 %v848, %v848
  %v1032 = vmul.f32 %v851, %v851
  %v1033 = vmul.f32 %v856, %v856
  %v1034 = vmul.f32 %v859, %v859
  %v1035 = vmul.f32 %v864, %v864
  %v1036 = vmul.f32 %v867, %v867
  %v1037 = vmul.f32 %v872, %v872
  %v1038 = vmul.f32 %v875, %v875
  %v1039 = vmul.f32 %v880, %v880
  %v1040 = vmul.f32 %v883, %v883
  %v1041 = vmul.f32 %v888, %v888
  %v1042 = vmul.f32 %v891, %v891
  %v1043 = vmul.f32 %v896, %v896
  %v1044 = vmul.f32 %v899, %v899
  %v1045 = vmul.f32 %v904, %v904
  %v1046 = vmul.f32 %v907, %v907
  %v1047 = vmul.f32 %v912, %v912
  %v1048 = vmul.f32 %v915, %v915
  %v1049 = vmul.f32 %v920, %v920
  %v1050 = vmul.f32 %v923, %v923
  %v1051 = vmul.f32 %v928, %v928
  %v1052 = vmul.f32 %v931, %v931
  %v1053 = vsel %vm934, %v1017, 0.0
  %v1054 = vsel %vm934, %v1018, 0.0
  %v1055 = vadd.f32 %v1053, %v1054
  %v1056 = vsel %vm934, %v1019, 0.0
  %v1057 = vadd.f32 %v1055, %v1056
  %v1058 = vsel %vm934, %v1020, 0.0
  %v1059 = vadd.f32 %v1057, %v1058
  %v1060 = vsel %vm934, %v1021, 0.0
  %v1061 = vadd.f32 %v1059, %v1060
  %v1062 = vsel %vm934, %v1022, 0.0
  %v1063 = vadd.f32 %v1061, %v1062
  %v1064 = vsel %vm934, %v1023, 0.0
  %v1065 = vadd.f32 %v1063, %v1064
  %v1066 = vsel %vm934, %v1024, 0.0
  %v1067 = vadd.f32 %v1065, %v1066
  %v1068 = vsel %vm934, %v1025, 0.0
  %v1069 = vadd.f32 %v1067, %v1068
  %v1070 = vsel %vm934, %v1026, 0.0
  %v1071 = vadd.f32 %v1069, %v1070
  %v1072 = vsel %vm934, %v1027, 0.0
  %v1073 = vadd.f32 %v1071, %v1072
  %v1074 = vsel %vm934, %v1028, 0.0
  %v1075 = vadd.f32 %v1073, %v1074
  %v1076 = vsel %vm934, %v1029, 0.0
  %v1077 = vadd.f32 %v1075, %v1076
  %v1078 = vsel %vm934, %v1030, 0.0
  %v1079 = vadd.f32 %v1077, %v1078
  %v1080 = vsel %vm934, %v1031, 0.0
  %v1081 = vadd.f32 %v1079, %v1080
  %v1082 = vsel %vm934, %v1032, 0.0
  %v1083 = vadd.f32 %v1081, %v1082
  %v1084 = vsel %vm934, %v1033, 0.0
  %v1085 = vadd.f32 %v1083, %v1084
  %v1086 = vsel %vm934, %v1034, 0.0
  %v1087 = vadd.f32 %v1085, %v1086
  %v1088 = vrot.slane %v1087, 4
  %v1089 = vadd.f32 %v1087, %v1088
  %v1090 = vrot.slane %v1089, 2
  %v1091 = vadd.f32 %v1089, %v1090
  %v1092 = vrot.slane %v1091, 1
  %v1093 = vadd.f32 %v1091, %v1092
  %v1094 = vsel %vm934, %v1035, 0.0
  %v1095 = vsel %vm934, %v1036, 0.0
  %v1096 = vadd.f32 %v1094, %v1095
  %v1097 = vsel %vm934, %v1037, 0.0
  %v1098 = vadd.f32 %v1096, %v1097
  %v1099 = vsel %vm934, %v1038, 0.0
  %v1100 = vadd.f32 %v1098, %v1099
  %v1101 = vsel %vm934, %v1039, 0.0
  %v1102 = vadd.f32 %v1100, %v1101
  %v1103 = vsel %vm934, %v1040, 0.0
  %v1104 = vadd.f32 %v1102, %v1103
  %v1105 = vsel %vm934, %v1041, 0.0
  %v1106 = vadd.f32 %v1104, %v1105
  %v1107 = vsel %vm934, %v1042, 0.0
  %v1108 = vadd.f32 %v1106, %v1107
  %v1109 = vsel %vm934, %v1043, 0.0
  %v1110 = vadd.f32 %v1108, %v1109
  %v1111 = vsel %vm934, %v1044, 0.0
  %v1112 = vadd.f32 %v1110, %v1111
  %v1113 = vsel %vm934, %v1045, 0.0
  %v1114 = vadd.f32 %v1112, %v1113
  %v1115 = vsel %vm934, %v1046, 0.0
  %v1116 = vadd.f32 %v1114, %v1115
  %v1117 = vsel %vm934, %v1047, 0.0
  %v1118 = vadd.f32 %v1116, %v1117
  %v1119 = vsel %vm934, %v1048, 0.0
  %v1120 = vadd.f32 %v1118, %v1119
  %v1121 = vsel %vm934, %v1049, 0.0
  %v1122 = vadd.f32 %v1120, %v1121
  %v1123 = vsel %vm934, %v1050, 0.0
  %v1124 = vadd.f32 %v1122, %v1123
  %v1125 = vsel %vm934, %v1051, 0.0
  %v1126 = vadd.f32 %v1124, %v1125
  %v1127 = vsel %vm934, %v1052, 0.0
  %v1128 = vadd.f32 %v1126, %v1127
  %v1129 = vrot.slane %v1128, 4
  %v1130 = vadd.f32 %v1128, %v1129
  %v1131 = vrot.slane %v1130, 2
  %v1132 = vadd.f32 %v1130, %v1131
  %v1133 = vrot.slane %v1132, 1
  %v1134 = vadd.f32 %v1132, %v1133
  %vm1137 = vcmask 1041409
  %v1138 = vsel %vm1137, %v1016, %v975
  %vm1140 = vcmask 123904
  %v1141 = vsel %vm1140, %v1138, 0.0
  %1142 = vadd.xlane.f32.xlu0 %v1141
  %v1143 = vpop.xlane.xlu0 %1142
  %v1144 = vrcp.pop 2304.0
  %v1145 = vmul.f32 %v1143, %v1144
  %v1148 = vsel %vm1137, %v1134, %v1093
  %v1150 = vsel %vm1140, %v1148, 0.0
  %1151 = vadd.xlane.f32.xlu0 %v1150
  %v1152 = vpop.xlane.xlu0 %1151
  %v1153 = vmul.f32 %v1152, %v1144
  %v1154 = vmul.f32 %v1145, %v1145
  %v1155 = vsub.f32 %v1153, %v1154
  %v1156 = vadd.f32 %v1155, 1e-05
  %v1157 = vrsqrt.pop %v1156
  %1158 = vrot.lane.b32.xlu0 %v1138, 112
  %v1159 = vpop.permute.xlu0 %1158
  %v1161 = vsel %vm1140, %v1159, 0.0
  %1162 = vadd.xlane.f32.xlu0 %v1161
  %v1163 = vpop.xlane.xlu0 %1162
  %v1164 = vmul.f32 %v1163, %v1144
  %1165 = vrot.lane.b32.xlu0 %v1148, 112
  %v1166 = vpop.permute.xlu0 %1165
  %v1168 = vsel %vm1140, %v1166, 0.0
  %1169 = vadd.xlane.f32.xlu0 %v1168
  %v1170 = vpop.xlane.xlu0 %1169
  %v1171 = vmul.f32 %v1170, %v1144
  %v1172 = vmul.f32 %v1164, %v1164
  %v1173 = vsub.f32 %v1171, %v1172
  %v1174 = vadd.f32 %v1173, 1e-05
  %v1175 = vrsqrt.pop %v1174
  %1176 = vrot.lane.b32.xlu0 %v1138, 96
  %v1177 = vpop.permute.xlu0 %1176
  %v1179 = vsel %vm1140, %v1177, 0.0
  %1180 = vadd.xlane.f32.xlu0 %v1179
  %v1181 = vpop.xlane.xlu0 %1180
  %v1182 = vmul.f32 %v1181, %v1144
  %1183 = vrot.lane.b32.xlu0 %v1148, 96
  %v1184 = vpop.permute.xlu0 %1183
  %v1186 = vsel %vm1140, %v1184, 0.0
  %1187 = vadd.xlane.f32.xlu0 %v1186
  %v1188 = vpop.xlane.xlu0 %1187
  %v1189 = vmul.f32 %v1188, %v1144
  %v1190 = vmul.f32 %v1182, %v1182
  %v1191 = vsub.f32 %v1189, %v1190
  %v1192 = vadd.f32 %v1191, 1e-05
  %v1193 = vrsqrt.pop %v1192
  %1194 = vrot.lane.b32.xlu0 %v1138, 80
  %v1195 = vpop.permute.xlu0 %1194
  %v1197 = vsel %vm1140, %v1195, 0.0
  %1198 = vadd.xlane.f32.xlu0 %v1197
  %v1199 = vpop.xlane.xlu0 %1198
  %v1200 = vmul.f32 %v1199, %v1144
  %1201 = vrot.lane.b32.xlu0 %v1148, 80
  %v1202 = vpop.permute.xlu0 %1201
  %v1204 = vsel %vm1140, %v1202, 0.0
  %1205 = vadd.xlane.f32.xlu0 %v1204
  %v1206 = vpop.xlane.xlu0 %1205
  %v1207 = vmul.f32 %v1206, %v1144
  %v1208 = vmul.f32 %v1200, %v1200
  %v1209 = vsub.f32 %v1207, %v1208
  %v1210 = vadd.f32 %v1209, 1e-05
  %v1211 = vrsqrt.pop %v1210
  %vm1212 = vcmask 130048
  %v1213 = vsel %vm1212, %v1145, %v1164
  %vm1214 = vcmask 261120
  %v1215 = vsel %vm1214, %v1213, %v1182
  %vm1216 = vcmask 392192
  %v1217 = vsel %vm1216, %v1215, %v1200
  %v1220 = vunpack.c.l.s4 1966171168
  %v1221 = vunpack.c.0.s8 %v1220
  %v1222 = vlaneseq
  %v1223 = vshrl.u32 %v1222, 7
  %v1224 = vsub.s32 %v1221, %v1223
  %v1225 = vrot.slane %v1217, %v1224
  %v1226 = vcombine.high %v1225, %v1225
  %v1228 = vunpack.c.l.s4 1966171168
  %v1229 = vunpack.c.0.s8 %v1228
  %v1230 = vlaneseq
  %v1231 = vshrl.u32 %v1230, 7
  %v1232 = vsub.s32 %v1229, %v1231
  %v1233 = vrot.slane %v1225, %v1232
  %v1235 = vunpack.c.l.s4 1966171168
  %v1236 = vunpack.c.0.s8 %v1235
  %v1237 = vlaneseq
  %v1238 = vshrl.u32 %v1237, 7
  %v1239 = vsub.s32 %v1236, %v1238
  %v1240 = vrot.slane %v1226, %v1239
  %v1241 = vsel %vm1212, %v1157, %v1175
  %v1242 = vsel %vm1214, %v1241, %v1193
  %v1243 = vsel %vm1216, %v1242, %v1211
  %v1246 = vunpack.c.l.s4 1966171168
  %v1247 = vunpack.c.0.s8 %v1246
  %v1248 = vlaneseq
  %v1249 = vshrl.u32 %v1248, 7
  %v1250 = vsub.s32 %v1247, %v1249
  %v1251 = vrot.slane %v1243, %v1250
  %v1252 = vcombine.high %v1251, %v1251
  %v1254 = vunpack.c.l.s4 1966171168
  %v1255 = vunpack.c.0.s8 %v1254
  %v1256 = vlaneseq
  %v1257 = vshrl.u32 %v1256, 7
  %v1258 = vsub.s32 %v1255, %v1257
  %v1259 = vrot.slane %v1251, %v1258
  %v1261 = vunpack.c.l.s4 1966171168
  %v1262 = vunpack.c.0.s8 %v1261
  %v1263 = vlaneseq
  %v1264 = vshrl.u32 %v1263, 7
  %v1265 = vsub.s32 %v1262, %v1264
  %v1266 = vrot.slane %v1252, %v1265
  %v1267 = vlaneseq
  %v1268 = vshrl.u32 %v1267, 7
  %v1269 = vsub.s32 0, %v1268
  %v1270 = vrot.slane %v1233, %v1269
  %v1271 = vlaneseq
  %v1272 = vshrl.u32 %v1271, 7
  %v1273 = vsub.s32 0, %v1272
  %v1274 = vrot.slane %v1240, %v1273
  %v1277 = vsub.f32 %v792, %v1270
  %v1278 = vsub.f32 %v795, %v1270
  %v1279 = vsub.f32 %v800, %v1270
  %v1280 = vsub.f32 %v803, %v1270
  %v1281 = vsub.f32 %v808, %v1270
  %v1282 = vsub.f32 %v811, %v1270
  %v1283 = vsub.f32 %v816, %v1270
  %v1284 = vsub.f32 %v819, %v1270
  %v1285 = vsub.f32 %v824, %v1270
  %v1286 = vsub.f32 %v827, %v1270
  %v1287 = vsub.f32 %v832, %v1270
  %v1288 = vsub.f32 %v835, %v1270
  %v1289 = vsub.f32 %v840, %v1270
  %v1290 = vsub.f32 %v843, %v1270
  %v1291 = vsub.f32 %v848, %v1270
  %v1292 = vsub.f32 %v851, %v1270
  %v1293 = vsub.f32 %v856, %v1270
  %v1294 = vsub.f32 %v859, %v1270
  %v1295 = vsub.f32 %v864, %v1274
  %v1296 = vsub.f32 %v867, %v1274
  %v1297 = vsub.f32 %v872, %v1274
  %v1298 = vsub.f32 %v875, %v1274
  %v1299 = vsub.f32 %v880, %v1274
  %v1300 = vsub.f32 %v883, %v1274
  %v1301 = vsub.f32 %v888, %v1274
  %v1302 = vsub.f32 %v891, %v1274
  %v1303 = vsub.f32 %v896, %v1274
  %v1304 = vsub.f32 %v899, %v1274
  %v1305 = vsub.f32 %v904, %v1274
  %v1306 = vsub.f32 %v907, %v1274
  %v1307 = vsub.f32 %v912, %v1274
  %v1308 = vsub.f32 %v915, %v1274
  %v1309 = vsub.f32 %v920, %v1274
  %v1310 = vsub.f32 %v923, %v1274
  %v1311 = vsub.f32 %v928, %v1274
  %v1312 = vsub.f32 %v931, %v1274
  %v1313 = vlaneseq
  %v1314 = vshrl.u32 %v1313, 7
  %v1315 = vsub.s32 0, %v1314
  %v1316 = vrot.slane %v1259, %v1315
  %v1317 = vlaneseq
  %v1318 = vshrl.u32 %v1317, 7
  %v1319 = vsub.s32 0, %v1318
  %v1320 = vrot.slane %v1266, %v1319
  %v1323 = vmul.f32 %v1277, %v1316
  %v1324 = vmul.f32 %v1278, %v1316
  %v1325 = vmul.f32 %v1279, %v1316
  %v1326 = vmul.f32 %v1280, %v1316
  %v1327 = vmul.f32 %v1281, %v1316
  %v1328 = vmul.f32 %v1282, %v1316
  %v1329 = vmul.f32 %v1283, %v1316
  %v1330 = vmul.f32 %v1284, %v1316
  %v1331 = vmul.f32 %v1285, %v1316
  %v1332 = vmul.f32 %v1286, %v1316
  %v1333 = vmul.f32 %v1287, %v1316
  %v1334 = vmul.f32 %v1288, %v1316
  %v1335 = vmul.f32 %v1289, %v1316
  %v1336 = vmul.f32 %v1290, %v1316
  %v1337 = vmul.f32 %v1291, %v1316
  %v1338 = vmul.f32 %v1292, %v1316
  %v1339 = vmul.f32 %v1293, %v1316
  %v1340 = vmul.f32 %v1294, %v1316
  %v1341 = vmul.f32 %v1295, %v1320
  %v1342 = vmul.f32 %v1296, %v1320
  %v1343 = vmul.f32 %v1297, %v1320
  %v1344 = vmul.f32 %v1298, %v1320
  %v1345 = vmul.f32 %v1299, %v1320
  %v1346 = vmul.f32 %v1300, %v1320
  %v1347 = vmul.f32 %v1301, %v1320
  %v1348 = vmul.f32 %v1302, %v1320
  %v1349 = vmul.f32 %v1303, %v1320
  %v1350 = vmul.f32 %v1304, %v1320
  %v1351 = vmul.f32 %v1305, %v1320
  %v1352 = vmul.f32 %v1306, %v1320
  %v1353 = vmul.f32 %v1307, %v1320
  %v1354 = vmul.f32 %v1308, %v1320
  %v1355 = vmul.f32 %v1309, %v1320
  %v1356 = vmul.f32 %v1310, %v1320
  %v1357 = vmul.f32 %v1311, %v1320
  %v1358 = vmul.f32 %v1312, %v1320
  %vm1359 = vcmp.ge.f32.partialorder %v1323, 0.0
  %vm1360 = vcmp.ge.f32.partialorder %v1324, 0.0
  %vm1361 = vcmp.ge.f32.partialorder %v1325, 0.0
  %vm1362 = vcmp.ge.f32.partialorder %v1326, 0.0
  %vm1363 = vcmp.ge.f32.partialorder %v1327, 0.0
  %vm1364 = vcmp.ge.f32.partialorder %v1328, 0.0
  %vm1365 = vcmp.ge.f32.partialorder %v1329, 0.0
  %vm1366 = vcmp.ge.f32.partialorder %v1330, 0.0
  %vm1367 = vcmp.ge.f32.partialorder %v1331, 0.0
  %vm1368 = vcmp.ge.f32.partialorder %v1332, 0.0
  %vm1369 = vcmp.ge.f32.partialorder %v1333, 0.0
  %vm1370 = vcmp.ge.f32.partialorder %v1334, 0.0
  %vm1371 = vcmp.ge.f32.partialorder %v1335, 0.0
  %vm1372 = vcmp.ge.f32.partialorder %v1336, 0.0
  %vm1373 = vcmp.ge.f32.partialorder %v1337, 0.0
  %vm1374 = vcmp.ge.f32.partialorder %v1338, 0.0
  %vm1375 = vcmp.ge.f32.partialorder %v1339, 0.0
  %vm1376 = vcmp.ge.f32.partialorder %v1340, 0.0
  %vm1377 = vcmp.ge.f32.partialorder %v1341, 0.0
  %vm1378 = vcmp.ge.f32.partialorder %v1342, 0.0
  %vm1379 = vcmp.ge.f32.partialorder %v1343, 0.0
  %vm1380 = vcmp.ge.f32.partialorder %v1344, 0.0
  %vm1381 = vcmp.ge.f32.partialorder %v1345, 0.0
  %vm1382 = vcmp.ge.f32.partialorder %v1346, 0.0
  %vm1383 = vcmp.ge.f32.partialorder %v1347, 0.0
  %vm1384 = vcmp.ge.f32.partialorder %v1348, 0.0
  %vm1385 = vcmp.ge.f32.partialorder %v1349, 0.0
  %vm1386 = vcmp.ge.f32.partialorder %v1350, 0.0
  %vm1387 = vcmp.ge.f32.partialorder %v1351, 0.0
  %vm1388 = vcmp.ge.f32.partialorder %v1352, 0.0
  %vm1389 = vcmp.ge.f32.partialorder %v1353, 0.0
  %vm1390 = vcmp.ge.f32.partialorder %v1354, 0.0
  %vm1391 = vcmp.ge.f32.partialorder %v1355, 0.0
  %vm1392 = vcmp.ge.f32.partialorder %v1356, 0.0
  %vm1393 = vcmp.ge.f32.partialorder %v1357, 0.0
  %vm1394 = vcmp.ge.f32.partialorder %v1358, 0.0
  %v1395 = vmul.f32 %v1323, 0.2
  %v1396 = vmul.f32 %v1324, 0.2
  %v1397 = vmul.f32 %v1325, 0.2
  %v1398 = vmul.f32 %v1326, 0.2
  %v1399 = vmul.f32 %v1327, 0.2
  %v1400 = vmul.f32 %v1328, 0.2
  %v1401 = vmul.f32 %v1329, 0.2
  %v1402 = vmul.f32 %v1330, 0.2
  %v1403 = vmul.f32 %v1331, 0.2
  %v1404 = vmul.f32 %v1332, 0.2
  %v1405 = vmul.f32 %v1333, 0.2
  %v1406 = vmul.f32 %v1334, 0.2
  %v1407 = vmul.f32 %v1335, 0.2
  %v1408 = vmul.f32 %v1336, 0.2
  %v1409 = vmul.f32 %v1337, 0.2
  %v1410 = vmul.f32 %v1338, 0.2
  %v1411 = vmul.f32 %v1339, 0.2
  %v1412 = vmul.f32 %v1340, 0.2
  %v1413 = vmul.f32 %v1341, 0.2
  %v1414 = vmul.f32 %v1342, 0.2
  %v1415 = vmul.f32 %v1343, 0.2
  %v1416 = vmul.f32 %v1344, 0.2
  %v1417 = vmul.f32 %v1345, 0.2
  %v1418 = vmul.f32 %v1346, 0.2
  %v1419 = vmul.f32 %v1347, 0.2
  %v1420 = vmul.f32 %v1348, 0.2
  %v1421 = vmul.f32 %v1349, 0.2
  %v1422 = vmul.f32 %v1350, 0.2
  %v1423 = vmul.f32 %v1351, 0.2
  %v1424 = vmul.f32 %v1352, 0.2
  %v1425 = vmul.f32 %v1353, 0.2
  %v1426 = vmul.f32 %v1354, 0.2
  %v1427 = vmul.f32 %v1355, 0.2
  %v1428 = vmul.f32 %v1356, 0.2
  %v1429 = vmul.f32 %v1357, 0.2
  %v1430 = vmul.f32 %v1358, 0.2
  %v1431 = vsel %vm1359, %v1323, %v1395
  %v1432 = vsel %vm1360, %v1324, %v1396
  %v1433 = vsel %vm1361, %v1325, %v1397
  %v1434 = vsel %vm1362, %v1326, %v1398
  %v1435 = vsel %vm1363, %v1327, %v1399
  %v1436 = vsel %vm1364, %v1328, %v1400
  %v1437 = vsel %vm1365, %v1329, %v1401
  %v1438 = vsel %vm1366, %v1330, %v1402
  %v1439 = vsel %vm1367, %v1331, %v1403
  %v1440 = vsel %vm1368, %v1332, %v1404
  %v1441 = vsel %vm1369, %v1333, %v1405
  %v1442 = vsel %vm1370, %v1334, %v1406
  %v1443 = vsel %vm1371, %v1335, %v1407
  %v1444 = vsel %vm1372, %v1336, %v1408
  %v1445 = vsel %vm1373, %v1337, %v1409
  %v1446 = vsel %vm1374, %v1338, %v1410
  %v1447 = vsel %vm1375, %v1339, %v1411
  %v1448 = vsel %vm1376, %v1340, %v1412
  %v1449 = vsel %vm1377, %v1341, %v1413
  %v1450 = vsel %vm1378, %v1342, %v1414
  %v1451 = vsel %vm1379, %v1343, %v1415
  %v1452 = vsel %vm1380, %v1344, %v1416
  %v1453 = vsel %vm1381, %v1345, %v1417
  %v1454 = vsel %vm1382, %v1346, %v1418
  %v1455 = vsel %vm1383, %v1347, %v1419
  %v1456 = vsel %vm1384, %v1348, %v1420
  %v1457 = vsel %vm1385, %v1349, %v1421
  %v1458 = vsel %vm1386, %v1350, %v1422
  %v1459 = vsel %vm1387, %v1351, %v1423
  %v1460 = vsel %vm1388, %v1352, %v1424
  %v1461 = vsel %vm1389, %v1353, %v1425
  %v1462 = vsel %vm1390, %v1354, %v1426
  %v1463 = vsel %vm1391, %v1355, %v1427
  %v1464 = vsel %vm1392, %v1356, %v1428
  %v1465 = vsel %vm1393, %v1357, %v1429
  %v1466 = vsel %vm1394, %v1358, %v1430
  %v1503 = vcombine.high %v1431, %v1431
  %v1505 = vunpack.c.l.s4 1983009808
  %v1506 = vunpack.c.0.s8 %v1505
  %v1507 = vlaneseq
  %v1508 = vshrl.u32 %v1507, 7
  %v1509 = vsub.s32 %v1506, %v1508
  %v1510 = vrot.slane %v1431, %v1509
  %v1512 = vunpack.c.l.s4 1983009808
  %v1513 = vunpack.c.0.s8 %v1512
  %v1514 = vlaneseq
  %v1515 = vshrl.u32 %v1514, 7
  %v1516 = vsub.s32 %v1513, %v1515
  %v1517 = vrot.slane %v1503, %v1516
  %v1518 = vcombine.high %v1510, %v1510
  %v1519 = vcombine.high %v1517, %v1517
  %v1520 = vcombine.high %v1432, %v1432
  %v1522 = vunpack.c.l.s4 1983009808
  %v1523 = vunpack.c.0.s8 %v1522
  %v1524 = vlaneseq
  %v1525 = vshrl.u32 %v1524, 7
  %v1526 = vsub.s32 %v1523, %v1525
  %v1527 = vrot.slane %v1432, %v1526
  %v1529 = vunpack.c.l.s4 1983009808
  %v1530 = vunpack.c.0.s8 %v1529
  %v1531 = vlaneseq
  %v1532 = vshrl.u32 %v1531, 7
  %v1533 = vsub.s32 %v1530, %v1532
  %v1534 = vrot.slane %v1520, %v1533
  %v1535 = vcombine.high %v1527, %v1527
  %v1536 = vcombine.high %v1534, %v1534
  %v1537 = vcombine.high %v1433, %v1433
  %v1539 = vunpack.c.l.s4 1983009808
  %v1540 = vunpack.c.0.s8 %v1539
  %v1541 = vlaneseq
  %v1542 = vshrl.u32 %v1541, 7
  %v1543 = vsub.s32 %v1540, %v1542
  %v1544 = vrot.slane %v1433, %v1543
  %v1546 = vunpack.c.l.s4 1983009808
  %v1547 = vunpack.c.0.s8 %v1546
  %v1548 = vlaneseq
  %v1549 = vshrl.u32 %v1548, 7
  %v1550 = vsub.s32 %v1547, %v1549
  %v1551 = vrot.slane %v1537, %v1550
  %v1552 = vcombine.high %v1544, %v1544
  %v1553 = vcombine.high %v1551, %v1551
  %v1554 = vcombine.high %v1434, %v1434
  %v1556 = vunpack.c.l.s4 1983009808
  %v1557 = vunpack.c.0.s8 %v1556
  %v1558 = vlaneseq
  %v1559 = vshrl.u32 %v1558, 7
  %v1560 = vsub.s32 %v1557, %v1559
  %v1561 = vrot.slane %v1434, %v1560
  %v1563 = vunpack.c.l.s4 1983009808
  %v1564 = vunpack.c.0.s8 %v1563
  %v1565 = vlaneseq
  %v1566 = vshrl.u32 %v1565, 7
  %v1567 = vsub.s32 %v1564, %v1566
  %v1568 = vrot.slane %v1554, %v1567
  %v1569 = vcombine.high %v1561, %v1561
  %v1570 = vcombine.high %v1568, %v1568
  %v1571 = vcombine.high %v1435, %v1435
  %v1573 = vunpack.c.l.s4 1983009808
  %v1574 = vunpack.c.0.s8 %v1573
  %v1575 = vlaneseq
  %v1576 = vshrl.u32 %v1575, 7
  %v1577 = vsub.s32 %v1574, %v1576
  %v1578 = vrot.slane %v1435, %v1577
  %v1580 = vunpack.c.l.s4 1983009808
  %v1581 = vunpack.c.0.s8 %v1580
  %v1582 = vlaneseq
  %v1583 = vshrl.u32 %v1582, 7
  %v1584 = vsub.s32 %v1581, %v1583
  %v1585 = vrot.slane %v1571, %v1584
  %v1586 = vcombine.high %v1578, %v1578
  %v1587 = vcombine.high %v1585, %v1585
  %v1588 = vcombine.high %v1436, %v1436
  %v1590 = vunpack.c.l.s4 1983009808
  %v1591 = vunpack.c.0.s8 %v1590
  %v1592 = vlaneseq
  %v1593 = vshrl.u32 %v1592, 7
  %v1594 = vsub.s32 %v1591, %v1593
  %v1595 = vrot.slane %v1436, %v1594
  %v1597 = vunpack.c.l.s4 1983009808
  %v1598 = vunpack.c.0.s8 %v1597
  %v1599 = vlaneseq
  %v1600 = vshrl.u32 %v1599, 7
  %v1601 = vsub.s32 %v1598, %v1600
  %v1602 = vrot.slane %v1588, %v1601
  %v1603 = vcombine.high %v1595, %v1595
  %v1604 = vcombine.high %v1602, %v1602
  %v1605 = vcombine.high %v1437, %v1437
  %v1607 = vunpack.c.l.s4 1983009808
  %v1608 = vunpack.c.0.s8 %v1607
  %v1609 = vlaneseq
  %v1610 = vshrl.u32 %v1609, 7
  %v1611 = vsub.s32 %v1608, %v1610
  %v1612 = vrot.slane %v1437, %v1611
  %v1614 = vunpack.c.l.s4 1983009808
  %v1615 = vunpack.c.0.s8 %v1614
  %v1616 = vlaneseq
  %v1617 = vshrl.u32 %v1616, 7
  %v1618 = vsub.s32 %v1615, %v1617
  %v1619 = vrot.slane %v1605, %v1618
  %v1620 = vcombine.high %v1612, %v1612
  %v1621 = vcombine.high %v1619, %v1619
  %v1622 = vcombine.high %v1438, %v1438
  %v1624 = vunpack.c.l.s4 1983009808
  %v1625 = vunpack.c.0.s8 %v1624
  %v1626 = vlaneseq
  %v1627 = vshrl.u32 %v1626, 7
  %v1628 = vsub.s32 %v1625, %v1627
  %v1629 = vrot.slane %v1438, %v1628
  %v1631 = vunpack.c.l.s4 1983009808
  %v1632 = vunpack.c.0.s8 %v1631
  %v1633 = vlaneseq
  %v1634 = vshrl.u32 %v1633, 7
  %v1635 = vsub.s32 %v1632, %v1634
  %v1636 = vrot.slane %v1622, %v1635
  %v1637 = vcombine.high %v1629, %v1629
  %v1638 = vcombine.high %v1636, %v1636
  %v1639 = vcombine.high %v1439, %v1439
  %v1641 = vunpack.c.l.s4 1983009808
  %v1642 = vunpack.c.0.s8 %v1641
  %v1643 = vlaneseq
  %v1644 = vshrl.u32 %v1643, 7
  %v1645 = vsub.s32 %v1642, %v1644
  %v1646 = vrot.slane %v1439, %v1645
  %v1648 = vunpack.c.l.s4 1983009808
  %v1649 = vunpack.c.0.s8 %v1648
  %v1650 = vlaneseq
  %v1651 = vshrl.u32 %v1650, 7
  %v1652 = vsub.s32 %v1649, %v1651
  %v1653 = vrot.slane %v1639, %v1652
  %v1654 = vcombine.high %v1646, %v1646
  %v1655 = vcombine.high %v1653, %v1653
  %v1656 = vcombine.high %v1440, %v1440
  %v1658 = vunpack.c.l.s4 1983009808
  %v1659 = vunpack.c.0.s8 %v1658
  %v1660 = vlaneseq
  %v1661 = vshrl.u32 %v1660, 7
  %v1662 = vsub.s32 %v1659, %v1661
  %v1663 = vrot.slane %v1440, %v1662
  %v1665 = vunpack.c.l.s4 1983009808
  %v1666 = vunpack.c.0.s8 %v1665
  %v1667 = vlaneseq
  %v1668 = vshrl.u32 %v1667, 7
  %v1669 = vsub.s32 %v1666, %v1668
  %v1670 = vrot.slane %v1656, %v1669
  %v1671 = vcombine.high %v1663, %v1663
  %v1672 = vcombine.high %v1670, %v1670
  %v1673 = vcombine.high %v1441, %v1441
  %v1675 = vunpack.c.l.s4 1983009808
  %v1676 = vunpack.c.0.s8 %v1675
  %v1677 = vlaneseq
  %v1678 = vshrl.u32 %v1677, 7
  %v1679 = vsub.s32 %v1676, %v1678
  %v1680 = vrot.slane %v1441, %v1679
  %v1682 = vunpack.c.l.s4 1983009808
  %v1683 = vunpack.c.0.s8 %v1682
  %v1684 = vlaneseq
  %v1685 = vshrl.u32 %v1684, 7
  %v1686 = vsub.s32 %v1683, %v1685
  %v1687 = vrot.slane %v1673, %v1686
  %v1688 = vcombine.high %v1680, %v1680
  %v1689 = vcombine.high %v1687, %v1687
  %v1690 = vcombine.high %v1442, %v1442
  %v1692 = vunpack.c.l.s4 1983009808
  %v1693 = vunpack.c.0.s8 %v1692
  %v1694 = vlaneseq
  %v1695 = vshrl.u32 %v1694, 7
  %v1696 = vsub.s32 %v1693, %v1695
  %v1697 = vrot.slane %v1442, %v1696
  %v1699 = vunpack.c.l.s4 1983009808
  %v1700 = vunpack.c.0.s8 %v1699
  %v1701 = vlaneseq
  %v1702 = vshrl.u32 %v1701, 7
  %v1703 = vsub.s32 %v1700, %v1702
  %v1704 = vrot.slane %v1690, %v1703
  %v1705 = vcombine.high %v1697, %v1697
  %v1706 = vcombine.high %v1704, %v1704
  %v1707 = vcombine.high %v1443, %v1443
  %v1709 = vunpack.c.l.s4 1983009808
  %v1710 = vunpack.c.0.s8 %v1709
  %v1711 = vlaneseq
  %v1712 = vshrl.u32 %v1711, 7
  %v1713 = vsub.s32 %v1710, %v1712
  %v1714 = vrot.slane %v1443, %v1713
  %v1716 = vunpack.c.l.s4 1983009808
  %v1717 = vunpack.c.0.s8 %v1716
  %v1718 = vlaneseq
  %v1719 = vshrl.u32 %v1718, 7
  %v1720 = vsub.s32 %v1717, %v1719
  %v1721 = vrot.slane %v1707, %v1720
  %v1722 = vcombine.high %v1714, %v1714
  %v1723 = vcombine.high %v1444, %v1444
  %v1725 = vunpack.c.l.s4 1983009808
  %v1726 = vunpack.c.0.s8 %v1725
  %v1727 = vlaneseq
  %v1728 = vshrl.u32 %v1727, 7
  %v1729 = vsub.s32 %v1726, %v1728
  %v1730 = vrot.slane %v1723, %v1729
  %v1731 = vcombine.high %v1730, %v1730
  %v1732 = vcombine.high %v1445, %v1445
  %v1734 = vunpack.c.l.s4 1983009808
  %v1735 = vunpack.c.0.s8 %v1734
  %v1736 = vlaneseq
  %v1737 = vshrl.u32 %v1736, 7
  %v1738 = vsub.s32 %v1735, %v1737
  %v1739 = vrot.slane %v1445, %v1738
  %v1741 = vunpack.c.l.s4 1983009808
  %v1742 = vunpack.c.0.s8 %v1741
  %v1743 = vlaneseq
  %v1744 = vshrl.u32 %v1743, 7
  %v1745 = vsub.s32 %v1742, %v1744
  %v1746 = vrot.slane %v1732, %v1745
  %v1747 = vcombine.high %v1739, %v1739
  %v1748 = vcombine.high %v1746, %v1746
  %v1749 = vcombine.high %v1446, %v1446
  %v1751 = vunpack.c.l.s4 1983009808
  %v1752 = vunpack.c.0.s8 %v1751
  %v1753 = vlaneseq
  %v1754 = vshrl.u32 %v1753, 7
  %v1755 = vsub.s32 %v1752, %v1754
  %v1756 = vrot.slane %v1446, %v1755
  %v1758 = vunpack.c.l.s4 1983009808
  %v1759 = vunpack.c.0.s8 %v1758
  %v1760 = vlaneseq
  %v1761 = vshrl.u32 %v1760, 7
  %v1762 = vsub.s32 %v1759, %v1761
  %v1763 = vrot.slane %v1749, %v1762
  %v1764 = vcombine.high %v1756, %v1756
  %v1765 = vcombine.high %v1763, %v1763
  %v1766 = vcombine.high %v1447, %v1447
  %v1768 = vunpack.c.l.s4 1983009808
  %v1769 = vunpack.c.0.s8 %v1768
  %v1770 = vlaneseq
  %v1771 = vshrl.u32 %v1770, 7
  %v1772 = vsub.s32 %v1769, %v1771
  %v1773 = vrot.slane %v1447, %v1772
  %v1775 = vunpack.c.l.s4 1983009808
  %v1776 = vunpack.c.0.s8 %v1775
  %v1777 = vlaneseq
  %v1778 = vshrl.u32 %v1777, 7
  %v1779 = vsub.s32 %v1776, %v1778
  %v1780 = vrot.slane %v1766, %v1779
  %v1781 = vcombine.high %v1773, %v1773
  %v1782 = vcombine.high %v1780, %v1780
  %v1784 = vunpack.c.l.s4 1983009808
  %v1785 = vunpack.c.0.s8 %v1784
  %v1786 = vlaneseq
  %v1787 = vshrl.u32 %v1786, 7
  %v1788 = vsub.s32 %v1785, %v1787
  %v1789 = vrot.slane %v1448, %v1788
  %v1790 = vcombine.high %v1449, %v1449
  %v1792 = vunpack.c.l.s4 1983009808
  %v1793 = vunpack.c.0.s8 %v1792
  %v1794 = vlaneseq
  %v1795 = vshrl.u32 %v1794, 7
  %v1796 = vsub.s32 %v1793, %v1795
  %v1797 = vrot.slane %v1449, %v1796
  %v1799 = vunpack.c.l.s4 1983009808
  %v1800 = vunpack.c.0.s8 %v1799
  %v1801 = vlaneseq
  %v1802 = vshrl.u32 %v1801, 7
  %v1803 = vsub.s32 %v1800, %v1802
  %v1804 = vrot.slane %v1790, %v1803
  %v1805 = vcombine.high %v1797, %v1797
  %v1806 = vcombine.high %v1804, %v1804
  %v1807 = vcombine.high %v1450, %v1450
  %v1809 = vunpack.c.l.s4 1983009808
  %v1810 = vunpack.c.0.s8 %v1809
  %v1811 = vlaneseq
  %v1812 = vshrl.u32 %v1811, 7
  %v1813 = vsub.s32 %v1810, %v1812
  %v1814 = vrot.slane %v1450, %v1813
  %v1816 = vunpack.c.l.s4 1983009808
  %v1817 = vunpack.c.0.s8 %v1816
  %v1818 = vlaneseq
  %v1819 = vshrl.u32 %v1818, 7
  %v1820 = vsub.s32 %v1817, %v1819
  %v1821 = vrot.slane %v1807, %v1820
  %v1822 = vcombine.high %v1814, %v1814
  %v1823 = vcombine.high %v1821, %v1821
  %v1824 = vcombine.high %v1451, %v1451
  %v1826 = vunpack.c.l.s4 1983009808
  %v1827 = vunpack.c.0.s8 %v1826
  %v1828 = vlaneseq
  %v1829 = vshrl.u32 %v1828, 7
  %v1830 = vsub.s32 %v1827, %v1829
  %v1831 = vrot.slane %v1451, %v1830
  %v1833 = vunpack.c.l.s4 1983009808
  %v1834 = vunpack.c.0.s8 %v1833
  %v1835 = vlaneseq
  %v1836 = vshrl.u32 %v1835, 7
  %v1837 = vsub.s32 %v1834, %v1836
  %v1838 = vrot.slane %v1824, %v1837
  %v1839 = vcombine.high %v1831, %v1831
  %v1840 = vcombine.high %v1838, %v1838
  %v1841 = vcombine.high %v1452, %v1452
  %v1843 = vunpack.c.l.s4 1983009808
  %v1844 = vunpack.c.0.s8 %v1843
  %v1845 = vlaneseq
  %v1846 = vshrl.u32 %v1845, 7
  %v1847 = vsub.s32 %v1844, %v1846
  %v1848 = vrot.slane %v1452, %v1847
  %v1850 = vunpack.c.l.s4 1983009808
  %v1851 = vunpack.c.0.s8 %v1850
  %v1852 = vlaneseq
  %v1853 = vshrl.u32 %v1852, 7
  %v1854 = vsub.s32 %v1851, %v1853
  %v1855 = vrot.slane %v1841, %v1854
  %v1856 = vcombine.high %v1848, %v1848
  %v1857 = vcombine.high %v1855, %v1855
  %v1858 = vcombine.high %v1453, %v1453
  %v1860 = vunpack.c.l.s4 1983009808
  %v1861 = vunpack.c.0.s8 %v1860
  %v1862 = vlaneseq
  %v1863 = vshrl.u32 %v1862, 7
  %v1864 = vsub.s32 %v1861, %v1863
  %v1865 = vrot.slane %v1453, %v1864
  %v1867 = vunpack.c.l.s4 1983009808
  %v1868 = vunpack.c.0.s8 %v1867
  %v1869 = vlaneseq
  %v1870 = vshrl.u32 %v1869, 7
  %v1871 = vsub.s32 %v1868, %v1870
  %v1872 = vrot.slane %v1858, %v1871
  %v1873 = vcombine.high %v1865, %v1865
  %v1874 = vcombine.high %v1872, %v1872
  %v1875 = vcombine.high %v1454, %v1454
  %v1877 = vunpack.c.l.s4 1983009808
  %v1878 = vunpack.c.0.s8 %v1877
  %v1879 = vlaneseq
  %v1880 = vshrl.u32 %v1879, 7
  %v1881 = vsub.s32 %v1878, %v1880
  %v1882 = vrot.slane %v1454, %v1881
  %v1884 = vunpack.c.l.s4 1983009808
  %v1885 = vunpack.c.0.s8 %v1884
  %v1886 = vlaneseq
  %v1887 = vshrl.u32 %v1886, 7
  %v1888 = vsub.s32 %v1885, %v1887
  %v1889 = vrot.slane %v1875, %v1888
  %v1890 = vcombine.high %v1882, %v1882
  %v1891 = vcombine.high %v1889, %v1889
  %v1892 = vcombine.high %v1455, %v1455
  %v1894 = vunpack.c.l.s4 1983009808
  %v1895 = vunpack.c.0.s8 %v1894
  %v1896 = vlaneseq
  %v1897 = vshrl.u32 %v1896, 7
  %v1898 = vsub.s32 %v1895, %v1897
  %v1899 = vrot.slane %v1455, %v1898
  %v1901 = vunpack.c.l.s4 1983009808
  %v1902 = vunpack.c.0.s8 %v1901
  %v1903 = vlaneseq
  %v1904 = vshrl.u32 %v1903, 7
  %v1905 = vsub.s32 %v1902, %v1904
  %v1906 = vrot.slane %v1892, %v1905
  %v1907 = vcombine.high %v1899, %v1899
  %v1908 = vcombine.high %v1906, %v1906
  %v1909 = vcombine.high %v1456, %v1456
  %v1911 = vunpack.c.l.s4 1983009808
  %v1912 = vunpack.c.0.s8 %v1911
  %v1913 = vlaneseq
  %v1914 = vshrl.u32 %v1913, 7
  %v1915 = vsub.s32 %v1912, %v1914
  %v1916 = vrot.slane %v1456, %v1915
  %v1918 = vunpack.c.l.s4 1983009808
  %v1919 = vunpack.c.0.s8 %v1918
  %v1920 = vlaneseq
  %v1921 = vshrl.u32 %v1920, 7
  %v1922 = vsub.s32 %v1919, %v1921
  %v1923 = vrot.slane %v1909, %v1922
  %v1924 = vcombine.high %v1916, %v1916
  %v1925 = vcombine.high %v1923, %v1923
  %v1926 = vcombine.high %v1457, %v1457
  %v1928 = vunpack.c.l.s4 1983009808
  %v1929 = vunpack.c.0.s8 %v1928
  %v1930 = vlaneseq
  %v1931 = vshrl.u32 %v1930, 7
  %v1932 = vsub.s32 %v1929, %v1931
  %v1933 = vrot.slane %v1457, %v1932
  %v1935 = vunpack.c.l.s4 1983009808
  %v1936 = vunpack.c.0.s8 %v1935
  %v1937 = vlaneseq
  %v1938 = vshrl.u32 %v1937, 7
  %v1939 = vsub.s32 %v1936, %v1938
  %v1940 = vrot.slane %v1926, %v1939
  %v1941 = vcombine.high %v1933, %v1933
  %v1942 = vcombine.high %v1940, %v1940
  %v1943 = vcombine.high %v1458, %v1458
  %v1945 = vunpack.c.l.s4 1983009808
  %v1946 = vunpack.c.0.s8 %v1945
  %v1947 = vlaneseq
  %v1948 = vshrl.u32 %v1947, 7
  %v1949 = vsub.s32 %v1946, %v1948
  %v1950 = vrot.slane %v1458, %v1949
  %v1952 = vunpack.c.l.s4 1983009808
  %v1953 = vunpack.c.0.s8 %v1952
  %v1954 = vlaneseq
  %v1955 = vshrl.u32 %v1954, 7
  %v1956 = vsub.s32 %v1953, %v1955
  %v1957 = vrot.slane %v1943, %v1956
  %v1958 = vcombine.high %v1950, %v1950
  %v1959 = vcombine.high %v1957, %v1957
  %v1960 = vcombine.high %v1459, %v1459
  %v1962 = vunpack.c.l.s4 1983009808
  %v1963 = vunpack.c.0.s8 %v1962
  %v1964 = vlaneseq
  %v1965 = vshrl.u32 %v1964, 7
  %v1966 = vsub.s32 %v1963, %v1965
  %v1967 = vrot.slane %v1459, %v1966
  %v1969 = vunpack.c.l.s4 1983009808
  %v1970 = vunpack.c.0.s8 %v1969
  %v1971 = vlaneseq
  %v1972 = vshrl.u32 %v1971, 7
  %v1973 = vsub.s32 %v1970, %v1972
  %v1974 = vrot.slane %v1960, %v1973
  %v1975 = vcombine.high %v1967, %v1967
  %v1976 = vcombine.high %v1974, %v1974
  %v1977 = vcombine.high %v1460, %v1460
  %v1979 = vunpack.c.l.s4 1983009808
  %v1980 = vunpack.c.0.s8 %v1979
  %v1981 = vlaneseq
  %v1982 = vshrl.u32 %v1981, 7
  %v1983 = vsub.s32 %v1980, %v1982
  %v1984 = vrot.slane %v1460, %v1983
  %v1986 = vunpack.c.l.s4 1983009808
  %v1987 = vunpack.c.0.s8 %v1986
  %v1988 = vlaneseq
  %v1989 = vshrl.u32 %v1988, 7
  %v1990 = vsub.s32 %v1987, %v1989
  %v1991 = vrot.slane %v1977, %v1990
  %v1992 = vcombine.high %v1984, %v1984
  %v1993 = vcombine.high %v1991, %v1991
  %v1994 = vcombine.high %v1461, %v1461
  %v1996 = vunpack.c.l.s4 1983009808
  %v1997 = vunpack.c.0.s8 %v1996
  %v1998 = vlaneseq
  %v1999 = vshrl.u32 %v1998, 7
  %v2000 = vsub.s32 %v1997, %v1999
  %v2001 = vrot.slane %v1461, %v2000
  %v2003 = vunpack.c.l.s4 1983009808
  %v2004 = vunpack.c.0.s8 %v2003
  %v2005 = vlaneseq
  %v2006 = vshrl.u32 %v2005, 7
  %v2007 = vsub.s32 %v2004, %v2006
  %v2008 = vrot.slane %v1994, %v2007
  %v2009 = vcombine.high %v2001, %v2001
  %v2010 = vcombine.high %v1462, %v1462
  %v2012 = vunpack.c.l.s4 1983009808
  %v2013 = vunpack.c.0.s8 %v2012
  %v2014 = vlaneseq
  %v2015 = vshrl.u32 %v2014, 7
  %v2016 = vsub.s32 %v2013, %v2015
  %v2017 = vrot.slane %v2010, %v2016
  %v2018 = vcombine.high %v2017, %v2017
  %v2019 = vcombine.high %v1463, %v1463
  %v2021 = vunpack.c.l.s4 1983009808
  %v2022 = vunpack.c.0.s8 %v2021
  %v2023 = vlaneseq
  %v2024 = vshrl.u32 %v2023, 7
  %v2025 = vsub.s32 %v2022, %v2024
  %v2026 = vrot.slane %v1463, %v2025
  %v2028 = vunpack.c.l.s4 1983009808
  %v2029 = vunpack.c.0.s8 %v2028
  %v2030 = vlaneseq
  %v2031 = vshrl.u32 %v2030, 7
  %v2032 = vsub.s32 %v2029, %v2031
  %v2033 = vrot.slane %v2019, %v2032
  %v2034 = vcombine.high %v2026, %v2026
  %v2035 = vcombine.high %v2033, %v2033
  %v2036 = vcombine.high %v1464, %v1464
  %v2038 = vunpack.c.l.s4 1983009808
  %v2039 = vunpack.c.0.s8 %v2038
  %v2040 = vlaneseq
  %v2041 = vshrl.u32 %v2040, 7
  %v2042 = vsub.s32 %v2039, %v2041
  %v2043 = vrot.slane %v1464, %v2042
  %v2045 = vunpack.c.l.s4 1983009808
  %v2046 = vunpack.c.0.s8 %v2045
  %v2047 = vlaneseq
  %v2048 = vshrl.u32 %v2047, 7
  %v2049 = vsub.s32 %v2046, %v2048
  %v2050 = vrot.slane %v2036, %v2049
  %v2051 = vcombine.high %v2043, %v2043
  %v2052 = vcombine.high %v2050, %v2050
  %v2053 = vcombine.high %v1465, %v1465
  %v2055 = vunpack.c.l.s4 1983009808
  %v2056 = vunpack.c.0.s8 %v2055
  %v2057 = vlaneseq
  %v2058 = vshrl.u32 %v2057, 7
  %v2059 = vsub.s32 %v2056, %v2058
  %v2060 = vrot.slane %v1465, %v2059
  %v2062 = vunpack.c.l.s4 1983009808
  %v2063 = vunpack.c.0.s8 %v2062
  %v2064 = vlaneseq
  %v2065 = vshrl.u32 %v2064, 7
  %v2066 = vsub.s32 %v2063, %v2065
  %v2067 = vrot.slane %v2053, %v2066
  %v2068 = vcombine.high %v2060, %v2060
  %v2069 = vcombine.high %v2067, %v2067
  %v2071 = vunpack.c.l.s4 1983009808
  %v2072 = vunpack.c.0.s8 %v2071
  %v2073 = vlaneseq
  %v2074 = vshrl.u32 %v2073, 7
  %v2075 = vsub.s32 %v2072, %v2074
  %v2076 = vrot.slane %v1466, %v2075
  %v2077 = vcombine.low %v1510, %v1518
  %v2079 = vunpack.c.l.s4 1983009808
  %v2080 = vunpack.c.0.s8 %v2079
  %v2081 = vlaneseq
  %v2082 = vshrl.u32 %v2081, 7
  %v2083 = vsub.s32 %v2080, %v2082
  %v2084 = vrot.slane %v2077, %v2083
  %v2086 = vunpack.c.l.s4 1983009808
  %v2087 = vunpack.c.0.s8 %v2086
  %v2088 = vlaneseq
  %v2089 = vshrl.u32 %v2088, 7
  %v2090 = vsub.s32 %v2087, %v2089
  %v2091 = vrot.slane %v1517, %v2090
  %v2092 = vcombine.low %v2084, %v2091
  %v2093 = vcombine.low %v1519, %v1527
  %v2095 = vunpack.c.l.s4 1983009808
  %v2096 = vunpack.c.0.s8 %v2095
  %v2097 = vlaneseq
  %v2098 = vshrl.u32 %v2097, 7
  %v2099 = vsub.s32 %v2096, %v2098
  %v2100 = vrot.slane %v2093, %v2099
  %v2102 = vunpack.c.l.s4 1983009808
  %v2103 = vunpack.c.0.s8 %v2102
  %v2104 = vlaneseq
  %v2105 = vshrl.u32 %v2104, 7
  %v2106 = vsub.s32 %v2103, %v2105
  %v2107 = vrot.slane %v1535, %v2106
  %v2108 = vcombine.low %v2100, %v2107
  %v2109 = vcombine.low %v1534, %v1536
  %v2111 = vunpack.c.l.s4 1983009808
  %v2112 = vunpack.c.0.s8 %v2111
  %v2113 = vlaneseq
  %v2114 = vshrl.u32 %v2113, 7
  %v2115 = vsub.s32 %v2112, %v2114
  %v2116 = vrot.slane %v2109, %v2115
  %v2118 = vunpack.c.l.s4 1983009808
  %v2119 = vunpack.c.0.s8 %v2118
  %v2120 = vlaneseq
  %v2121 = vshrl.u32 %v2120, 7
  %v2122 = vsub.s32 %v2119, %v2121
  %v2123 = vrot.slane %v1544, %v2122
  %v2124 = vcombine.low %v2116, %v2123
  %v2125 = vcombine.low %v1552, %v1551
  %v2127 = vunpack.c.l.s4 1983009808
  %v2128 = vunpack.c.0.s8 %v2127
  %v2129 = vlaneseq
  %v2130 = vshrl.u32 %v2129, 7
  %v2131 = vsub.s32 %v2128, %v2130
  %v2132 = vrot.slane %v2125, %v2131
  %v2134 = vunpack.c.l.s4 1983009808
  %v2135 = vunpack.c.0.s8 %v2134
  %v2136 = vlaneseq
  %v2137 = vshrl.u32 %v2136, 7
  %v2138 = vsub.s32 %v2135, %v2137
  %v2139 = vrot.slane %v1553, %v2138
  %v2140 = vcombine.low %v2132, %v2139
  %v2141 = vcombine.low %v1561, %v1569
  %v2143 = vunpack.c.l.s4 1983009808
  %v2144 = vunpack.c.0.s8 %v2143
  %v2145 = vlaneseq
  %v2146 = vshrl.u32 %v2145, 7
  %v2147 = vsub.s32 %v2144, %v2146
  %v2148 = vrot.slane %v2141, %v2147
  %v2150 = vunpack.c.l.s4 1983009808
  %v2151 = vunpack.c.0.s8 %v2150
  %v2152 = vlaneseq
  %v2153 = vshrl.u32 %v2152, 7
  %v2154 = vsub.s32 %v2151, %v2153
  %v2155 = vrot.slane %v1568, %v2154
  %v2156 = vcombine.low %v2148, %v2155
  %v2157 = vcombine.low %v1570, %v1578
  %v2159 = vunpack.c.l.s4 1983009808
  %v2160 = vunpack.c.0.s8 %v2159
  %v2161 = vlaneseq
  %v2162 = vshrl.u32 %v2161, 7
  %v2163 = vsub.s32 %v2160, %v2162
  %v2164 = vrot.slane %v2157, %v2163
  %v2166 = vunpack.c.l.s4 1983009808
  %v2167 = vunpack.c.0.s8 %v2166
  %v2168 = vlaneseq
  %v2169 = vshrl.u32 %v2168, 7
  %v2170 = vsub.s32 %v2167, %v2169
  %v2171 = vrot.slane %v1586, %v2170
  %v2172 = vcombine.low %v2164, %v2171
  %v2173 = vcombine.low %v1585, %v1587
  %v2175 = vunpack.c.l.s4 1983009808
  %v2176 = vunpack.c.0.s8 %v2175
  %v2177 = vlaneseq
  %v2178 = vshrl.u32 %v2177, 7
  %v2179 = vsub.s32 %v2176, %v2178
  %v2180 = vrot.slane %v2173, %v2179
  %v2182 = vunpack.c.l.s4 1983009808
  %v2183 = vunpack.c.0.s8 %v2182
  %v2184 = vlaneseq
  %v2185 = vshrl.u32 %v2184, 7
  %v2186 = vsub.s32 %v2183, %v2185
  %v2187 = vrot.slane %v1595, %v2186
  %v2188 = vcombine.low %v2180, %v2187
  %v2189 = vcombine.low %v1603, %v1602
  %v2191 = vunpack.c.l.s4 1983009808
  %v2192 = vunpack.c.0.s8 %v2191
  %v2193 = vlaneseq
  %v2194 = vshrl.u32 %v2193, 7
  %v2195 = vsub.s32 %v2192, %v2194
  %v2196 = vrot.slane %v2189, %v2195
  %v2198 = vunpack.c.l.s4 1983009808
  %v2199 = vunpack.c.0.s8 %v2198
  %v2200 = vlaneseq
  %v2201 = vshrl.u32 %v2200, 7
  %v2202 = vsub.s32 %v2199, %v2201
  %v2203 = vrot.slane %v1604, %v2202
  %v2204 = vcombine.low %v2196, %v2203
  %v2205 = vcombine.low %v1612, %v1620
  %v2207 = vunpack.c.l.s4 1983009808
  %v2208 = vunpack.c.0.s8 %v2207
  %v2209 = vlaneseq
  %v2210 = vshrl.u32 %v2209, 7
  %v2211 = vsub.s32 %v2208, %v2210
  %v2212 = vrot.slane %v2205, %v2211
  %v2214 = vunpack.c.l.s4 1983009808
  %v2215 = vunpack.c.0.s8 %v2214
  %v2216 = vlaneseq
  %v2217 = vshrl.u32 %v2216, 7
  %v2218 = vsub.s32 %v2215, %v2217
  %v2219 = vrot.slane %v1619, %v2218
  %v2220 = vcombine.low %v2212, %v2219
  %v2221 = vcombine.low %v1621, %v1629
  %v2223 = vunpack.c.l.s4 1983009808
  %v2224 = vunpack.c.0.s8 %v2223
  %v2225 = vlaneseq
  %v2226 = vshrl.u32 %v2225, 7
  %v2227 = vsub.s32 %v2224, %v2226
  %v2228 = vrot.slane %v2221, %v2227
  %v2230 = vunpack.c.l.s4 1983009808
  %v2231 = vunpack.c.0.s8 %v2230
  %v2232 = vlaneseq
  %v2233 = vshrl.u32 %v2232, 7
  %v2234 = vsub.s32 %v2231, %v2233
  %v2235 = vrot.slane %v1637, %v2234
  %v2236 = vcombine.low %v2228, %v2235
  %v2237 = vcombine.low %v1636, %v1638
  %v2239 = vunpack.c.l.s4 1983009808
  %v2240 = vunpack.c.0.s8 %v2239
  %v2241 = vlaneseq
  %v2242 = vshrl.u32 %v2241, 7
  %v2243 = vsub.s32 %v2240, %v2242
  %v2244 = vrot.slane %v2237, %v2243
  %v2246 = vunpack.c.l.s4 1983009808
  %v2247 = vunpack.c.0.s8 %v2246
  %v2248 = vlaneseq
  %v2249 = vshrl.u32 %v2248, 7
  %v2250 = vsub.s32 %v2247, %v2249
  %v2251 = vrot.slane %v1646, %v2250
  %v2252 = vcombine.low %v2244, %v2251
  %v2253 = vcombine.low %v1654, %v1653
  %v2255 = vunpack.c.l.s4 1983009808
  %v2256 = vunpack.c.0.s8 %v2255
  %v2257 = vlaneseq
  %v2258 = vshrl.u32 %v2257, 7
  %v2259 = vsub.s32 %v2256, %v2258
  %v2260 = vrot.slane %v2253, %v2259
  %v2262 = vunpack.c.l.s4 1983009808
  %v2263 = vunpack.c.0.s8 %v2262
  %v2264 = vlaneseq
  %v2265 = vshrl.u32 %v2264, 7
  %v2266 = vsub.s32 %v2263, %v2265
  %v2267 = vrot.slane %v1655, %v2266
  %v2268 = vcombine.low %v2260, %v2267
  %v2269 = vcombine.low %v1663, %v1671
  %v2271 = vunpack.c.l.s4 1983009808
  %v2272 = vunpack.c.0.s8 %v2271
  %v2273 = vlaneseq
  %v2274 = vshrl.u32 %v2273, 7
  %v2275 = vsub.s32 %v2272, %v2274
  %v2276 = vrot.slane %v2269, %v2275
  %v2278 = vunpack.c.l.s4 1983009808
  %v2279 = vunpack.c.0.s8 %v2278
  %v2280 = vlaneseq
  %v2281 = vshrl.u32 %v2280, 7
  %v2282 = vsub.s32 %v2279, %v2281
  %v2283 = vrot.slane %v1670, %v2282
  %v2284 = vcombine.low %v2276, %v2283
  %v2285 = vcombine.low %v1672, %v1680
  %v2287 = vunpack.c.l.s4 1983009808
  %v2288 = vunpack.c.0.s8 %v2287
  %v2289 = vlaneseq
  %v2290 = vshrl.u32 %v2289, 7
  %v2291 = vsub.s32 %v2288, %v2290
  %v2292 = vrot.slane %v2285, %v2291
  %v2294 = vunpack.c.l.s4 1983009808
  %v2295 = vunpack.c.0.s8 %v2294
  %v2296 = vlaneseq
  %v2297 = vshrl.u32 %v2296, 7
  %v2298 = vsub.s32 %v2295, %v2297
  %v2299 = vrot.slane %v1688, %v2298
  %v2300 = vcombine.low %v2292, %v2299
  %v2301 = vcombine.low %v1687, %v1689
  %v2303 = vunpack.c.l.s4 1983009808
  %v2304 = vunpack.c.0.s8 %v2303
  %v2305 = vlaneseq
  %v2306 = vshrl.u32 %v2305, 7
  %v2307 = vsub.s32 %v2304, %v2306
  %v2308 = vrot.slane %v2301, %v2307
  %v2310 = vunpack.c.l.s4 1983009808
  %v2311 = vunpack.c.0.s8 %v2310
  %v2312 = vlaneseq
  %v2313 = vshrl.u32 %v2312, 7
  %v2314 = vsub.s32 %v2311, %v2313
  %v2315 = vrot.slane %v1697, %v2314
  %v2316 = vcombine.low %v2308, %v2315
  %v2317 = vcombine.low %v1705, %v1704
  %v2319 = vunpack.c.l.s4 1983009808
  %v2320 = vunpack.c.0.s8 %v2319
  %v2321 = vlaneseq
  %v2322 = vshrl.u32 %v2321, 7
  %v2323 = vsub.s32 %v2320, %v2322
  %v2324 = vrot.slane %v2317, %v2323
  %v2326 = vunpack.c.l.s4 1983009808
  %v2327 = vunpack.c.0.s8 %v2326
  %v2328 = vlaneseq
  %v2329 = vshrl.u32 %v2328, 7
  %v2330 = vsub.s32 %v2327, %v2329
  %v2331 = vrot.slane %v1706, %v2330
  %v2332 = vcombine.low %v2324, %v2331
  %v2333 = vcombine.low %v1714, %v1722
  %v2335 = vunpack.c.l.s4 1983009808
  %v2336 = vunpack.c.0.s8 %v2335
  %v2337 = vlaneseq
  %v2338 = vshrl.u32 %v2337, 7
  %v2339 = vsub.s32 %v2336, %v2338
  %v2340 = vrot.slane %v2333, %v2339
  %v2342 = vunpack.c.l.s4 1983009808
  %v2343 = vunpack.c.0.s8 %v2342
  %v2344 = vlaneseq
  %v2345 = vshrl.u32 %v2344, 7
  %v2346 = vsub.s32 %v2343, %v2345
  %v2347 = vrot.slane %v1721, %v2346
  %v2348 = vcombine.low %v2340, %v2347
  %v2349 = vcombine.low %v1730, %v1731
  %v2351 = vunpack.c.l.s4 1983009808
  %v2352 = vunpack.c.0.s8 %v2351
  %v2353 = vlaneseq
  %v2354 = vshrl.u32 %v2353, 7
  %v2355 = vsub.s32 %v2352, %v2354
  %v2356 = vrot.slane %v2349, %v2355
  %v2358 = vunpack.c.l.s4 1983009808
  %v2359 = vunpack.c.0.s8 %v2358
  %v2360 = vlaneseq
  %v2361 = vshrl.u32 %v2360, 7
  %v2362 = vsub.s32 %v2359, %v2361
  %v2363 = vrot.slane %v1739, %v2362
  %v2364 = vcombine.low %v2356, %v2363
  %v2365 = vcombine.low %v1747, %v1746
  %v2367 = vunpack.c.l.s4 1983009808
  %v2368 = vunpack.c.0.s8 %v2367
  %v2369 = vlaneseq
  %v2370 = vshrl.u32 %v2369, 7
  %v2371 = vsub.s32 %v2368, %v2370
  %v2372 = vrot.slane %v2365, %v2371
  %v2374 = vunpack.c.l.s4 1983009808
  %v2375 = vunpack.c.0.s8 %v2374
  %v2376 = vlaneseq
  %v2377 = vshrl.u32 %v2376, 7
  %v2378 = vsub.s32 %v2375, %v2377
  %v2379 = vrot.slane %v1748, %v2378
  %v2380 = vcombine.low %v2372, %v2379
  %v2381 = vcombine.low %v1756, %v1764
  %v2383 = vunpack.c.l.s4 1983009808
  %v2384 = vunpack.c.0.s8 %v2383
  %v2385 = vlaneseq
  %v2386 = vshrl.u32 %v2385, 7
  %v2387 = vsub.s32 %v2384, %v2386
  %v2388 = vrot.slane %v2381, %v2387
  %v2390 = vunpack.c.l.s4 1983009808
  %v2391 = vunpack.c.0.s8 %v2390
  %v2392 = vlaneseq
  %v2393 = vshrl.u32 %v2392, 7
  %v2394 = vsub.s32 %v2391, %v2393
  %v2395 = vrot.slane %v1763, %v2394
  %v2396 = vcombine.low %v2388, %v2395
  %v2397 = vcombine.low %v1765, %v1773
  %v2399 = vunpack.c.l.s4 1983009808
  %v2400 = vunpack.c.0.s8 %v2399
  %v2401 = vlaneseq
  %v2402 = vshrl.u32 %v2401, 7
  %v2403 = vsub.s32 %v2400, %v2402
  %v2404 = vrot.slane %v2397, %v2403
  %v2406 = vunpack.c.l.s4 1983009808
  %v2407 = vunpack.c.0.s8 %v2406
  %v2408 = vlaneseq
  %v2409 = vshrl.u32 %v2408, 7
  %v2410 = vsub.s32 %v2407, %v2409
  %v2411 = vrot.slane %v1781, %v2410
  %v2412 = vcombine.low %v2404, %v2411
  %v2413 = vcombine.low %v1780, %v1782
  %v2415 = vunpack.c.l.s4 1983009808
  %v2416 = vunpack.c.0.s8 %v2415
  %v2417 = vlaneseq
  %v2418 = vshrl.u32 %v2417, 7
  %v2419 = vsub.s32 %v2416, %v2418
  %v2420 = vrot.slane %v2413, %v2419
  %v2422 = vunpack.c.l.s4 1983009808
  %v2423 = vunpack.c.0.s8 %v2422
  %v2424 = vlaneseq
  %v2425 = vshrl.u32 %v2424, 7
  %v2426 = vsub.s32 %v2423, %v2425
  %v2427 = vrot.slane %v1789, %v2426
  %v2428 = vcombine.low %v2420, %v2427
  %v2429 = vcombine.low %v1797, %v1805
  %v2431 = vunpack.c.l.s4 1983009808
  %v2432 = vunpack.c.0.s8 %v2431
  %v2433 = vlaneseq
  %v2434 = vshrl.u32 %v2433, 7
  %v2435 = vsub.s32 %v2432, %v2434
  %v2436 = vrot.slane %v2429, %v2435
  %v2438 = vunpack.c.l.s4 1983009808
  %v2439 = vunpack.c.0.s8 %v2438
  %v2440 = vlaneseq
  %v2441 = vshrl.u32 %v2440, 7
  %v2442 = vsub.s32 %v2439, %v2441
  %v2443 = vrot.slane %v1804, %v2442
  %v2444 = vcombine.low %v2436, %v2443
  %v2445 = vcombine.low %v1806, %v1814
  %v2447 = vunpack.c.l.s4 1983009808
  %v2448 = vunpack.c.0.s8 %v2447
  %v2449 = vlaneseq
  %v2450 = vshrl.u32 %v2449, 7
  %v2451 = vsub.s32 %v2448, %v2450
  %v2452 = vrot.slane %v2445, %v2451
  %v2454 = vunpack.c.l.s4 1983009808
  %v2455 = vunpack.c.0.s8 %v2454
  %v2456 = vlaneseq
  %v2457 = vshrl.u32 %v2456, 7
  %v2458 = vsub.s32 %v2455, %v2457
  %v2459 = vrot.slane %v1822, %v2458
  %v2460 = vcombine.low %v2452, %v2459
  %v2461 = vcombine.low %v1821, %v1823
  %v2463 = vunpack.c.l.s4 1983009808
  %v2464 = vunpack.c.0.s8 %v2463
  %v2465 = vlaneseq
  %v2466 = vshrl.u32 %v2465, 7
  %v2467 = vsub.s32 %v2464, %v2466
  %v2468 = vrot.slane %v2461, %v2467
  %v2470 = vunpack.c.l.s4 1983009808
  %v2471 = vunpack.c.0.s8 %v2470
  %v2472 = vlaneseq
  %v2473 = vshrl.u32 %v2472, 7
  %v2474 = vsub.s32 %v2471, %v2473
  %v2475 = vrot.slane %v1831, %v2474
  %v2476 = vcombine.low %v2468, %v2475
  %v2477 = vcombine.low %v1839, %v1838
  %v2479 = vunpack.c.l.s4 1983009808
  %v2480 = vunpack.c.0.s8 %v2479
  %v2481 = vlaneseq
  %v2482 = vshrl.u32 %v2481, 7
  %v2483 = vsub.s32 %v2480, %v2482
  %v2484 = vrot.slane %v2477, %v2483
  %v2486 = vunpack.c.l.s4 1983009808
  %v2487 = vunpack.c.0.s8 %v2486
  %v2488 = vlaneseq
  %v2489 = vshrl.u32 %v2488, 7
  %v2490 = vsub.s32 %v2487, %v2489
  %v2491 = vrot.slane %v1840, %v2490
  %v2492 = vcombine.low %v2484, %v2491
  %v2493 = vcombine.low %v1848, %v1856
  %v2495 = vunpack.c.l.s4 1983009808
  %v2496 = vunpack.c.0.s8 %v2495
  %v2497 = vlaneseq
  %v2498 = vshrl.u32 %v2497, 7
  %v2499 = vsub.s32 %v2496, %v2498
  %v2500 = vrot.slane %v2493, %v2499
  %v2502 = vunpack.c.l.s4 1983009808
  %v2503 = vunpack.c.0.s8 %v2502
  %v2504 = vlaneseq
  %v2505 = vshrl.u32 %v2504, 7
  %v2506 = vsub.s32 %v2503, %v2505
  %v2507 = vrot.slane %v1855, %v2506
  %v2508 = vcombine.low %v2500, %v2507
  %v2509 = vcombine.low %v1857, %v1865
  %v2511 = vunpack.c.l.s4 1983009808
  %v2512 = vunpack.c.0.s8 %v2511
  %v2513 = vlaneseq
  %v2514 = vshrl.u32 %v2513, 7
  %v2515 = vsub.s32 %v2512, %v2514
  %v2516 = vrot.slane %v2509, %v2515
  %v2518 = vunpack.c.l.s4 1983009808
  %v2519 = vunpack.c.0.s8 %v2518
  %v2520 = vlaneseq
  %v2521 = vshrl.u32 %v2520, 7
  %v2522 = vsub.s32 %v2519, %v2521
  %v2523 = vrot.slane %v1873, %v2522
  %v2524 = vcombine.low %v2516, %v2523
  %v2525 = vcombine.low %v1872, %v1874
  %v2527 = vunpack.c.l.s4 1983009808
  %v2528 = vunpack.c.0.s8 %v2527
  %v2529 = vlaneseq
  %v2530 = vshrl.u32 %v2529, 7
  %v2531 = vsub.s32 %v2528, %v2530
  %v2532 = vrot.slane %v2525, %v2531
  %v2534 = vunpack.c.l.s4 1983009808
  %v2535 = vunpack.c.0.s8 %v2534
  %v2536 = vlaneseq
  %v2537 = vshrl.u32 %v2536, 7
  %v2538 = vsub.s32 %v2535, %v2537
  %v2539 = vrot.slane %v1882, %v2538
  %v2540 = vcombine.low %v2532, %v2539
  %v2541 = vcombine.low %v1890, %v1889
  %v2543 = vunpack.c.l.s4 1983009808
  %v2544 = vunpack.c.0.s8 %v2543
  %v2545 = vlaneseq
  %v2546 = vshrl.u32 %v2545, 7
  %v2547 = vsub.s32 %v2544, %v2546
  %v2548 = vrot.slane %v2541, %v2547
  %v2550 = vunpack.c.l.s4 1983009808
  %v2551 = vunpack.c.0.s8 %v2550
  %v2552 = vlaneseq
  %v2553 = vshrl.u32 %v2552, 7
  %v2554 = vsub.s32 %v2551, %v2553
  %v2555 = vrot.slane %v1891, %v2554
  %v2556 = vcombine.low %v2548, %v2555
  %v2557 = vcombine.low %v1899, %v1907
  %v2559 = vunpack.c.l.s4 1983009808
  %v2560 = vunpack.c.0.s8 %v2559
  %v2561 = vlaneseq
  %v2562 = vshrl.u32 %v2561, 7
  %v2563 = vsub.s32 %v2560, %v2562
  %v2564 = vrot.slane %v2557, %v2563
  %v2566 = vunpack.c.l.s4 1983009808
  %v2567 = vunpack.c.0.s8 %v2566
  %v2568 = vlaneseq
  %v2569 = vshrl.u32 %v2568, 7
  %v2570 = vsub.s32 %v2567, %v2569
  %v2571 = vrot.slane %v1906, %v2570
  %v2572 = vcombine.low %v2564, %v2571
  %v2573 = vcombine.low %v1908, %v1916
  %v2575 = vunpack.c.l.s4 1983009808
  %v2576 = vunpack.c.0.s8 %v2575
  %v2577 = vlaneseq
  %v2578 = vshrl.u32 %v2577, 7
  %v2579 = vsub.s32 %v2576, %v2578
  %v2580 = vrot.slane %v2573, %v2579
  %v2582 = vunpack.c.l.s4 1983009808
  %v2583 = vunpack.c.0.s8 %v2582
  %v2584 = vlaneseq
  %v2585 = vshrl.u32 %v2584, 7
  %v2586 = vsub.s32 %v2583, %v2585
  %v2587 = vrot.slane %v1924, %v2586
  %v2588 = vcombine.low %v2580, %v2587
  %v2589 = vcombine.low %v1923, %v1925
  %v2591 = vunpack.c.l.s4 1983009808
  %v2592 = vunpack.c.0.s8 %v2591
  %v2593 = vlaneseq
  %v2594 = vshrl.u32 %v2593, 7
  %v2595 = vsub.s32 %v2592, %v2594
  %v2596 = vrot.slane %v2589, %v2595
  %v2598 = vunpack.c.l.s4 1983009808
  %v2599 = vunpack.c.0.s8 %v2598
  %v2600 = vlaneseq
  %v2601 = vshrl.u32 %v2600, 7
  %v2602 = vsub.s32 %v2599, %v2601
  %v2603 = vrot.slane %v1933, %v2602
  %v2604 = vcombine.low %v2596, %v2603
  %v2605 = vcombine.low %v1941, %v1940
  %v2607 = vunpack.c.l.s4 1983009808
  %v2608 = vunpack.c.0.s8 %v2607
  %v2609 = vlaneseq
  %v2610 = vshrl.u32 %v2609, 7
  %v2611 = vsub.s32 %v2608, %v2610
  %v2612 = vrot.slane %v2605, %v2611
  %v2614 = vunpack.c.l.s4 1983009808
  %v2615 = vunpack.c.0.s8 %v2614
  %v2616 = vlaneseq
  %v2617 = vshrl.u32 %v2616, 7
  %v2618 = vsub.s32 %v2615, %v2617
  %v2619 = vrot.slane %v1942, %v2618
  %v2620 = vcombine.low %v2612, %v2619
  %v2621 = vcombine.low %v1950, %v1958
  %v2623 = vunpack.c.l.s4 1983009808
  %v2624 = vunpack.c.0.s8 %v2623
  %v2625 = vlaneseq
  %v2626 = vshrl.u32 %v2625, 7
  %v2627 = vsub.s32 %v2624, %v2626
  %v2628 = vrot.slane %v2621, %v2627
  %v2630 = vunpack.c.l.s4 1983009808
  %v2631 = vunpack.c.0.s8 %v2630
  %v2632 = vlaneseq
  %v2633 = vshrl.u32 %v2632, 7
  %v2634 = vsub.s32 %v2631, %v2633
  %v2635 = vrot.slane %v1957, %v2634
  %v2636 = vcombine.low %v2628, %v2635
  %v2637 = vcombine.low %v1959, %v1967
  %v2639 = vunpack.c.l.s4 1983009808
  %v2640 = vunpack.c.0.s8 %v2639
  %v2641 = vlaneseq
  %v2642 = vshrl.u32 %v2641, 7
  %v2643 = vsub.s32 %v2640, %v2642
  %v2644 = vrot.slane %v2637, %v2643
  %v2646 = vunpack.c.l.s4 1983009808
  %v2647 = vunpack.c.0.s8 %v2646
  %v2648 = vlaneseq
  %v2649 = vshrl.u32 %v2648, 7
  %v2650 = vsub.s32 %v2647, %v2649
  %v2651 = vrot.slane %v1975, %v2650
  %v2652 = vcombine.low %v2644, %v2651
  %v2653 = vcombine.low %v1974, %v1976
  %v2655 = vunpack.c.l.s4 1983009808
  %v2656 = vunpack.c.0.s8 %v2655
  %v2657 = vlaneseq
  %v2658 = vshrl.u32 %v2657, 7
  %v2659 = vsub.s32 %v2656, %v2658
  %v2660 = vrot.slane %v2653, %v2659
  %v2662 = vunpack.c.l.s4 1983009808
  %v2663 = vunpack.c.0.s8 %v2662
  %v2664 = vlaneseq
  %v2665 = vshrl.u32 %v2664, 7
  %v2666 = vsub.s32 %v2663, %v2665
  %v2667 = vrot.slane %v1984, %v2666
  %v2668 = vcombine.low %v2660, %v2667
  %v2669 = vcombine.low %v1992, %v1991
  %v2671 = vunpack.c.l.s4 1983009808
  %v2672 = vunpack.c.0.s8 %v2671
  %v2673 = vlaneseq
  %v2674 = vshrl.u32 %v2673, 7
  %v2675 = vsub.s32 %v2672, %v2674
  %v2676 = vrot.slane %v2669, %v2675
  %v2678 = vunpack.c.l.s4 1983009808
  %v2679 = vunpack.c.0.s8 %v2678
  %v2680 = vlaneseq
  %v2681 = vshrl.u32 %v2680, 7
  %v2682 = vsub.s32 %v2679, %v2681
  %v2683 = vrot.slane %v1993, %v2682
  %v2684 = vcombine.low %v2676, %v2683
  %v2685 = vcombine.low %v2001, %v2009
  %v2687 = vunpack.c.l.s4 1983009808
  %v2688 = vunpack.c.0.s8 %v2687
  %v2689 = vlaneseq
  %v2690 = vshrl.u32 %v2689, 7
  %v2691 = vsub.s32 %v2688, %v2690
  %v2692 = vrot.slane %v2685, %v2691
  %v2694 = vunpack.c.l.s4 1983009808
  %v2695 = vunpack.c.0.s8 %v2694
  %v2696 = vlaneseq
  %v2697 = vshrl.u32 %v2696, 7
  %v2698 = vsub.s32 %v2695, %v2697
  %v2699 = vrot.slane %v2008, %v2698
  %v2700 = vcombine.low %v2692, %v2699
  %v2701 = vcombine.low %v2017, %v2018
  %v2703 = vunpack.c.l.s4 1983009808
  %v2704 = vunpack.c.0.s8 %v2703
  %v2705 = vlaneseq
  %v2706 = vshrl.u32 %v2705, 7
  %v2707 = vsub.s32 %v2704, %v2706
  %v2708 = vrot.slane %v2701, %v2707
  %v2710 = vunpack.c.l.s4 1983009808
  %v2711 = vunpack.c.0.s8 %v2710
  %v2712 = vlaneseq
  %v2713 = vshrl.u32 %v2712, 7
  %v2714 = vsub.s32 %v2711, %v2713
  %v2715 = vrot.slane %v2026, %v2714
  %v2716 = vcombine.low %v2708, %v2715
  %v2717 = vcombine.low %v2034, %v2033
  %v2719 = vunpack.c.l.s4 1983009808
  %v2720 = vunpack.c.0.s8 %v2719
  %v2721 = vlaneseq
  %v2722 = vshrl.u32 %v2721, 7
  %v2723 = vsub.s32 %v2720, %v2722
  %v2724 = vrot.slane %v2717, %v2723
  %v2726 = vunpack.c.l.s4 1983009808
  %v2727 = vunpack.c.0.s8 %v2726
  %v2728 = vlaneseq
  %v2729 = vshrl.u32 %v2728, 7
  %v2730 = vsub.s32 %v2727, %v2729
  %v2731 = vrot.slane %v2035, %v2730
  %v2732 = vcombine.low %v2724, %v2731
  %v2733 = vcombine.low %v2043, %v2051
  %v2735 = vunpack.c.l.s4 1983009808
  %v2736 = vunpack.c.0.s8 %v2735
  %v2737 = vlaneseq
  %v2738 = vshrl.u32 %v2737, 7
  %v2739 = vsub.s32 %v2736, %v2738
  %v2740 = vrot.slane %v2733, %v2739
  %v2742 = vunpack.c.l.s4 1983009808
  %v2743 = vunpack.c.0.s8 %v2742
  %v2744 = vlaneseq
  %v2745 = vshrl.u32 %v2744, 7
  %v2746 = vsub.s32 %v2743, %v2745
  %v2747 = vrot.slane %v2050, %v2746
  %v2748 = vcombine.low %v2740, %v2747
  %v2749 = vcombine.low %v2052, %v2060
  %v2751 = vunpack.c.l.s4 1983009808
  %v2752 = vunpack.c.0.s8 %v2751
  %v2753 = vlaneseq
  %v2754 = vshrl.u32 %v2753, 7
  %v2755 = vsub.s32 %v2752, %v2754
  %v2756 = vrot.slane %v2749, %v2755
  %v2758 = vunpack.c.l.s4 1983009808
  %v2759 = vunpack.c.0.s8 %v2758
  %v2760 = vlaneseq
  %v2761 = vshrl.u32 %v2760, 7
  %v2762 = vsub.s32 %v2759, %v2761
  %v2763 = vrot.slane %v2068, %v2762
  %v2764 = vcombine.low %v2756, %v2763
  %v2765 = vcombine.low %v2067, %v2069
  %v2767 = vunpack.c.l.s4 1983009808
  %v2768 = vunpack.c.0.s8 %v2767
  %v2769 = vlaneseq
  %v2770 = vshrl.u32 %v2769, 7
  %v2771 = vsub.s32 %v2768, %v2770
  %v2772 = vrot.slane %v2765, %v2771
  %v2774 = vunpack.c.l.s4 1983009808
  %v2775 = vunpack.c.0.s8 %v2774
  %v2776 = vlaneseq
  %v2777 = vshrl.u32 %v2776, 7
  %v2778 = vsub.s32 %v2775, %v2777
  %v2779 = vrot.slane %v2076, %v2778
  %v2780 = vcombine.low %v2772, %v2779
  %v2825 = vpack.c.bf16 %v2092, %v2092
  %v2826 = vpack.c.bf16 %v2108, %v2108
  %v2827 = vpack.c.bf16 %v2124, %v2124
  %v2828 = vpack.c.bf16 %v2140, %v2140
  %v2829 = vpack.c.bf16 %v2156, %v2156
  %v2830 = vpack.c.bf16 %v2172, %v2172
  %v2831 = vpack.c.bf16 %v2188, %v2188
  %v2832 = vpack.c.bf16 %v2204, %v2204
  %v2833 = vpack.c.bf16 %v2220, %v2220
  %v2834 = vpack.c.bf16 %v2236, %v2236
  %v2835 = vpack.c.bf16 %v2252, %v2252
  %v2836 = vpack.c.bf16 %v2268, %v2268
  %v2837 = vpack.c.bf16 %v2284, %v2284
  %v2838 = vpack.c.bf16 %v2300, %v2300
  %v2839 = vpack.c.bf16 %v2316, %v2316
  %v2840 = vpack.c.bf16 %v2332, %v2332
  %v2841 = vpack.c.bf16 %v2348, %v2348
  %v2842 = vpack.c.bf16 %v2364, %v2364
  %v2843 = vpack.c.bf16 %v2380, %v2380
  %v2844 = vpack.c.bf16 %v2396, %v2396
  %v2845 = vpack.c.bf16 %v2412, %v2412
  %v2846 = vpack.c.bf16 %v2428, %v2428
  %v2847 = vpack.c.bf16 %v2444, %v2444
  %v2848 = vpack.c.bf16 %v2460, %v2460
  %v2849 = vpack.c.bf16 %v2476, %v2476
  %v2850 = vpack.c.bf16 %v2492, %v2492
  %v2851 = vpack.c.bf16 %v2508, %v2508
  %v2852 = vpack.c.bf16 %v2524, %v2524
  %v2853 = vpack.c.bf16 %v2540, %v2540
  %v2854 = vpack.c.bf16 %v2556, %v2556
  %v2855 = vpack.c.bf16 %v2572, %v2572
  %v2856 = vpack.c.bf16 %v2588, %v2588
  %v2857 = vpack.c.bf16 %v2604, %v2604
  %v2858 = vpack.c.bf16 %v2620, %v2620
  %v2859 = vpack.c.bf16 %v2636, %v2636
  %v2860 = vpack.c.bf16 %v2652, %v2652
  %v2861 = vpack.c.bf16 %v2668, %v2668
  %v2862 = vpack.c.bf16 %v2684, %v2684
  %v2863 = vpack.c.bf16 %v2700, %v2700
  %v2864 = vpack.c.bf16 %v2716, %v2716
  %v2865 = vpack.c.bf16 %v2732, %v2732
  %v2866 = vpack.c.bf16 %v2748, %v2748
  %v2867 = vpack.c.bf16 %v2764, %v2764
  %v2868 = vpack.c.bf16 %v2780, %v2780
  %2877 = vrot.lane.b32.xlu0 %v2831, 64
  %v2878 = vpop.permute.xlu0 %2877
  %2879 = vrot.lane.b32.xlu0 %v2832, 64
  %v2880 = vpop.permute.xlu0 %2879
  %2881 = vrot.lane.b32.xlu0 %v2833, 64
  %v2882 = vpop.permute.xlu0 %2881
  %2883 = vrot.lane.b32.xlu0 %v2834, 64
  %v2884 = vpop.permute.xlu0 %2883
  %2885 = vrot.lane.b32.xlu0 %v2853, 64
  %v2886 = vpop.permute.xlu0 %2885
  %2887 = vrot.lane.b32.xlu0 %v2854, 64
  %v2888 = vpop.permute.xlu0 %2887
  %2889 = vrot.lane.b32.xlu0 %v2855, 64
  %v2890 = vpop.permute.xlu0 %2889
  %2891 = vrot.lane.b32.xlu0 %v2856, 64
  %v2892 = vpop.permute.xlu0 %2891
  %v2894 = vshrl.u32 %v2825, 16
  %v2896 = vshll.u32 %v2825, 16
  %v2898 = vrot.slane %v2896, 1
  %v2899 = vor.u32 %v2894, %v2898
  %v2901 = vshrl.u32 %v2826, 16
  %v2903 = vshll.u32 %v2826, 16
  %v2905 = vrot.slane %v2903, 1
  %v2906 = vor.u32 %v2901, %v2905
  %v2908 = vshrl.u32 %v2827, 16
  %v2910 = vshll.u32 %v2827, 16
  %v2912 = vrot.slane %v2910, 1
  %v2913 = vor.u32 %v2908, %v2912
  %v2915 = vshrl.u32 %v2828, 16
  %v2917 = vshll.u32 %v2828, 16
  %v2919 = vrot.slane %v2917, 1
  %v2920 = vor.u32 %v2915, %v2919
  %v2922 = vshrl.u32 %v2847, 16
  %v2924 = vshll.u32 %v2847, 16
  %v2926 = vrot.slane %v2924, 1
  %v2927 = vor.u32 %v2922, %v2926
  %v2929 = vshrl.u32 %v2848, 16
  %v2931 = vshll.u32 %v2848, 16
  %v2933 = vrot.slane %v2931, 1
  %v2934 = vor.u32 %v2929, %v2933
  %v2936 = vshrl.u32 %v2849, 16
  %v2938 = vshll.u32 %v2849, 16
  %v2940 = vrot.slane %v2938, 1
  %v2941 = vor.u32 %v2936, %v2940
  %v2943 = vshrl.u32 %v2850, 16
  %v2945 = vshll.u32 %v2850, 16
  %v2947 = vrot.slane %v2945, 1
  %v2948 = vor.u32 %v2943, %v2947
  %v2950 = vshrl.u32 %v2831, 16
  %v2952 = vshll.u32 %v2831, 16
  %v2954 = vrot.slane %v2952, 1
  %v2955 = vor.u32 %v2950, %v2954
  %v2957 = vshrl.u32 %v2832, 16
  %v2959 = vshll.u32 %v2832, 16
  %v2961 = vrot.slane %v2959, 1
  %v2962 = vor.u32 %v2957, %v2961
  %v2964 = vshrl.u32 %v2833, 16
  %v2966 = vshll.u32 %v2833, 16
  %v2968 = vrot.slane %v2966, 1
  %v2969 = vor.u32 %v2964, %v2968
  %v2971 = vshrl.u32 %v2834, 16
  %v2973 = vshll.u32 %v2834, 16
  %v2975 = vrot.slane %v2973, 1
  %v2976 = vor.u32 %v2971, %v2975
  %v2978 = vshrl.u32 %v2853, 16
  %v2980 = vshll.u32 %v2853, 16
  %v2982 = vrot.slane %v2980, 1
  %v2983 = vor.u32 %v2978, %v2982
  %v2985 = vshrl.u32 %v2854, 16
  %v2987 = vshll.u32 %v2854, 16
  %v2989 = vrot.slane %v2987, 1
  %v2990 = vor.u32 %v2985, %v2989
  %v2992 = vshrl.u32 %v2855, 16
  %v2994 = vshll.u32 %v2855, 16
  %v2996 = vrot.slane %v2994, 1
  %v2997 = vor.u32 %v2992, %v2996
  %v2999 = vshrl.u32 %v2856, 16
  %v3001 = vshll.u32 %v2856, 16
  %v3003 = vrot.slane %v3001, 1
  %v3004 = vor.u32 %v2999, %v3003
  %3005 = vrot.lane.b32.xlu0 %v2955, 64
  %v3006 = vpop.permute.xlu0 %3005
  %3007 = vrot.lane.b32.xlu0 %v2962, 64
  %v3008 = vpop.permute.xlu0 %3007
  %3009 = vrot.lane.b32.xlu0 %v2969, 64
  %v3010 = vpop.permute.xlu0 %3009
  %3011 = vrot.lane.b32.xlu0 %v2976, 64
  %v3012 = vpop.permute.xlu0 %3011
  %3013 = vrot.lane.b32.xlu0 %v2983, 64
  %v3014 = vpop.permute.xlu0 %3013
  %3015 = vrot.lane.b32.xlu0 %v2990, 64
  %v3016 = vpop.permute.xlu0 %3015
  %3017 = vrot.lane.b32.xlu0 %v2997, 64
  %v3018 = vpop.permute.xlu0 %3017
  %3019 = vrot.lane.b32.xlu0 %v3004, 64
  %v3020 = vpop.permute.xlu0 %3019
  %v3029 = vrot.slane %v2825, 1
  %v3030 = vrot.slane %v2826, 1
  %v3031 = vrot.slane %v2827, 1
  %v3032 = vrot.slane %v2828, 1
  %v3033 = vrot.slane %v2847, 1
  %v3034 = vrot.slane %v2848, 1
  %v3035 = vrot.slane %v2849, 1
  %v3036 = vrot.slane %v2850, 1
  %3045 = vrot.lane.b32.xlu0 %v2837, 64
  %v3046 = vpop.permute.xlu0 %3045
  %3047 = vrot.lane.b32.xlu0 %v2838, 64
  %v3048 = vpop.permute.xlu0 %3047
  %3049 = vrot.lane.b32.xlu0 %v2839, 64
  %v3050 = vpop.permute.xlu0 %3049
  %3051 = vrot.lane.b32.xlu0 %v2840, 64
  %v3052 = vpop.permute.xlu0 %3051
  %3053 = vrot.lane.b32.xlu0 %v2859, 64
  %v3054 = vpop.permute.xlu0 %3053
  %3055 = vrot.lane.b32.xlu0 %v2860, 64
  %v3056 = vpop.permute.xlu0 %3055
  %3057 = vrot.lane.b32.xlu0 %v2861, 64
  %v3058 = vpop.permute.xlu0 %3057
  %3059 = vrot.lane.b32.xlu0 %v2862, 64
  %v3060 = vpop.permute.xlu0 %3059
  %v3062 = vshrl.u32 %v2837, 16
  %v3064 = vshll.u32 %v2837, 16
  %v3066 = vrot.slane %v3064, 1
  %v3067 = vor.u32 %v3062, %v3066
  %v3069 = vshrl.u32 %v2838, 16
  %v3071 = vshll.u32 %v2838, 16
  %v3073 = vrot.slane %v3071, 1
  %v3074 = vor.u32 %v3069, %v3073
  %v3076 = vshrl.u32 %v2839, 16
  %v3078 = vshll.u32 %v2839, 16
  %v3080 = vrot.slane %v3078, 1
  %v3081 = vor.u32 %v3076, %v3080
  %v3083 = vshrl.u32 %v2840, 16
  %v3085 = vshll.u32 %v2840, 16
  %v3087 = vrot.slane %v3085, 1
  %v3088 = vor.u32 %v3083, %v3087
  %v3090 = vshrl.u32 %v2859, 16
  %v3092 = vshll.u32 %v2859, 16
  %v3094 = vrot.slane %v3092, 1
  %v3095 = vor.u32 %v3090, %v3094
  %v3097 = vshrl.u32 %v2860, 16
  %v3099 = vshll.u32 %v2860, 16
  %v3101 = vrot.slane %v3099, 1
  %v3102 = vor.u32 %v3097, %v3101
  %v3104 = vshrl.u32 %v2861, 16
  %v3106 = vshll.u32 %v2861, 16
  %v3108 = vrot.slane %v3106, 1
  %v3109 = vor.u32 %v3104, %v3108
  %v3111 = vshrl.u32 %v2862, 16
  %v3113 = vshll.u32 %v2862, 16
  %v3115 = vrot.slane %v3113, 1
  %v3116 = vor.u32 %v3111, %v3115
  %3117 = vrot.lane.b32.xlu0 %v3067, 64
  %v3118 = vpop.permute.xlu0 %3117
  %3119 = vrot.lane.b32.xlu0 %v3074, 64
  %v3120 = vpop.permute.xlu0 %3119
  %3121 = vrot.lane.b32.xlu0 %v3081, 64
  %v3122 = vpop.permute.xlu0 %3121
  %3123 = vrot.lane.b32.xlu0 %v3088, 64
  %v3124 = vpop.permute.xlu0 %3123
  %3125 = vrot.lane.b32.xlu0 %v3095, 64
  %v3126 = vpop.permute.xlu0 %3125
  %3127 = vrot.lane.b32.xlu0 %v3102, 64
  %v3128 = vpop.permute.xlu0 %3127
  %3129 = vrot.lane.b32.xlu0 %v3109, 64
  %v3130 = vpop.permute.xlu0 %3129
  %3131 = vrot.lane.b32.xlu0 %v3116, 64
  %v3132 = vpop.permute.xlu0 %3131
  %v3134 = vshrl.u32 %v2842, 16
  %v3136 = vshll.u32 %v2842, 16
  %v3138 = vrot.slane %v3136, 1
  %v3139 = vor.u32 %v3134, %v3138
  %v3141 = vshrl.u32 %v2843, 16
  %v3143 = vshll.u32 %v2843, 16
  %v3145 = vrot.slane %v3143, 1
  %v3146 = vor.u32 %v3141, %v3145
  %v3148 = vshrl.u32 %v2844, 16
  %v3150 = vshll.u32 %v2844, 16
  %v3152 = vrot.slane %v3150, 1
  %v3153 = vor.u32 %v3148, %v3152
  %v3155 = vshrl.u32 %v2845, 16
  %v3157 = vshll.u32 %v2845, 16
  %v3159 = vrot.slane %v3157, 1
  %v3160 = vor.u32 %v3155, %v3159
  %v3162 = vshrl.u32 %v2864, 16
  %v3164 = vshll.u32 %v2864, 16
  %v3166 = vrot.slane %v3164, 1
  %v3167 = vor.u32 %v3162, %v3166
  %v3169 = vshrl.u32 %v2865, 16
  %v3171 = vshll.u32 %v2865, 16
  %v3173 = vrot.slane %v3171, 1
  %v3174 = vor.u32 %v3169, %v3173
  %v3176 = vshrl.u32 %v2866, 16
  %v3178 = vshll.u32 %v2866, 16
  %v3180 = vrot.slane %v3178, 1
  %v3181 = vor.u32 %v3176, %v3180
  %v3183 = vshrl.u32 %v2867, 16
  %v3185 = vshll.u32 %v2867, 16
  %v3187 = vrot.slane %v3185, 1
  %v3188 = vor.u32 %v3183, %v3187
  %v3189 = vrot.slane %v2837, 1
  %v3190 = vrot.slane %v2838, 1
  %v3191 = vrot.slane %v2839, 1
  %v3192 = vrot.slane %v2840, 1
  %v3193 = vrot.slane %v2859, 1
  %v3194 = vrot.slane %v2860, 1
  %v3195 = vrot.slane %v2861, 1
  %v3196 = vrot.slane %v2862, 1
  %3197 = vrot.lane.b32.xlu0 %v3189, 64
  %v3198 = vpop.permute.xlu0 %3197
  %3199 = vrot.lane.b32.xlu0 %v3190, 64
  %v3200 = vpop.permute.xlu0 %3199
  %3201 = vrot.lane.b32.xlu0 %v3191, 64
  %v3202 = vpop.permute.xlu0 %3201
  %3203 = vrot.lane.b32.xlu0 %v3192, 64
  %v3204 = vpop.permute.xlu0 %3203
  %3205 = vrot.lane.b32.xlu0 %v3193, 64
  %v3206 = vpop.permute.xlu0 %3205
  %3207 = vrot.lane.b32.xlu0 %v3194, 64
  %v3208 = vpop.permute.xlu0 %3207
  %3209 = vrot.lane.b32.xlu0 %v3195, 64
  %v3210 = vpop.permute.xlu0 %3209
  %3211 = vrot.lane.b32.xlu0 %v3196, 64
  %v3212 = vpop.permute.xlu0 %3211
  %3215 = vrot.lane.b32.xlu0 %v2835, 64
  %v3216 = vpop.permute.xlu0 %3215
  %3217 = vrot.lane.b32.xlu0 %v2857, 64
  %v3218 = vpop.permute.xlu0 %3217
  %v3220 = vshrl.u32 %v2829, 16
  %v3222 = vshll.u32 %v2829, 16
  %v3224 = vrot.slane %v3222, 1
  %v3225 = vor.u32 %v3220, %v3224
  %v3227 = vshrl.u32 %v2851, 16
  %v3229 = vshll.u32 %v2851, 16
  %v3231 = vrot.slane %v3229, 1
  %v3232 = vor.u32 %v3227, %v3231
  %v3234 = vshrl.u32 %v2835, 16
  %v3236 = vshll.u32 %v2835, 16
  %v3238 = vrot.slane %v3236, 1
  %v3239 = vor.u32 %v3234, %v3238
  %v3241 = vshrl.u32 %v2857, 16
  %v3243 = vshll.u32 %v2857, 16
  %v3245 = vrot.slane %v3243, 1
  %v3246 = vor.u32 %v3241, %v3245
  %3247 = vrot.lane.b32.xlu0 %v3239, 64
  %v3248 = vpop.permute.xlu0 %3247
  %3249 = vrot.lane.b32.xlu0 %v3246, 64
  %v3250 = vpop.permute.xlu0 %3249
  %v3253 = vrot.slane %v2829, 1
  %v3254 = vrot.slane %v2851, 1
  %3257 = vrot.lane.b32.xlu0 %v2841, 64
  %v3258 = vpop.permute.xlu0 %3257
  %3259 = vrot.lane.b32.xlu0 %v2863, 64
  %v3260 = vpop.permute.xlu0 %3259
  %v3262 = vsel %vm934, %v2825, %v2878
  %v3264 = vsel %vm934, %v2826, %v2880
  %v3266 = vsel %vm934, %v2827, %v2882
  %v3268 = vsel %vm934, %v2828, %v2884
  %v3270 = vsel %vm934, %v2847, %v2886
  %v3272 = vsel %vm934, %v2848, %v2888
  %v3274 = vsel %vm934, %v2849, %v2890
  %v3276 = vsel %vm934, %v2850, %v2892
  %v3279 = vsel %vm934, %v2899, %v3006
  %v3282 = vsel %vm934, %v2906, %v3008
  %v3285 = vsel %vm934, %v2913, %v3010
  %v3288 = vsel %vm934, %v2920, %v3012
  %v3291 = vsel %vm934, %v2927, %v3014
  %v3294 = vsel %vm934, %v2934, %v3016
  %v3297 = vsel %vm934, %v2941, %v3018
  %v3300 = vsel %vm934, %v2948, %v3020
  %v3303 = vsel %vm934, %v3029, %v3046
  %v3306 = vsel %vm934, %v3030, %v3048
  %v3309 = vsel %vm934, %v3031, %v3050
  %v3312 = vsel %vm934, %v3032, %v3052
  %v3315 = vsel %vm934, %v3033, %v3054
  %v3318 = vsel %vm934, %v3034, %v3056
  %v3321 = vsel %vm934, %v3035, %v3058
  %v3324 = vsel %vm934, %v3036, %v3060
  %v3326 = vsel %vm934, %v2842, %v3118
  %v3328 = vsel %vm934, %v2843, %v3120
  %v3330 = vsel %vm934, %v2844, %v3122
  %v3332 = vsel %vm934, %v2845, %v3124
  %v3334 = vsel %vm934, %v2864, %v3126
  %v3336 = vsel %vm934, %v2865, %v3128
  %v3338 = vsel %vm934, %v2866, %v3130
  %v3340 = vsel %vm934, %v2867, %v3132
  %v3343 = vsel %vm934, %v3139, %v3198
  %v3346 = vsel %vm934, %v3146, %v3200
  %v3349 = vsel %vm934, %v3153, %v3202
  %v3352 = vsel %vm934, %v3160, %v3204
  %v3355 = vsel %vm934, %v3167, %v3206
  %v3358 = vsel %vm934, %v3174, %v3208
  %v3361 = vsel %vm934, %v3181, %v3210
  %v3364 = vsel %vm934, %v3188, %v3212
  %v3366 = vsel %vm934, %v2829, %v3216
  %v3368 = vsel %vm934, %v2851, %v3218
  %v3371 = vsel %vm934, %v3225, %v3248
  %v3374 = vsel %vm934, %v3232, %v3250
  %v3377 = vsel %vm934, %v3253, %v3258
  %v3380 = vsel %vm934, %v3254, %v3260
  %v3382 = vshrl.u32 %v2841, 16
  %v3384 = vshll.u32 %v2841, 16
  %v3386 = vrot.slane %v3384, 1
  %v3387 = vor.u32 %v3382, %v3386
  %v3389 = vshrl.u32 %v2863, 16
  %v3391 = vshll.u32 %v2863, 16
  %v3393 = vrot.slane %v3391, 1
  %v3394 = vor.u32 %v3389, %v3393
  %3395 = vrot.lane.b32.xlu0 %v3387, 64
  %v3396 = vpop.permute.xlu0 %3395
  %3397 = vrot.lane.b32.xlu0 %v3394, 64
  %v3398 = vpop.permute.xlu0 %3397
  %v3400 = vshrl.u32 %v2846, 16
  %v3402 = vshll.u32 %v2846, 16
  %v3404 = vrot.slane %v3402, 1
  %v3405 = vor.u32 %v3400, %v3404
  %v3407 = vshrl.u32 %v2868, 16
  %v3409 = vshll.u32 %v2868, 16
  %v3411 = vrot.slane %v3409, 1
  %v3412 = vor.u32 %v3407, %v3411
  %v3413 = vrot.slane %v2841, 1
  %v3414 = vrot.slane %v2863, 1
  %3415 = vrot.lane.b32.xlu0 %v3413, 64
  %v3416 = vpop.permute.xlu0 %3415
  %3417 = vrot.lane.b32.xlu0 %v3414, 64
  %v3418 = vpop.permute.xlu0 %3417
  %3421 = vrot.lane.b32.xlu0 %v2836, 64
  %v3422 = vpop.permute.xlu0 %3421
  %3423 = vrot.lane.b32.xlu0 %v2858, 64
  %v3424 = vpop.permute.xlu0 %3423
  %v3426 = vshrl.u32 %v2830, 16
  %v3428 = vshll.u32 %v2830, 16
  %v3430 = vrot.slane %v3428, 1
  %v3431 = vor.u32 %v3426, %v3430
  %v3433 = vshrl.u32 %v2852, 16
  %v3435 = vshll.u32 %v2852, 16
  %v3437 = vrot.slane %v3435, 1
  %v3438 = vor.u32 %v3433, %v3437
  %v3440 = vshrl.u32 %v2836, 16
  %v3442 = vshll.u32 %v2836, 16
  %v3444 = vrot.slane %v3442, 1
  %v3445 = vor.u32 %v3440, %v3444
  %v3447 = vshrl.u32 %v2858, 16
  %v3449 = vshll.u32 %v2858, 16
  %v3451 = vrot.slane %v3449, 1
  %v3452 = vor.u32 %v3447, %v3451
  %3453 = vrot.lane.b32.xlu0 %v3445, 64
  %v3454 = vpop.permute.xlu0 %3453
  %3455 = vrot.lane.b32.xlu0 %v3452, 64
  %v3456 = vpop.permute.xlu0 %3455
  %v3459 = vrot.slane %v2830, 1
  %v3460 = vrot.slane %v2852, 1
  %v3462 = vsel %vm934, %v2846, %v3396
  %v3464 = vsel %vm934, %v2868, %v3398
  %v3467 = vsel %vm934, %v3405, %v3416
  %v3470 = vsel %vm934, %v3412, %v3418
  %v3472 = vsel %vm934, %v2830, %v3422
  %v3474 = vsel %vm934, %v2852, %v3424
  %v3477 = vsel %vm934, %v3431, %v3454
  %v3480 = vsel %vm934, %v3438, %v3456
  %v3535 = vcombine.low %v3262, %v3279
  %v3536 = vcombine.low %v3303, %v3326
  %v3538 = vunpack.c.l.s4 1983009808
  %v3539 = vunpack.c.0.s8 %v3538
  %v3540 = vlaneseq
  %v3541 = vshrl.u32 %v3540, 7
  %v3542 = vsub.s32 %v3539, %v3541
  %v3543 = vrot.slane %v3535, %v3542
  %v3545 = vunpack.c.l.s4 1983009808
  %v3546 = vunpack.c.0.s8 %v3545
  %v3547 = vlaneseq
  %v3548 = vshrl.u32 %v3547, 7
  %v3549 = vsub.s32 %v3546, %v3548
  %v3550 = vrot.slane %v3536, %v3549
  %v3551 = vcombine.low %v3543, %v3550
  %v3552 = vcombine.low %v3343, %v3264
  %v3553 = vcombine.low %v3282, %v3306
  %v3555 = vunpack.c.l.s4 1983009808
  %v3556 = vunpack.c.0.s8 %v3555
  %v3557 = vlaneseq
  %v3558 = vshrl.u32 %v3557, 7
  %v3559 = vsub.s32 %v3556, %v3558
  %v3560 = vrot.slane %v3552, %v3559
  %v3562 = vunpack.c.l.s4 1983009808
  %v3563 = vunpack.c.0.s8 %v3562
  %v3564 = vlaneseq
  %v3565 = vshrl.u32 %v3564, 7
  %v3566 = vsub.s32 %v3563, %v3565
  %v3567 = vrot.slane %v3553, %v3566
  %v3568 = vcombine.low %v3560, %v3567
  %v3569 = vcombine.low %v3328, %v3346
  %v3570 = vcombine.low %v3266, %v3285
  %v3572 = vunpack.c.l.s4 1983009808
  %v3573 = vunpack.c.0.s8 %v3572
  %v3574 = vlaneseq
  %v3575 = vshrl.u32 %v3574, 7
  %v3576 = vsub.s32 %v3573, %v3575
  %v3577 = vrot.slane %v3569, %v3576
  %v3579 = vunpack.c.l.s4 1983009808
  %v3580 = vunpack.c.0.s8 %v3579
  %v3581 = vlaneseq
  %v3582 = vshrl.u32 %v3581, 7
  %v3583 = vsub.s32 %v3580, %v3582
  %v3584 = vrot.slane %v3570, %v3583
  %v3585 = vcombine.low %v3577, %v3584
  %v3587 = vunpack.c.l.s4 1983009808
  %v3588 = vunpack.c.0.s8 %v3587
  %v3589 = vlaneseq
  %v3590 = vshrl.u32 %v3589, 7
  %v3591 = vsub.s32 %v3588, %v3590
  %v3592 = vrot.slane %v3031, %v3591
  %v3593 = vcombine.low %v3264, %v3282
  %v3594 = vcombine.low %v3306, %v3328
  %v3596 = vunpack.c.l.s4 1983009808
  %v3597 = vunpack.c.0.s8 %v3596
  %v3598 = vlaneseq
  %v3599 = vshrl.u32 %v3598, 7
  %v3600 = vsub.s32 %v3597, %v3599
  %v3601 = vrot.slane %v3593, %v3600
  %v3603 = vunpack.c.l.s4 1983009808
  %v3604 = vunpack.c.0.s8 %v3603
  %v3605 = vlaneseq
  %v3606 = vshrl.u32 %v3605, 7
  %v3607 = vsub.s32 %v3604, %v3606
  %v3608 = vrot.slane %v3594, %v3607
  %v3609 = vcombine.low %v3601, %v3608
  %v3610 = vcombine.low %v3346, %v3266
  %v3611 = vcombine.low %v3285, %v3309
  %v3613 = vunpack.c.l.s4 1983009808
  %v3614 = vunpack.c.0.s8 %v3613
  %v3615 = vlaneseq
  %v3616 = vshrl.u32 %v3615, 7
  %v3617 = vsub.s32 %v3614, %v3616
  %v3618 = vrot.slane %v3610, %v3617
  %v3620 = vunpack.c.l.s4 1983009808
  %v3621 = vunpack.c.0.s8 %v3620
  %v3622 = vlaneseq
  %v3623 = vshrl.u32 %v3622, 7
  %v3624 = vsub.s32 %v3621, %v3623
  %v3625 = vrot.slane %v3611, %v3624
  %v3626 = vcombine.low %v3618, %v3625
  %v3627 = vcombine.low %v3330, %v3349
  %v3628 = vcombine.low %v3268, %v3288
  %v3630 = vunpack.c.l.s4 1983009808
  %v3631 = vunpack.c.0.s8 %v3630
  %v3632 = vlaneseq
  %v3633 = vshrl.u32 %v3632, 7
  %v3634 = vsub.s32 %v3631, %v3633
  %v3635 = vrot.slane %v3627, %v3634
  %v3637 = vunpack.c.l.s4 1983009808
  %v3638 = vunpack.c.0.s8 %v3637
  %v3639 = vlaneseq
  %v3640 = vshrl.u32 %v3639, 7
  %v3641 = vsub.s32 %v3638, %v3640
  %v3642 = vrot.slane %v3628, %v3641
  %v3643 = vcombine.low %v3635, %v3642
  %v3645 = vunpack.c.l.s4 1983009808
  %v3646 = vunpack.c.0.s8 %v3645
  %v3647 = vlaneseq
  %v3648 = vshrl.u32 %v3647, 7
  %v3649 = vsub.s32 %v3646, %v3648
  %v3650 = vrot.slane %v3032, %v3649
  %v3651 = vcombine.low %v3309, %v3330
  %v3653 = vunpack.c.l.s4 1983009808
  %v3654 = vunpack.c.0.s8 %v3653
  %v3655 = vlaneseq
  %v3656 = vshrl.u32 %v3655, 7
  %v3657 = vsub.s32 %v3654, %v3656
  %v3658 = vrot.slane %v3651, %v3657
  %v3659 = vcombine.low %v3584, %v3658
  %v3660 = vcombine.low %v3349, %v3268
  %v3661 = vcombine.low %v3288, %v3312
  %v3663 = vunpack.c.l.s4 1983009808
  %v3664 = vunpack.c.0.s8 %v3663
  %v3665 = vlaneseq
  %v3666 = vshrl.u32 %v3665, 7
  %v3667 = vsub.s32 %v3664, %v3666
  %v3668 = vrot.slane %v3660, %v3667
  %v3670 = vunpack.c.l.s4 1983009808
  %v3671 = vunpack.c.0.s8 %v3670
  %v3672 = vlaneseq
  %v3673 = vshrl.u32 %v3672, 7
  %v3674 = vsub.s32 %v3671, %v3673
  %v3675 = vrot.slane %v3661, %v3674
  %v3676 = vcombine.low %v3668, %v3675
  %v3677 = vcombine.low %v3332, %v3352
  %v3678 = vcombine.low %v3366, %v3371
  %v3680 = vunpack.c.l.s4 1983009808
  %v3681 = vunpack.c.0.s8 %v3680
  %v3682 = vlaneseq
  %v3683 = vshrl.u32 %v3682, 7
  %v3684 = vsub.s32 %v3681, %v3683
  %v3685 = vrot.slane %v3677, %v3684
  %v3687 = vunpack.c.l.s4 1983009808
  %v3688 = vunpack.c.0.s8 %v3687
  %v3689 = vlaneseq
  %v3690 = vshrl.u32 %v3689, 7
  %v3691 = vsub.s32 %v3688, %v3690
  %v3692 = vrot.slane %v3678, %v3691
  %v3693 = vcombine.low %v3685, %v3692
  %v3695 = vunpack.c.l.s4 1983009808
  %v3696 = vunpack.c.0.s8 %v3695
  %v3697 = vlaneseq
  %v3698 = vshrl.u32 %v3697, 7
  %v3699 = vsub.s32 %v3696, %v3698
  %v3700 = vrot.slane %v3253, %v3699
  %v3701 = vcombine.low %v3312, %v3332
  %v3703 = vunpack.c.l.s4 1983009808
  %v3704 = vunpack.c.0.s8 %v3703
  %v3705 = vlaneseq
  %v3706 = vshrl.u32 %v3705, 7
  %v3707 = vsub.s32 %v3704, %v3706
  %v3708 = vrot.slane %v3701, %v3707
  %v3709 = vcombine.low %v3642, %v3708
  %v3710 = vcombine.low %v3352, %v3366
  %v3711 = vcombine.low %v3371, %v3377
  %v3713 = vunpack.c.l.s4 1983009808
  %v3714 = vunpack.c.0.s8 %v3713
  %v3715 = vlaneseq
  %v3716 = vshrl.u32 %v3715, 7
  %v3717 = vsub.s32 %v3714, %v3716
  %v3718 = vrot.slane %v3710, %v3717
  %v3720 = vunpack.c.l.s4 1983009808
  %v3721 = vunpack.c.0.s8 %v3720
  %v3722 = vlaneseq
  %v3723 = vshrl.u32 %v3722, 7
  %v3724 = vsub.s32 %v3721, %v3723
  %v3725 = vrot.slane %v3711, %v3724
  %v3726 = vcombine.low %v3718, %v3725
  %v3727 = vcombine.low %v3462, %v3467
  %v3728 = vcombine.low %v3472, %v3477
  %v3730 = vunpack.c.l.s4 1983009808
  %v3731 = vunpack.c.0.s8 %v3730
  %v3732 = vlaneseq
  %v3733 = vshrl.u32 %v3732, 7
  %v3734 = vsub.s32 %v3731, %v3733
  %v3735 = vrot.slane %v3727, %v3734
  %v3737 = vunpack.c.l.s4 1983009808
  %v3738 = vunpack.c.0.s8 %v3737
  %v3739 = vlaneseq
  %v3740 = vshrl.u32 %v3739, 7
  %v3741 = vsub.s32 %v3738, %v3740
  %v3742 = vrot.slane %v3728, %v3741
  %v3743 = vcombine.low %v3735, %v3742
  %v3745 = vunpack.c.l.s4 1983009808
  %v3746 = vunpack.c.0.s8 %v3745
  %v3747 = vlaneseq
  %v3748 = vshrl.u32 %v3747, 7
  %v3749 = vsub.s32 %v3746, %v3748
  %v3750 = vrot.slane %v3459, %v3749
  %v3751 = vcombine.low %v3270, %v3291
  %v3752 = vcombine.low %v3315, %v3334
  %v3754 = vunpack.c.l.s4 1983009808
  %v3755 = vunpack.c.0.s8 %v3754
  %v3756 = vlaneseq
  %v3757 = vshrl.u32 %v3756, 7
  %v3758 = vsub.s32 %v3755, %v3757
  %v3759 = vrot.slane %v3751, %v3758
  %v3761 = vunpack.c.l.s4 1983009808
  %v3762 = vunpack.c.0.s8 %v3761
  %v3763 = vlaneseq
  %v3764 = vshrl.u32 %v3763, 7
  %v3765 = vsub.s32 %v3762, %v3764
  %v3766 = vrot.slane %v3752, %v3765
  %v3767 = vcombine.low %v3759, %v3766
  %v3768 = vcombine.low %v3355, %v3272
  %v3769 = vcombine.low %v3294, %v3318
  %v3771 = vunpack.c.l.s4 1983009808
  %v3772 = vunpack.c.0.s8 %v3771
  %v3773 = vlaneseq
  %v3774 = vshrl.u32 %v3773, 7
  %v3775 = vsub.s32 %v3772, %v3774
  %v3776 = vrot.slane %v3768, %v3775
  %v3778 = vunpack.c.l.s4 1983009808
  %v3779 = vunpack.c.0.s8 %v3778
  %v3780 = vlaneseq
  %v3781 = vshrl.u32 %v3780, 7
  %v3782 = vsub.s32 %v3779, %v3781
  %v3783 = vrot.slane %v3769, %v3782
  %v3784 = vcombine.low %v3776, %v3783
  %v3785 = vcombine.low %v3336, %v3358
  %v3786 = vcombine.low %v3274, %v3297
  %v3788 = vunpack.c.l.s4 1983009808
  %v3789 = vunpack.c.0.s8 %v3788
  %v3790 = vlaneseq
  %v3791 = vshrl.u32 %v3790, 7
  %v3792 = vsub.s32 %v3789, %v3791
  %v3793 = vrot.slane %v3785, %v3792
  %v3795 = vunpack.c.l.s4 1983009808
  %v3796 = vunpack.c.0.s8 %v3795
  %v3797 = vlaneseq
  %v3798 = vshrl.u32 %v3797, 7
  %v3799 = vsub.s32 %v3796, %v3798
  %v3800 = vrot.slane %v3786, %v3799
  %v3801 = vcombine.low %v3793, %v3800
  %v3803 = vunpack.c.l.s4 1983009808
  %v3804 = vunpack.c.0.s8 %v3803
  %v3805 = vlaneseq
  %v3806 = vshrl.u32 %v3805, 7
  %v3807 = vsub.s32 %v3804, %v3806
  %v3808 = vrot.slane %v3035, %v3807
  %v3809 = vcombine.low %v3272, %v3294
  %v3810 = vcombine.low %v3318, %v3336
  %v3812 = vunpack.c.l.s4 1983009808
  %v3813 = vunpack.c.0.s8 %v3812
  %v3814 = vlaneseq
  %v3815 = vshrl.u32 %v3814, 7
  %v3816 = vsub.s32 %v3813, %v3815
  %v3817 = vrot.slane %v3809, %v3816
  %v3819 = vunpack.c.l.s4 1983009808
  %v3820 = vunpack.c.0.s8 %v3819
  %v3821 = vlaneseq
  %v3822 = vshrl.u32 %v3821, 7
  %v3823 = vsub.s32 %v3820, %v3822
  %v3824 = vrot.slane %v3810, %v3823
  %v3825 = vcombine.low %v3817, %v3824
  %v3826 = vcombine.low %v3358, %v3274
  %v3827 = vcombine.low %v3297, %v3321
  %v3829 = vunpack.c.l.s4 1983009808
  %v3830 = vunpack.c.0.s8 %v3829
  %v3831 = vlaneseq
  %v3832 = vshrl.u32 %v3831, 7
  %v3833 = vsub.s32 %v3830, %v3832
  %v3834 = vrot.slane %v3826, %v3833
  %v3836 = vunpack.c.l.s4 1983009808
  %v3837 = vunpack.c.0.s8 %v3836
  %v3838 = vlaneseq
  %v3839 = vshrl.u32 %v3838, 7
  %v3840 = vsub.s32 %v3837, %v3839
  %v3841 = vrot.slane %v3827, %v3840
  %v3842 = vcombine.low %v3834, %v3841
  %v3843 = vcombine.low %v3338, %v3361
  %v3844 = vcombine.low %v3276, %v3300
  %v3846 = vunpack.c.l.s4 1983009808
  %v3847 = vunpack.c.0.s8 %v3846
  %v3848 = vlaneseq
  %v3849 = vshrl.u32 %v3848, 7
  %v3850 = vsub.s32 %v3847, %v3849
  %v3851 = vrot.slane %v3843, %v3850
  %v3853 = vunpack.c.l.s4 1983009808
  %v3854 = vunpack.c.0.s8 %v3853
  %v3855 = vlaneseq
  %v3856 = vshrl.u32 %v3855, 7
  %v3857 = vsub.s32 %v3854, %v3856
  %v3858 = vrot.slane %v3844, %v3857
  %v3859 = vcombine.low %v3851, %v3858
  %v3861 = vunpack.c.l.s4 1983009808
  %v3862 = vunpack.c.0.s8 %v3861
  %v3863 = vlaneseq
  %v3864 = vshrl.u32 %v3863, 7
  %v3865 = vsub.s32 %v3862, %v3864
  %v3866 = vrot.slane %v3036, %v3865
  %v3867 = vcombine.low %v3321, %v3338
  %v3869 = vunpack.c.l.s4 1983009808
  %v3870 = vunpack.c.0.s8 %v3869
  %v3871 = vlaneseq
  %v3872 = vshrl.u32 %v3871, 7
  %v3873 = vsub.s32 %v3870, %v3872
  %v3874 = vrot.slane %v3867, %v3873
  %v3875 = vcombine.low %v3800, %v3874
  %v3876 = vcombine.low %v3361, %v3276
  %v3877 = vcombine.low %v3300, %v3324
  %v3879 = vunpack.c.l.s4 1983009808
  %v3880 = vunpack.c.0.s8 %v3879
  %v3881 = vlaneseq
  %v3882 = vshrl.u32 %v3881, 7
  %v3883 = vsub.s32 %v3880, %v3882
  %v3884 = vrot.slane %v3876, %v3883
  %v3886 = vunpack.c.l.s4 1983009808
  %v3887 = vunpack.c.0.s8 %v3886
  %v3888 = vlaneseq
  %v3889 = vshrl.u32 %v3888, 7
  %v3890 = vsub.s32 %v3887, %v3889
  %v3891 = vrot.slane %v3877, %v3890
  %v3892 = vcombine.low %v3884, %v3891
  %v3893 = vcombine.low %v3340, %v3364
  %v3894 = vcombine.low %v3368, %v3374
  %v3896 = vunpack.c.l.s4 1983009808
  %v3897 = vunpack.c.0.s8 %v3896
  %v3898 = vlaneseq
  %v3899 = vshrl.u32 %v3898, 7
  %v3900 = vsub.s32 %v3897, %v3899
  %v3901 = vrot.slane %v3893, %v3900
  %v3903 = vunpack.c.l.s4 1983009808
  %v3904 = vunpack.c.0.s8 %v3903
  %v3905 = vlaneseq
  %v3906 = vshrl.u32 %v3905, 7
  %v3907 = vsub.s32 %v3904, %v3906
  %v3908 = vrot.slane %v3894, %v3907
  %v3909 = vcombine.low %v3901, %v3908
  %v3911 = vunpack.c.l.s4 1983009808
  %v3912 = vunpack.c.0.s8 %v3911
  %v3913 = vlaneseq
  %v3914 = vshrl.u32 %v3913, 7
  %v3915 = vsub.s32 %v3912, %v3914
  %v3916 = vrot.slane %v3254, %v3915
  %v3917 = vcombine.low %v3324, %v3340
  %v3919 = vunpack.c.l.s4 1983009808
  %v3920 = vunpack.c.0.s8 %v3919
  %v3921 = vlaneseq
  %v3922 = vshrl.u32 %v3921, 7
  %v3923 = vsub.s32 %v3920, %v3922
  %v3924 = vrot.slane %v3917, %v3923
  %v3925 = vcombine.low %v3858, %v3924
  %v3926 = vcombine.low %v3364, %v3368
  %v3927 = vcombine.low %v3374, %v3380
  %v3929 = vunpack.c.l.s4 1983009808
  %v3930 = vunpack.c.0.s8 %v3929
  %v3931 = vlaneseq
  %v3932 = vshrl.u32 %v3931, 7
  %v3933 = vsub.s32 %v3930, %v3932
  %v3934 = vrot.slane %v3926, %v3933
  %v3936 = vunpack.c.l.s4 1983009808
  %v3937 = vunpack.c.0.s8 %v3936
  %v3938 = vlaneseq
  %v3939 = vshrl.u32 %v3938, 7
  %v3940 = vsub.s32 %v3937, %v3939
  %v3941 = vrot.slane %v3927, %v3940
  %v3942 = vcombine.low %v3934, %v3941
  %v3943 = vcombine.low %v3464, %v3470
  %v3944 = vcombine.low %v3474, %v3480
  %v3946 = vunpack.c.l.s4 1983009808
  %v3947 = vunpack.c.0.s8 %v3946
  %v3948 = vlaneseq
  %v3949 = vshrl.u32 %v3948, 7
  %v3950 = vsub.s32 %v3947, %v3949
  %v3951 = vrot.slane %v3943, %v3950
  %v3953 = vunpack.c.l.s4 1983009808
  %v3954 = vunpack.c.0.s8 %v3953
  %v3955 = vlaneseq
  %v3956 = vshrl.u32 %v3955, 7
  %v3957 = vsub.s32 %v3954, %v3956
  %v3958 = vrot.slane %v3944, %v3957
  %v3959 = vcombine.low %v3951, %v3958
  %v3961 = vunpack.c.l.s4 1983009808
  %v3962 = vunpack.c.0.s8 %v3961
  %v3963 = vlaneseq
  %v3964 = vshrl.u32 %v3963, 7
  %v3965 = vsub.s32 %v3962, %v3964
  %v3966 = vrot.slane %v3460, %v3965
  %v3967 = vld [vmem:[%s3] sm:$0xf]
  %v3968 = vld [vmem:[%s3 + $0x4] sm:$0xf]
  %v3969 = vld [vmem:[%s3 + $0x8] sm:$0xf]
  %v3970 = vld [vmem:[%s3 + $0xc] sm:$0xf]
  %v3971 = vld [vmem:[%s3 + $0x10] sm:$0xf]
  %v3972 = vld [vmem:[%s3 + $0x14] sm:$0xf]
  %v3973 = vld [vmem:[%s3 + $0x18] sm:$0xf]
  %v3974 = vld [vmem:[%s3 + $0x1c] sm:$0xf]
  %v3975 = vld [vmem:[%s3 + $0x20] sm:$0xf]
  %v3976 = vld [vmem:[%s3 + $0x24] sm:$0xf]
  %v3977 = vld [vmem:[%s3 + $0x28] sm:$0xf]
  %v3978 = vld [vmem:[%s3 + $0x2c] sm:$0xf]
  %v3979 = vld [vmem:[%s3 + $0x30] sm:$0xf]
  %v3980 = vld [vmem:[%s3 + $0x34] sm:$0xf]
  %v3981 = vld [vmem:[%s3 + $0x38] sm:$0xf]
  %v3982 = vld [vmem:[%s3 + $0x3c] sm:$0xf]
  %v3983 = vld [vmem:[%s3 + $0x40] sm:$0xf]
  %v3984 = vld [vmem:[%s3 + $0x44] sm:$0xf]
  %v3985 = vld [vmem:[%s3 + $0x48] sm:$0xf]
  %v3986 = vld [vmem:[%s3 + $0x4c] sm:$0xf]
  %v3987 = vld [vmem:[%s3 + $0x50] sm:$0xf]
  %v3988 = vld [vmem:[%s3 + $0x54] sm:$0xf]
  %v3989 = vld [vmem:[%s3 + $0x58] sm:$0xf]
  %v3990 = vld [vmem:[%s3 + $0x5c] sm:$0xf]
  %v3991 = vld [vmem:[%s3 + $0x60] sm:$0xf]
  %v3992 = vld [vmem:[%s3 + $0x64] sm:$0xf]
  %v3993 = vld [vmem:[%s3 + $0x68] sm:$0xf]
  %v3994 = vld [vmem:[%s3 + $0x6c] sm:$0xf]
  %v3995 = vld [vmem:[%s3 + $0x70] sm:$0xf]
  %v3996 = vld [vmem:[%s3 + $0x74] sm:$0xf]
  %v3997 = vld [vmem:[%s3 + $0x78] sm:$0xf]
  %v3998 = vld [vmem:[%s3 + $0x7c] sm:$0xf]
  %v3999 = vld [vmem:[%s3 + $0x80] sm:$0xf]
  %v4000 = vld [vmem:[%s3 + $0x84] sm:$0xf]
  %v4001 = vld [vmem:[%s3 + $0x88] sm:$0xf]
  %v4002 = vld [vmem:[%s3 + $0x8c] sm:$0xf]
  %v4003 = vld [vmem:[%s3 + $0x90] sm:$0xf]
  %v4004 = vld [vmem:[%s3 + $0x94] sm:$0xf]
  %v4005 = vld [vmem:[%s3 + $0x98] sm:$0xf]
  %v4006 = vld [vmem:[%s3 + $0x9c] sm:$0xf]
  %v4007 = vld [vmem:[%s3 + $0xa0] sm:$0xf]
  %v4008 = vld [vmem:[%s3 + $0xa4] sm:$0xf]
  %v4009 = vld [vmem:[%s3 + $0xa8] sm:$0xf]
  %v4010 = vld [vmem:[%s3 + $0xac] sm:$0xf]
  %v4011 = vld [vmem:[%s3 + $0xb0] sm:$0xf]
  %v4012 = vld [vmem:[%s3 + $0xb4] sm:$0xf]
  %v4013 = vld [vmem:[%s3 + $0xb8] sm:$0xf]
  %v4014 = vld [vmem:[%s3 + $0xbc] sm:$0xf]
  %v4015 = vld [vmem:[%s3 + $0xc0] sm:$0xf]
  %v4016 = vld [vmem:[%s3 + $0xc4] sm:$0xf]
  %v4017 = vld [vmem:[%s3 + $0xc8] sm:$0xf]
  %v4018 = vld [vmem:[%s3 + $0xcc] sm:$0xf]
  %v4019 = vld [vmem:[%s3 + $0xd0] sm:$0xf]
  %v4020 = vld [vmem:[%s3 + $0xd4] sm:$0xf]
  %v4021 = vld [vmem:[%s3 + $0xd8] sm:$0xf]
  %v4022 = vld [vmem:[%s3 + $0xdc] sm:$0xf]
  %v4023 = vld [vmem:[%s3 + $0xe0] sm:$0xf]
  %v4024 = vld [vmem:[%s3 + $0xe4] sm:$0xf]
  %v4025 = vld [vmem:[%s3 + $0xe8] sm:$0xf]
  %v4026 = vld [vmem:[%s3 + $0xec] sm:$0xf]
  %v4027 = vld [vmem:[%s3 + $0xf0] sm:$0xf]
  %v4028 = vld [vmem:[%s3 + $0xf4] sm:$0xf]
  %v4029 = vld [vmem:[%s3 + $0xf8] sm:$0xf]
  %v4030 = vld [vmem:[%s3 + $0xfc] sm:$0xf]
  %v4031 = vld [vmem:[%s3 + $0x100] sm:$0xf]
  %v4032 = vld [vmem:[%s3 + $0x104] sm:$0xf]
  %v4033 = vld [vmem:[%s3 + $0x108] sm:$0xf]
  %v4034 = vld [vmem:[%s3 + $0x10c] sm:$0xf]
  %v4035 = vld [vmem:[%s3 + $0x110] sm:$0xf]
  %v4036 = vld [vmem:[%s3 + $0x114] sm:$0xf]
  %v4037 = vld [vmem:[%s3 + $0x118] sm:$0xf]
  %v4038 = vld [vmem:[%s3 + $0x11c] sm:$0xf]
  %v4039 = vld [vmem:[%s3 + $0x120] sm:$0xf]
  %v4040 = vld [vmem:[%s3 + $0x124] sm:$0xf]
  %v4041 = vld [vmem:[%s3 + $0x128] sm:$0xf]
  %v4042 = vld [vmem:[%s3 + $0x12c] sm:$0xf]
  %v4043 = vld [vmem:[%s3 + $0x130] sm:$0xf]
  %v4044 = vld [vmem:[%s3 + $0x134] sm:$0xf]
  %v4045 = vld [vmem:[%s3 + $0x138] sm:$0xf]
  %v4046 = vld [vmem:[%s3 + $0x13c] sm:$0xf]
  %v4047 = vld [vmem:[%s3 + $0x140] sm:$0xf]
  %v4048 = vld [vmem:[%s3 + $0x144] sm:$0xf]
  %v4049 = vld [vmem:[%s3 + $0x148] sm:$0xf]
  %v4050 = vld [vmem:[%s3 + $0x14c] sm:$0xf]
  %v4051 = vld [vmem:[%s3 + $0x150] sm:$0xf]
  %v4052 = vld [vmem:[%s3 + $0x154] sm:$0xf]
  %v4053 = vld [vmem:[%s3 + $0x158] sm:$0xf]
  %v4054 = vld [vmem:[%s3 + $0x15c] sm:$0xf]
  %v4055 = vld [vmem:[%s3 + $0x160] sm:$0xf]
  %v4056 = vld [vmem:[%s3 + $0x164] sm:$0xf]
  %v4057 = vld [vmem:[%s3 + $0x168] sm:$0xf]
  %v4058 = vld [vmem:[%s3 + $0x16c] sm:$0xf]
  %v4059 = vld [vmem:[%s3 + $0x170] sm:$0xf]
  %v4060 = vld [vmem:[%s3 + $0x174] sm:$0xf]
  %v4061 = vld [vmem:[%s3 + $0x178] sm:$0xf]
  %v4062 = vld [vmem:[%s3 + $0x17c] sm:$0xf]
  %v4063 = vld [vmem:[%s3 + $0x180] sm:$0xf]
  %v4064 = vld [vmem:[%s3 + $0x184] sm:$0xf]
  %v4065 = vld [vmem:[%s3 + $0x188] sm:$0xf]
  %v4066 = vld [vmem:[%s3 + $0x18c] sm:$0xf]
  %v4067 = vld [vmem:[%s3 + $0x190] sm:$0xf]
  %v4068 = vld [vmem:[%s3 + $0x194] sm:$0xf]
  %v4069 = vld [vmem:[%s3 + $0x198] sm:$0xf]
  %v4070 = vld [vmem:[%s3 + $0x19c] sm:$0xf]
  %v4071 = vld [vmem:[%s3 + $0x1a0] sm:$0xf]
  %v4072 = vld [vmem:[%s3 + $0x1a4] sm:$0xf]
  %v4073 = vld [vmem:[%s3 + $0x1a8] sm:$0xf]
  %v4074 = vld [vmem:[%s3 + $0x1ac] sm:$0xf]
  %v4075 = vld [vmem:[%s3 + $0x1b0] sm:$0xf]
  %v4076 = vld [vmem:[%s3 + $0x1b4] sm:$0xf]
  %v4077 = vld [vmem:[%s3 + $0x1b8] sm:$0xf]
  %v4078 = vld [vmem:[%s3 + $0x1bc] sm:$0xf]
  %v4079 = vld [vmem:[%s3 + $0x1c0] sm:$0xf]
  %v4080 = vld [vmem:[%s3 + $0x1c4] sm:$0xf]
  %v4081 = vld [vmem:[%s3 + $0x1c8] sm:$0xf]
  %v4082 = vld [vmem:[%s3 + $0x1cc] sm:$0xf]
  %v4083 = vld [vmem:[%s3 + $0x1d0] sm:$0xf]
  %v4084 = vld [vmem:[%s3 + $0x1d4] sm:$0xf]
  %v4085 = vld [vmem:[%s3 + $0x1d8] sm:$0xf]
  %v4086 = vld [vmem:[%s3 + $0x1dc] sm:$0xf]
  %v4087 = vld [vmem:[%s3 + $0x1e0] sm:$0xf]
  %v4088 = vld [vmem:[%s3 + $0x1e4] sm:$0xf]
  %v4089 = vld [vmem:[%s3 + $0x1e8] sm:$0xf]
  %v4090 = vld [vmem:[%s3 + $0x1ec] sm:$0xf]
  %v4091 = vld [vmem:[%s3 + $0x1f0] sm:$0xf]
  %v4092 = vld [vmem:[%s3 + $0x1f4] sm:$0xf]
  %v4093 = vld [vmem:[%s3 + $0x1f8] sm:$0xf]
  %v4094 = vld [vmem:[%s3 + $0x1fc] sm:$0xf]
  %v4095 = vld [vmem:[%s3 + $0x200] sm:$0xf]
  %v4096 = vld [vmem:[%s3 + $0x204] sm:$0xf]
  %v4097 = vld [vmem:[%s3 + $0x208] sm:$0xf]
  %v4098 = vld [vmem:[%s3 + $0x20c] sm:$0xf]
  %v4099 = vld [vmem:[%s3 + $0x210] sm:$0xf]
  %v4100 = vld [vmem:[%s3 + $0x214] sm:$0xf]
  %v4101 = vld [vmem:[%s3 + $0x218] sm:$0xf]
  %v4102 = vld [vmem:[%s3 + $0x21c] sm:$0xf]
  %v4103 = vld [vmem:[%s3 + $0x220] sm:$0xf]
  %v4104 = vld [vmem:[%s3 + $0x224] sm:$0xf]
  %v4105 = vld [vmem:[%s3 + $0x228] sm:$0xf]
  %v4106 = vld [vmem:[%s3 + $0x22c] sm:$0xf]
  %v4107 = vld [vmem:[%s3 + $0x230] sm:$0xf]
  %v4108 = vld [vmem:[%s3 + $0x234] sm:$0xf]
  %v4109 = vld [vmem:[%s3 + $0x238] sm:$0xf]
  %v4110 = vld [vmem:[%s3 + $0x23c] sm:$0xf]
  %v4111 = vld [vmem:[%s3 + $0x240] sm:$0xf]
  %v4112 = vld [vmem:[%s3 + $0x244] sm:$0xf]
  %v4113 = vld [vmem:[%s3 + $0x248] sm:$0xf]
  %v4114 = vld [vmem:[%s3 + $0x24c] sm:$0xf]
  %v4115 = vld [vmem:[%s3 + $0x250] sm:$0xf]
  %v4116 = vld [vmem:[%s3 + $0x254] sm:$0xf]
  %v4117 = vld [vmem:[%s3 + $0x258] sm:$0xf]
  %v4118 = vld [vmem:[%s3 + $0x25c] sm:$0xf]
  %v4119 = vld [vmem:[%s3 + $0x260] sm:$0xf]
  %v4120 = vld [vmem:[%s3 + $0x264] sm:$0xf]
  %v4121 = vld [vmem:[%s3 + $0x268] sm:$0xf]
  %v4122 = vld [vmem:[%s3 + $0x26c] sm:$0xf]
  %v4123 = vld [vmem:[%s3 + $0x270] sm:$0xf]
  %v4124 = vld [vmem:[%s3 + $0x274] sm:$0xf]
  %v4125 = vld [vmem:[%s3 + $0x278] sm:$0xf]
  %v4126 = vld [vmem:[%s3 + $0x27c] sm:$0xf]
  %v4127 = vld [vmem:[%s3 + $0x280] sm:$0xf]
  %v4128 = vld [vmem:[%s3 + $0x284] sm:$0xf]
  %v4129 = vld [vmem:[%s3 + $0x288] sm:$0xf]
  %v4130 = vld [vmem:[%s3 + $0x28c] sm:$0xf]
  %v4131 = vld [vmem:[%s3 + $0x290] sm:$0xf]
  %v4132 = vld [vmem:[%s3 + $0x294] sm:$0xf]
  %v4133 = vld [vmem:[%s3 + $0x298] sm:$0xf]
  %v4134 = vld [vmem:[%s3 + $0x29c] sm:$0xf]
  %v4135 = vld [vmem:[%s3 + $0x2a0] sm:$0xf]
  %v4136 = vld [vmem:[%s3 + $0x2a4] sm:$0xf]
  %v4137 = vld [vmem:[%s3 + $0x2a8] sm:$0xf]
  %v4138 = vld [vmem:[%s3 + $0x2ac] sm:$0xf]
  %v4139 = vld [vmem:[%s3 + $0x2b0] sm:$0xf]
  %v4140 = vld [vmem:[%s3 + $0x2b4] sm:$0xf]
  %v4141 = vld [vmem:[%s3 + $0x2b8] sm:$0xf]
  %v4142 = vld [vmem:[%s3 + $0x2bc] sm:$0xf]
  %v4143 = vld [vmem:[%s3 + $0x2c0] sm:$0xf]
  %v4144 = vld [vmem:[%s3 + $0x2c4] sm:$0xf]
  %v4145 = vld [vmem:[%s3 + $0x2c8] sm:$0xf]
  %v4146 = vld [vmem:[%s3 + $0x2cc] sm:$0xf]
  %v4147 = vld [vmem:[%s3 + $0x2d0] sm:$0xf]
  %v4148 = vld [vmem:[%s3 + $0x2d4] sm:$0xf]
  %v4149 = vld [vmem:[%s3 + $0x2d8] sm:$0xf]
  %v4150 = vld [vmem:[%s3 + $0x2dc] sm:$0xf]
  %v4151 = vld [vmem:[%s3 + $0x2e0] sm:$0xf]
  %v4152 = vld [vmem:[%s3 + $0x2e4] sm:$0xf]
  %v4153 = vld [vmem:[%s3 + $0x2e8] sm:$0xf]
  %v4154 = vld [vmem:[%s3 + $0x2ec] sm:$0xf]
  %v4155 = vld [vmem:[%s3 + $0x2f0] sm:$0xf]
  %v4156 = vld [vmem:[%s3 + $0x2f4] sm:$0xf]
  %v4157 = vld [vmem:[%s3 + $0x2f8] sm:$0xf]
  %v4158 = vld [vmem:[%s3 + $0x2fc] sm:$0xf]
  %v4159 = vld [vmem:[%s3 + $0x300] sm:$0xf]
  %v4160 = vld [vmem:[%s3 + $0x304] sm:$0xf]
  %v4161 = vld [vmem:[%s3 + $0x308] sm:$0xf]
  %v4162 = vld [vmem:[%s3 + $0x30c] sm:$0xf]
  %v4163 = vld [vmem:[%s3 + $0x310] sm:$0xf]
  %v4164 = vld [vmem:[%s3 + $0x314] sm:$0xf]
  %v4165 = vld [vmem:[%s3 + $0x318] sm:$0xf]
  %v4166 = vld [vmem:[%s3 + $0x31c] sm:$0xf]
  %v4167 = vld [vmem:[%s4] sm:$0x1]
  %v4169 = vlaneseq
  %v4170 = vshrl.u32 %v4169, 7
  %v4171 = vsub.s32 0, %v4170
  %v4172 = vrot.slane %v4167, %v4171
  %v4174 = vcombine.low %v3551, %v3609
  %v4175 = vcombine.high %v3551, %v3609
  %v4176 = vcombine.low %v3659, %v3709
  %v4177 = vcombine.high %v3659, %v3709
  %v4179 = vunpack.c.l.s4 1983009808
  %v4180 = vunpack.c.0.s8 %v4179
  %v4181 = vlaneseq
  %v4182 = vshrl.u32 %v4181, 7
  %v4183 = vsub.s32 %v4180, %v4182
  %v4184 = vrot.slane %v4174, %v4183
  %v4186 = vunpack.c.l.s4 1983009808
  %v4187 = vunpack.c.0.s8 %v4186
  %v4188 = vlaneseq
  %v4189 = vshrl.u32 %v4188, 7
  %v4190 = vsub.s32 %v4187, %v4189
  %v4191 = vrot.slane %v4175, %v4190
  %v4193 = vunpack.c.l.s4 1983009808
  %v4194 = vunpack.c.0.s8 %v4193
  %v4195 = vlaneseq
  %v4196 = vshrl.u32 %v4195, 7
  %v4197 = vsub.s32 %v4194, %v4196
  %v4198 = vrot.slane %v4176, %v4197
  %v4200 = vunpack.c.l.s4 1983009808
  %v4201 = vunpack.c.0.s8 %v4200
  %v4202 = vlaneseq
  %v4203 = vshrl.u32 %v4202, 7
  %v4204 = vsub.s32 %v4201, %v4203
  %v4205 = vrot.slane %v4177, %v4204
  %v4206 = vcombine.low %v4184, %v4198
  %v4207 = vcombine.high %v4184, %v4198
  %v4208 = vcombine.low %v4191, %v4205
  %v4209 = vcombine.high %v4191, %v4205
  %v4210 = vcombine.low %v3568, %v3626
  %v4211 = vcombine.high %v3568, %v3626
  %v4212 = vcombine.low %v3676, %v3726
  %v4213 = vcombine.high %v3676, %v3726
  %v4215 = vunpack.c.l.s4 1983009808
  %v4216 = vunpack.c.0.s8 %v4215
  %v4217 = vlaneseq
  %v4218 = vshrl.u32 %v4217, 7
  %v4219 = vsub.s32 %v4216, %v4218
  %v4220 = vrot.slane %v4210, %v4219
  %v4222 = vunpack.c.l.s4 1983009808
  %v4223 = vunpack.c.0.s8 %v4222
  %v4224 = vlaneseq
  %v4225 = vshrl.u32 %v4224, 7
  %v4226 = vsub.s32 %v4223, %v4225
  %v4227 = vrot.slane %v4211, %v4226
  %v4229 = vunpack.c.l.s4 1983009808
  %v4230 = vunpack.c.0.s8 %v4229
  %v4231 = vlaneseq
  %v4232 = vshrl.u32 %v4231, 7
  %v4233 = vsub.s32 %v4230, %v4232
  %v4234 = vrot.slane %v4212, %v4233
  %v4236 = vunpack.c.l.s4 1983009808
  %v4237 = vunpack.c.0.s8 %v4236
  %v4238 = vlaneseq
  %v4239 = vshrl.u32 %v4238, 7
  %v4240 = vsub.s32 %v4237, %v4239
  %v4241 = vrot.slane %v4213, %v4240
  %v4242 = vcombine.low %v4220, %v4234
  %v4243 = vcombine.high %v4220, %v4234
  %v4244 = vcombine.low %v4227, %v4241
  %v4245 = vcombine.high %v4227, %v4241
  %v4246 = vcombine.low %v3585, %v3643
  %v4247 = vcombine.high %v3585, %v3643
  %v4248 = vcombine.low %v3693, %v3743
  %v4249 = vcombine.high %v3693, %v3743
  %v4251 = vunpack.c.l.s4 1983009808
  %v4252 = vunpack.c.0.s8 %v4251
  %v4253 = vlaneseq
  %v4254 = vshrl.u32 %v4253, 7
  %v4255 = vsub.s32 %v4252, %v4254
  %v4256 = vrot.slane %v4246, %v4255
  %v4258 = vunpack.c.l.s4 1983009808
  %v4259 = vunpack.c.0.s8 %v4258
  %v4260 = vlaneseq
  %v4261 = vshrl.u32 %v4260, 7
  %v4262 = vsub.s32 %v4259, %v4261
  %v4263 = vrot.slane %v4247, %v4262
  %v4265 = vunpack.c.l.s4 1983009808
  %v4266 = vunpack.c.0.s8 %v4265
  %v4267 = vlaneseq
  %v4268 = vshrl.u32 %v4267, 7
  %v4269 = vsub.s32 %v4266, %v4268
  %v4270 = vrot.slane %v4248, %v4269
  %v4272 = vunpack.c.l.s4 1983009808
  %v4273 = vunpack.c.0.s8 %v4272
  %v4274 = vlaneseq
  %v4275 = vshrl.u32 %v4274, 7
  %v4276 = vsub.s32 %v4273, %v4275
  %v4277 = vrot.slane %v4249, %v4276
  %v4278 = vcombine.low %v4256, %v4270
  %v4279 = vcombine.high %v4256, %v4270
  %v4280 = vcombine.low %v4263, %v4277
  %v4281 = vcombine.high %v4263, %v4277
  %v4282 = vcombine.low %v3592, %v3650
  %v4283 = vcombine.low %v3700, %v3750
  %v4285 = vunpack.c.l.s4 1983009808
  %v4286 = vunpack.c.0.s8 %v4285
  %v4287 = vlaneseq
  %v4288 = vshrl.u32 %v4287, 7
  %v4289 = vsub.s32 %v4286, %v4288
  %v4290 = vrot.slane %v4282, %v4289
  %v4292 = vunpack.c.l.s4 1983009808
  %v4293 = vunpack.c.0.s8 %v4292
  %v4294 = vlaneseq
  %v4295 = vshrl.u32 %v4294, 7
  %v4296 = vsub.s32 %v4293, %v4295
  %v4297 = vrot.slane %v4283, %v4296
  %v4298 = vcombine.low %v4290, %v4297
  %v4299 = vcombine.low %v3767, %v3825
  %v4300 = vcombine.high %v3767, %v3825
  %v4301 = vcombine.low %v3875, %v3925
  %v4302 = vcombine.high %v3875, %v3925
  %v4304 = vunpack.c.l.s4 1983009808
  %v4305 = vunpack.c.0.s8 %v4304
  %v4306 = vlaneseq
  %v4307 = vshrl.u32 %v4306, 7
  %v4308 = vsub.s32 %v4305, %v4307
  %v4309 = vrot.slane %v4299, %v4308
  %v4311 = vunpack.c.l.s4 1983009808
  %v4312 = vunpack.c.0.s8 %v4311
  %v4313 = vlaneseq
  %v4314 = vshrl.u32 %v4313, 7
  %v4315 = vsub.s32 %v4312, %v4314
  %v4316 = vrot.slane %v4300, %v4315
  %v4318 = vunpack.c.l.s4 1983009808
  %v4319 = vunpack.c.0.s8 %v4318
  %v4320 = vlaneseq
  %v4321 = vshrl.u32 %v4320, 7
  %v4322 = vsub.s32 %v4319, %v4321
  %v4323 = vrot.slane %v4301, %v4322
  %v4325 = vunpack.c.l.s4 1983009808
  %v4326 = vunpack.c.0.s8 %v4325
  %v4327 = vlaneseq
  %v4328 = vshrl.u32 %v4327, 7
  %v4329 = vsub.s32 %v4326, %v4328
  %v4330 = vrot.slane %v4302, %v4329
  %v4331 = vcombine.low %v4309, %v4323
  %v4332 = vcombine.high %v4309, %v4323
  %v4333 = vcombine.low %v4316, %v4330
  %v4334 = vcombine.high %v4316, %v4330
  %v4335 = vcombine.low %v3784, %v3842
  %v4336 = vcombine.high %v3784, %v3842
  %v4337 = vcombine.low %v3892, %v3942
  %v4338 = vcombine.high %v3892, %v3942
  %v4340 = vunpack.c.l.s4 1983009808
  %v4341 = vunpack.c.0.s8 %v4340
  %v4342 = vlaneseq
  %v4343 = vshrl.u32 %v4342, 7
  %v4344 = vsub.s32 %v4341, %v4343
  %v4345 = vrot.slane %v4335, %v4344
  %v4347 = vunpack.c.l.s4 1983009808
  %v4348 = vunpack.c.0.s8 %v4347
  %v4349 = vlaneseq
  %v4350 = vshrl.u32 %v4349, 7
  %v4351 = vsub.s32 %v4348, %v4350
  %v4352 = vrot.slane %v4336, %v4351
  %v4354 = vunpack.c.l.s4 1983009808
  %v4355 = vunpack.c.0.s8 %v4354
  %v4356 = vlaneseq
  %v4357 = vshrl.u32 %v4356, 7
  %v4358 = vsub.s32 %v4355, %v4357
  %v4359 = vrot.slane %v4337, %v4358
  %v4361 = vunpack.c.l.s4 1983009808
  %v4362 = vunpack.c.0.s8 %v4361
  %v4363 = vlaneseq
  %v4364 = vshrl.u32 %v4363, 7
  %v4365 = vsub.s32 %v4362, %v4364
  %v4366 = vrot.slane %v4338, %v4365
  %v4367 = vcombine.low %v4345, %v4359
  %v4368 = vcombine.high %v4345, %v4359
  %v4369 = vcombine.low %v4352, %v4366
  %v4370 = vcombine.high %v4352, %v4366
  %v4371 = vcombine.low %v3801, %v3859
  %v4372 = vcombine.high %v3801, %v3859
  %v4373 = vcombine.low %v3909, %v3959
  %v4374 = vcombine.high %v3909, %v3959
  %v4376 = vunpack.c.l.s4 1983009808
  %v4377 = vunpack.c.0.s8 %v4376
  %v4378 = vlaneseq
  %v4379 = vshrl.u32 %v4378, 7
  %v4380 = vsub.s32 %v4377, %v4379
  %v4381 = vrot.slane %v4371, %v4380
  %v4383 = vunpack.c.l.s4 1983009808
  %v4384 = vunpack.c.0.s8 %v4383
  %v4385 = vlaneseq
  %v4386 = vshrl.u32 %v4385, 7
  %v4387 = vsub.s32 %v4384, %v4386
  %v4388 = vrot.slane %v4372, %v4387
  %v4390 = vunpack.c.l.s4 1983009808
  %v4391 = vunpack.c.0.s8 %v4390
  %v4392 = vlaneseq
  %v4393 = vshrl.u32 %v4392, 7
  %v4394 = vsub.s32 %v4391, %v4393
  %v4395 = vrot.slane %v4373, %v4394
  %v4397 = vunpack.c.l.s4 1983009808
  %v4398 = vunpack.c.0.s8 %v4397
  %v4399 = vlaneseq
  %v4400 = vshrl.u32 %v4399, 7
  %v4401 = vsub.s32 %v4398, %v4400
  %v4402 = vrot.slane %v4374, %v4401
  %v4403 = vcombine.low %v4381, %v4395
  %v4404 = vcombine.high %v4381, %v4395
  %v4405 = vcombine.low %v4388, %v4402
  %v4406 = vcombine.high %v4388, %v4402
  %v4407 = vcombine.low %v3808, %v3866
  %v4408 = vcombine.low %v3916, %v3966
  %v4410 = vunpack.c.l.s4 1983009808
  %v4411 = vunpack.c.0.s8 %v4410
  %v4412 = vlaneseq
  %v4413 = vshrl.u32 %v4412, 7
  %v4414 = vsub.s32 %v4411, %v4413
  %v4415 = vrot.slane %v4407, %v4414
  %v4417 = vunpack.c.l.s4 1983009808
  %v4418 = vunpack.c.0.s8 %v4417
  %v4419 = vlaneseq
  %v4420 = vshrl.u32 %v4419, 7
  %v4421 = vsub.s32 %v4418, %v4420
  %v4422 = vrot.slane %v4408, %v4421
  %v4423 = vcombine.low %v4415, %v4422
  %v4648 = vunpack.c.l.b16 %v3967
  %v4649 = vunpack.c.l.b16 %v3968
  %v4650 = vunpack.c.l.b16 %v3969
  %v4651 = vunpack.c.l.b16 %v3970
  %v4652 = vunpack.c.l.b16 %v3971
  %v4653 = vunpack.c.l.b16 %v3972
  %v4654 = vunpack.c.l.b16 %v3973
  %v4655 = vunpack.c.l.b16 %v3974
  %v4656 = vunpack.c.l.b16 %v3975
  %v4657 = vunpack.c.l.b16 %v3976
  %v4658 = vunpack.c.l.b16 %v3977
  %v4659 = vunpack.c.l.b16 %v3978
  %v4660 = vunpack.c.l.b16 %v3979
  %v4661 = vunpack.c.l.b16 %v3980
  %v4662 = vunpack.c.l.b16 %v3981
  %v4663 = vunpack.c.l.b16 %v3982
  %v4664 = vunpack.c.l.b16 %v3983
  %v4665 = vunpack.c.l.b16 %v3984
  %v4666 = vunpack.c.l.b16 %v3985
  %v4667 = vunpack.c.l.b16 %v3986
  %v4668 = vunpack.c.l.b16 %v3987
  %v4669 = vunpack.c.l.b16 %v3988
  %v4670 = vunpack.c.l.b16 %v3989
  %v4671 = vunpack.c.l.b16 %v3990
  %v4672 = vunpack.c.l.b16 %v3991
  %v4673 = vunpack.c.l.b16 %v3992
  %v4674 = vunpack.c.l.b16 %v3993
  %v4675 = vunpack.c.l.b16 %v3994
  %v4676 = vunpack.c.l.b16 %v3995
  %v4677 = vunpack.c.l.b16 %v3996
  %v4678 = vunpack.c.l.b16 %v3997
  %v4679 = vunpack.c.l.b16 %v3998
  %v4680 = vunpack.c.l.b16 %v3999
  %v4681 = vunpack.c.l.b16 %v4000
  %v4682 = vunpack.c.l.b16 %v4001
  %v4683 = vunpack.c.l.b16 %v4002
  %v4684 = vunpack.c.l.b16 %v4003
  %v4685 = vunpack.c.l.b16 %v4004
  %v4686 = vunpack.c.l.b16 %v4005
  %v4687 = vunpack.c.l.b16 %v4006
  %v4688 = vunpack.c.l.b16 %v4007
  %v4689 = vunpack.c.l.b16 %v4008
  %v4690 = vunpack.c.l.b16 %v4009
  %v4691 = vunpack.c.l.b16 %v4010
  %v4692 = vunpack.c.l.b16 %v4011
  %v4693 = vunpack.c.l.b16 %v4012
  %v4694 = vunpack.c.l.b16 %v4013
  %v4695 = vunpack.c.l.b16 %v4014
  %v4696 = vunpack.c.l.b16 %v4015
  %v4697 = vunpack.c.l.b16 %v4016
  %v4698 = vunpack.c.l.b16 %v4017
  %v4699 = vunpack.c.l.b16 %v4018
  %v4700 = vunpack.c.l.b16 %v4019
  %v4701 = vunpack.c.l.b16 %v4020
  %v4702 = vunpack.c.l.b16 %v4021
  %v4703 = vunpack.c.l.b16 %v4022
  %v4704 = vunpack.c.l.b16 %v4023
  %v4705 = vunpack.c.l.b16 %v4024
  %v4706 = vunpack.c.l.b16 %v4025
  %v4707 = vunpack.c.l.b16 %v4026
  %v4708 = vunpack.c.l.b16 %v4027
  %v4709 = vunpack.c.l.b16 %v4028
  %v4710 = vunpack.c.l.b16 %v4029
  %v4711 = vunpack.c.l.b16 %v4030
  %v4712 = vunpack.c.l.b16 %v4031
  %v4713 = vunpack.c.l.b16 %v4032
  %v4714 = vunpack.c.l.b16 %v4033
  %v4715 = vunpack.c.l.b16 %v4034
  %v4716 = vunpack.c.l.b16 %v4035
  %v4717 = vunpack.c.l.b16 %v4036
  %v4718 = vunpack.c.l.b16 %v4037
  %v4719 = vunpack.c.l.b16 %v4038
  %v4720 = vunpack.c.l.b16 %v4039
  %v4721 = vunpack.c.l.b16 %v4040
  %v4722 = vunpack.c.l.b16 %v4041
  %v4723 = vunpack.c.l.b16 %v4042
  %v4724 = vunpack.c.l.b16 %v4043
  %v4725 = vunpack.c.l.b16 %v4044
  %v4726 = vunpack.c.l.b16 %v4045
  %v4727 = vunpack.c.l.b16 %v4046
  %v4728 = vunpack.c.l.b16 %v4047
  %v4729 = vunpack.c.l.b16 %v4048
  %v4730 = vunpack.c.l.b16 %v4049
  %v4731 = vunpack.c.l.b16 %v4050
  %v4732 = vunpack.c.l.b16 %v4051
  %v4733 = vunpack.c.l.b16 %v4052
  %v4734 = vunpack.c.l.b16 %v4053
  %v4735 = vunpack.c.l.b16 %v4054
  %v4736 = vunpack.c.l.b16 %v4055
  %v4737 = vunpack.c.l.b16 %v4056
  %v4738 = vunpack.c.l.b16 %v4057
  %v4739 = vunpack.c.l.b16 %v4058
  %v4740 = vunpack.c.l.b16 %v4059
  %v4741 = vunpack.c.l.b16 %v4060
  %v4742 = vunpack.c.l.b16 %v4061
  %v4743 = vunpack.c.l.b16 %v4062
  %v4744 = vunpack.c.l.b16 %v4063
  %v4745 = vunpack.c.l.b16 %v4064
  %v4746 = vunpack.c.l.b16 %v4065
  %v4747 = vunpack.c.l.b16 %v4066
  %v4748 = vunpack.c.l.b16 %v4067
  %v4749 = vunpack.c.l.b16 %v4068
  %v4750 = vunpack.c.l.b16 %v4069
  %v4751 = vunpack.c.l.b16 %v4070
  %v4752 = vunpack.c.l.b16 %v4071
  %v4753 = vunpack.c.l.b16 %v4072
  %v4754 = vunpack.c.l.b16 %v4073
  %v4755 = vunpack.c.l.b16 %v4074
  %v4756 = vunpack.c.l.b16 %v4075
  %v4757 = vunpack.c.l.b16 %v4076
  %v4758 = vunpack.c.l.b16 %v4077
  %v4759 = vunpack.c.l.b16 %v4078
  %v4760 = vunpack.c.l.b16 %v4079
  %v4761 = vunpack.c.l.b16 %v4080
  %v4762 = vunpack.c.l.b16 %v4081
  %v4763 = vunpack.c.l.b16 %v4082
  %v4764 = vunpack.c.l.b16 %v4083
  %v4765 = vunpack.c.l.b16 %v4084
  %v4766 = vunpack.c.l.b16 %v4085
  %v4767 = vunpack.c.l.b16 %v4086
  %v4768 = vunpack.c.l.b16 %v4087
  %v4769 = vunpack.c.l.b16 %v4088
  %v4770 = vunpack.c.l.b16 %v4089
  %v4771 = vunpack.c.l.b16 %v4090
  %v4772 = vunpack.c.l.b16 %v4091
  %v4773 = vunpack.c.l.b16 %v4092
  %v4774 = vunpack.c.l.b16 %v4093
  %v4775 = vunpack.c.l.b16 %v4094
  %v4776 = vunpack.c.l.b16 %v4095
  %v4777 = vunpack.c.l.b16 %v4096
  %v4778 = vunpack.c.l.b16 %v4097
  %v4779 = vunpack.c.l.b16 %v4098
  %v4780 = vunpack.c.l.b16 %v4099
  %v4781 = vunpack.c.l.b16 %v4100
  %v4782 = vunpack.c.l.b16 %v4101
  %v4783 = vunpack.c.l.b16 %v4102
  %v4784 = vunpack.c.l.b16 %v4103
  %v4785 = vunpack.c.l.b16 %v4104
  %v4786 = vunpack.c.l.b16 %v4105
  %v4787 = vunpack.c.l.b16 %v4106
  %v4788 = vunpack.c.l.b16 %v4107
  %v4789 = vunpack.c.l.b16 %v4108
  %v4790 = vunpack.c.l.b16 %v4109
  %v4791 = vunpack.c.l.b16 %v4110
  %v4792 = vunpack.c.l.b16 %v4111
  %v4793 = vunpack.c.l.b16 %v4112
  %v4794 = vunpack.c.l.b16 %v4113
  %v4795 = vunpack.c.l.b16 %v4114
  %v4796 = vunpack.c.l.b16 %v4115
  %v4797 = vunpack.c.l.b16 %v4116
  %v4798 = vunpack.c.l.b16 %v4117
  %v4799 = vunpack.c.l.b16 %v4118
  %v4800 = vunpack.c.l.b16 %v4119
  %v4801 = vunpack.c.l.b16 %v4120
  %v4802 = vunpack.c.l.b16 %v4121
  %v4803 = vunpack.c.l.b16 %v4122
  %v4804 = vunpack.c.l.b16 %v4123
  %v4805 = vunpack.c.l.b16 %v4124
  %v4806 = vunpack.c.l.b16 %v4125
  %v4807 = vunpack.c.l.b16 %v4126
  %v4808 = vunpack.c.l.b16 %v4127
  %v4809 = vunpack.c.l.b16 %v4128
  %v4810 = vunpack.c.l.b16 %v4129
  %v4811 = vunpack.c.l.b16 %v4130
  %v4812 = vunpack.c.l.b16 %v4131
  %v4813 = vunpack.c.l.b16 %v4132
  %v4814 = vunpack.c.l.b16 %v4133
  %v4815 = vunpack.c.l.b16 %v4134
  %v4816 = vunpack.c.l.b16 %v4135
  %v4817 = vunpack.c.l.b16 %v4136
  %v4818 = vunpack.c.l.b16 %v4137
  %v4819 = vunpack.c.l.b16 %v4138
  %v4820 = vunpack.c.l.b16 %v4139
  %v4821 = vunpack.c.l.b16 %v4140
  %v4822 = vunpack.c.l.b16 %v4141
  %v4823 = vunpack.c.l.b16 %v4142
  %v4824 = vunpack.c.l.b16 %v4143
  %v4825 = vunpack.c.l.b16 %v4144
  %v4826 = vunpack.c.l.b16 %v4145
  %v4827 = vunpack.c.l.b16 %v4146
  %v4828 = vunpack.c.l.b16 %v4147
  %v4829 = vunpack.c.l.b16 %v4148
  %v4830 = vunpack.c.l.b16 %v4149
  %v4831 = vunpack.c.l.b16 %v4150
  %v4832 = vunpack.c.l.b16 %v4151
  %v4833 = vunpack.c.l.b16 %v4152
  %v4834 = vunpack.c.l.b16 %v4153
  %v4835 = vunpack.c.l.b16 %v4154
  %v4836 = vunpack.c.l.b16 %v4155
  %v4837 = vunpack.c.l.b16 %v4156
  %v4838 = vunpack.c.l.b16 %v4157
  %v4839 = vunpack.c.l.b16 %v4158
  %v4840 = vunpack.c.l.b16 %v4159
  %v4841 = vunpack.c.l.b16 %v4160
  %v4842 = vunpack.c.l.b16 %v4161
  %v4843 = vunpack.c.l.b16 %v4162
  %v4844 = vunpack.c.l.b16 %v4163
  %v4845 = vunpack.c.l.b16 %v4164
  %v4846 = vunpack.c.l.b16 %v4165
  %v4847 = vunpack.c.l.b16 %v4166
  %v4848 = vpack.c.b16 %v4649, %v4648
  %v4849 = vpack.c.b16 %v4651, %v4650
  %v4850 = vpack.c.b16 %v4653, %v4652
  %v4851 = vpack.c.b16 %v4655, %v4654
  %v4852 = vpack.c.b16 %v4657, %v4656
  %v4853 = vpack.c.b16 %v4659, %v4658
  %v4854 = vpack.c.b16 %v4661, %v4660
  %v4855 = vpack.c.b16 %v4663, %v4662
  %v4856 = vpack.c.b16 %v4665, %v4664
  %v4857 = vpack.c.b16 %v4667, %v4666
  %v4858 = vpack.c.b16 %v4669, %v4668
  %v4859 = vpack.c.b16 %v4671, %v4670
  %v4860 = vpack.c.b16 %v4673, %v4672
  %v4861 = vpack.c.b16 %v4675, %v4674
  %v4862 = vpack.c.b16 %v4677, %v4676
  %v4863 = vpack.c.b16 %v4679, %v4678
  %v4864 = vpack.c.b16 %v4681, %v4680
  %v4865 = vpack.c.b16 %v4683, %v4682
  %v4866 = vpack.c.b16 %v4685, %v4684
  %v4867 = vpack.c.b16 %v4687, %v4686
  %v4868 = vpack.c.b16 %v4689, %v4688
  %v4869 = vpack.c.b16 %v4691, %v4690
  %v4870 = vpack.c.b16 %v4693, %v4692
  %v4871 = vpack.c.b16 %v4695, %v4694
  %v4872 = vpack.c.b16 %v4697, %v4696
  %v4873 = vpack.c.b16 %v4699, %v4698
  %v4874 = vpack.c.b16 %v4701, %v4700
  %v4875 = vpack.c.b16 %v4703, %v4702
  %v4876 = vpack.c.b16 %v4705, %v4704
  %v4877 = vpack.c.b16 %v4707, %v4706
  %v4878 = vpack.c.b16 %v4709, %v4708
  %v4879 = vpack.c.b16 %v4711, %v4710
  %v4880 = vpack.c.b16 %v4713, %v4712
  %v4881 = vpack.c.b16 %v4715, %v4714
  %v4882 = vpack.c.b16 %v4717, %v4716
  %v4883 = vpack.c.b16 %v4719, %v4718
  %v4884 = vpack.c.b16 %v4721, %v4720
  %v4885 = vpack.c.b16 %v4723, %v4722
  %v4886 = vpack.c.b16 %v4725, %v4724
  %v4887 = vpack.c.b16 %v4727, %v4726
  %v4888 = vpack.c.b16 %v4729, %v4728
  %v4889 = vpack.c.b16 %v4731, %v4730
  %v4890 = vpack.c.b16 %v4733, %v4732
  %v4891 = vpack.c.b16 %v4735, %v4734
  %v4892 = vpack.c.b16 %v4737, %v4736
  %v4893 = vpack.c.b16 %v4739, %v4738
  %v4894 = vpack.c.b16 %v4741, %v4740
  %v4895 = vpack.c.b16 %v4743, %v4742
  %v4896 = vpack.c.b16 %v4745, %v4744
  %v4897 = vpack.c.b16 %v4747, %v4746
  %v4898 = vpack.c.b16 %v4749, %v4748
  %v4899 = vpack.c.b16 %v4751, %v4750
  %v4900 = vpack.c.b16 %v4753, %v4752
  %v4901 = vpack.c.b16 %v4755, %v4754
  %v4902 = vpack.c.b16 %v4757, %v4756
  %v4903 = vpack.c.b16 %v4759, %v4758
  %v4904 = vpack.c.b16 %v4761, %v4760
  %v4905 = vpack.c.b16 %v4763, %v4762
  %v4906 = vpack.c.b16 %v4765, %v4764
  %v4907 = vpack.c.b16 %v4767, %v4766
  %v4908 = vpack.c.b16 %v4769, %v4768
  %v4909 = vpack.c.b16 %v4771, %v4770
  %v4910 = vpack.c.b16 %v4773, %v4772
  %v4911 = vpack.c.b16 %v4775, %v4774
  %v4912 = vpack.c.b16 %v4777, %v4776
  %v4913 = vpack.c.b16 %v4779, %v4778
  %v4914 = vpack.c.b16 %v4781, %v4780
  %v4915 = vpack.c.b16 %v4783, %v4782
  %v4916 = vpack.c.b16 %v4785, %v4784
  %v4917 = vpack.c.b16 %v4787, %v4786
  %v4918 = vpack.c.b16 %v4789, %v4788
  %v4919 = vpack.c.b16 %v4791, %v4790
  %v4920 = vpack.c.b16 %v4793, %v4792
  %v4921 = vpack.c.b16 %v4795, %v4794
  %v4922 = vpack.c.b16 %v4797, %v4796
  %v4923 = vpack.c.b16 %v4799, %v4798
  %v4924 = vpack.c.b16 %v4801, %v4800
  %v4925 = vpack.c.b16 %v4803, %v4802
  %v4926 = vpack.c.b16 %v4805, %v4804
  %v4927 = vpack.c.b16 %v4807, %v4806
  %v4928 = vpack.c.b16 %v4809, %v4808
  %v4929 = vpack.c.b16 %v4811, %v4810
  %v4930 = vpack.c.b16 %v4813, %v4812
  %v4931 = vpack.c.b16 %v4815, %v4814
  %v4932 = vpack.c.b16 %v4817, %v4816
  %v4933 = vpack.c.b16 %v4819, %v4818
  %v4934 = vpack.c.b16 %v4821, %v4820
  %v4935 = vpack.c.b16 %v4823, %v4822
  %v4936 = vpack.c.b16 %v4825, %v4824
  %v4937 = vpack.c.b16 %v4827, %v4826
  %v4938 = vpack.c.b16 %v4829, %v4828
  %v4939 = vpack.c.b16 %v4831, %v4830
  %v4940 = vpack.c.b16 %v4833, %v4832
  %v4941 = vpack.c.b16 %v4835, %v4834
  %v4942 = vpack.c.b16 %v4837, %v4836
  %v4943 = vpack.c.b16 %v4839, %v4838
  %v4944 = vpack.c.b16 %v4841, %v4840
  %v4945 = vpack.c.b16 %v4843, %v4842
  %v4946 = vpack.c.b16 %v4845, %v4844
  %v4947 = vpack.c.b16 %v4847, %v4846
  %v5049 = vsel %vm934, %v4298, 0
  %v5052 = vsel %vm934, %v4423, 0
  %5054 = vmatprep.subr.bf16.mxu0 0
  %5055 = vmatpush1.bf16.msra.mxu0 %v4848
  %5056 = vmatprep.subr.bf16.mxu0 0
  %5057 = vmatpush1.bf16.msra.mxu0 %v4849
  %5058 = vmatprep.subr.bf16.mxu0 0
  %5059 = vmatpush1.bf16.msra.mxu0 %v4850
  %5060 = vmatprep.subr.bf16.mxu0 0
  %5061 = vmatpush1.bf16.msra.mxu0 %v4851
  %5062 = vmatprep.subr.bf16.mxu0 0
  %5063 = vmatpush1.bf16.msra.mxu0 %v4852
  %5064 = vmatprep.subr.bf16.mxu0 0
  %5065 = vmatpush1.bf16.msra.mxu0 %v4853
  %5066 = vmatprep.subr.bf16.mxu0 0
  %5067 = vmatpush1.bf16.msra.mxu0 %v4854
  %5068 = vmatprep.subr.bf16.mxu0 0
  %5069 = vmatpush1.bf16.msra.mxu0 %v4855
  %5070 = vmatprep.subr.bf16.mxu0 0
  %5071 = vmatpush1.bf16.msra.mxu0 %v4856
  %5072 = vmatprep.subr.bf16.mxu0 0
  %5073 = vmatpush1.bf16.msra.mxu0 %v4857
  %5074 = vmatprep.subr.bf16.mxu0 0
  %5075 = vmatpush1.bf16.msra.mxu0 %v4858
  %5076 = vmatprep.subr.bf16.mxu0 0
  %5077 = vmatpush1.bf16.msra.mxu0 %v4859
  %5078 = vmatprep.subr.bf16.mxu0 0
  %5079 = vmatpush1.bf16.msra.mxu0 %v4860
  %5080 = vmatprep.subr.bf16.mxu0 0
  %5081 = vmatpush1.bf16.msra.mxu0 %v4861
  %5082 = vmatprep.subr.bf16.mxu0 0
  %5083 = vmatpush1.bf16.msra.mxu0 %v4862
  %5084 = vmatprep.subr.bf16.mxu0 0
  %5085 = vmatpush1.bf16.msra.mxu0 %v4863
  %5086 = vmatprep.mubr.bf16.mxu0 %v4207
  %5087 = vmatmul.mubr.bf16.gmra.mrb[0].mxu0 %v4206
  %v5088 = vpop.f32.mrb[0].mxu0
  %v5089 = vadd.f32 %v4172, %v5088
  %v5090 = vpop.f32.mrb[0].mxu0
  %v5091 = vpop.f32.mrb[0].mxu0
  %v5092 = vadd.f32 %v4172, %v5091
  %v5093 = vpop.f32.mrb[0].mxu0
  %5094 = vmatprep.mubr.bf16.mxu0 %v4332
  %5095 = vmatmul.mubr.bf16.gmra.mrb[0].mxu0 %v4331
  %v5096 = vpop.f32.mrb[0].mxu0
  %v5097 = vadd.f32 %v4172, %v5096
  %v5098 = vpop.f32.mrb[0].mxu0
  %v5099 = vpop.f32.mrb[0].mxu0
  %v5100 = vadd.f32 %v4172, %v5099
  %v5101 = vpop.f32.mrb[0].mxu0
  %5102 = vdwg.mxu0
  %5103 = vmatprep.subr.bf16.mxu0 0
  %5104 = vmatpush1.bf16.msra.mxu0 %v4864
  %5105 = vmatprep.subr.bf16.mxu0 0
  %5106 = vmatpush1.bf16.msra.mxu0 %v4865
  %5107 = vmatprep.subr.bf16.mxu0 0
  %5108 = vmatpush1.bf16.msra.mxu0 %v4866
  %5109 = vmatprep.subr.bf16.mxu0 0
  %5110 = vmatpush1.bf16.msra.mxu0 %v4867
  %5111 = vmatprep.subr.bf16.mxu0 0
  %5112 = vmatpush1.bf16.msra.mxu0 %v4868
  %5113 = vmatprep.subr.bf16.mxu0 0
  %5114 = vmatpush1.bf16.msra.mxu0 %v4869
  %5115 = vmatprep.subr.bf16.mxu0 0
  %5116 = vmatpush1.bf16.msra.mxu0 %v4870
  %5117 = vmatprep.subr.bf16.mxu0 0
  %5118 = vmatpush1.bf16.msra.mxu0 %v4871
  %5119 = vmatprep.subr.bf16.mxu0 0
  %5120 = vmatpush1.bf16.msra.mxu0 %v4872
  %5121 = vmatprep.subr.bf16.mxu0 0
  %5122 = vmatpush1.bf16.msra.mxu0 %v4873
  %5123 = vmatprep.subr.bf16.mxu0 0
  %5124 = vmatpush1.bf16.msra.mxu0 %v4874
  %5125 = vmatprep.subr.bf16.mxu0 0
  %5126 = vmatpush1.bf16.msra.mxu0 %v4875
  %5127 = vmatprep.subr.bf16.mxu0 0
  %5128 = vmatpush1.bf16.msra.mxu0 %v4876
  %5129 = vmatprep.subr.bf16.mxu0 0
  %5130 = vmatpush1.bf16.msra.mxu0 %v4877
  %5131 = vmatprep.subr.bf16.mxu0 0
  %5132 = vmatpush1.bf16.msra.mxu0 %v4878
  %5133 = vmatprep.subr.bf16.mxu0 0
  %5134 = vmatpush1.bf16.msra.mxu0 %v4879
  %5135 = vmatprep.mubr.bf16.mxu0 %v4209
  %5136 = vmatmul.mubr.bf16.gmra.mrb[0].mxu0 %v4208
  %v5137 = vpop.f32.mrb[0].mxu0
  %v5138 = vadd.f32 %v5089, %v5137
  %v5139 = vpop.f32.mrb[0].mxu0
  %v5140 = vpop.f32.mrb[0].mxu0
  %v5141 = vadd.f32 %v5092, %v5140
  %v5142 = vpop.f32.mrb[0].mxu0
  %5143 = vmatprep.mubr.bf16.mxu0 %v4334
  %5144 = vmatmul.mubr.bf16.gmra.mrb[0].mxu0 %v4333
  %v5145 = vpop.f32.mrb[0].mxu0
  %v5146 = vadd.f32 %v5097, %v5145
  %v5147 = vpop.f32.mrb[0].mxu0
  %v5148 = vpop.f32.mrb[0].mxu0
  %v5149 = vadd.f32 %v5100, %v5148
  %v5150 = vpop.f32.mrb[0].mxu0
  %5151 = vdwg.mxu0
  %5152 = vmatprep.subr.bf16.mxu0 0
  %5153 = vmatpush1.bf16.msra.mxu0 %v4880
  %5154 = vmatprep.subr.bf16.mxu0 0
  %5155 = vmatpush1.bf16.msra.mxu0 %v4881
  %5156 = vmatprep.subr.bf16.mxu0 0
  %5157 = vmatpush1.bf16.msra.mxu0 %v4882
  %5158 = vmatprep.subr.bf16.mxu0 0
  %5159 = vmatpush1.bf16.msra.mxu0 %v4883
  %5160 = vmatprep.subr.bf16.mxu0 0
  %5161 = vmatpush1.bf16.msra.mxu0 %v4884
  %5162 = vmatprep.subr.bf16.mxu0 0
  %5163 = vmatpush1.bf16.msra.mxu0 %v4885
  %5164 = vmatprep.subr.bf16.mxu0 0
  %5165 = vmatpush1.bf16.msra.mxu0 %v4886
  %5166 = vmatprep.subr.bf16.mxu0 0
  %5167 = vmatpush1.bf16.msra.mxu0 %v4887
  %5168 = vmatprep.subr.bf16.mxu0 0
  %5169 = vmatpush1.bf16.msra.mxu0 %v4888
  %5170 = vmatprep.subr.bf16.mxu0 0
  %5171 = vmatpush1.bf16.msra.mxu0 %v4889
  %5172 = vmatprep.subr.bf16.mxu0 0
  %5173 = vmatpush1.bf16.msra.mxu0 %v4890
  %5174 = vmatprep.subr.bf16.mxu0 0
  %5175 = vmatpush1.bf16.msra.mxu0 %v4891
  %5176 = vmatprep.subr.bf16.mxu0 0
  %5177 = vmatpush1.bf16.msra.mxu0 %v4892
  %5178 = vmatprep.subr.bf16.mxu0 0
  %5179 = vmatpush1.bf16.msra.mxu0 %v4893
  %5180 = vmatprep.subr.bf16.mxu0 0
  %5181 = vmatpush1.bf16.msra.mxu0 %v4894
  %5182 = vmatprep.subr.bf16.mxu0 0
  %5183 = vmatpush1.bf16.msra.mxu0 %v4895
  %5184 = vmatprep.mubr.bf16.mxu0 %v4243
  %5185 = vmatmul.mubr.bf16.gmra.mrb[0].mxu0 %v4242
  %v5186 = vpop.f32.mrb[0].mxu0
  %v5187 = vadd.f32 %v5138, %v5186
  %v5188 = vpop.f32.mrb[0].mxu0
  %v5189 = vpop.f32.mrb[0].mxu0
  %v5190 = vadd.f32 %v5141, %v5189
  %v5191 = vpop.f32.mrb[0].mxu0
  %5192 = vmatprep.mubr.bf16.mxu0 %v4368
  %5193 = vmatmul.mubr.bf16.gmra.mrb[0].mxu0 %v4367
  %v5194 = vpop.f32.mrb[0].mxu0
  %v5195 = vadd.f32 %v5146, %v5194
  %v5196 = vpop.f32.mrb[0].mxu0
  %v5197 = vpop.f32.mrb[0].mxu0
  %v5198 = vadd.f32 %v5149, %v5197
  %v5199 = vpop.f32.mrb[0].mxu0
  %5200 = vdwg.mxu0
  %5201 = vmatprep.subr.bf16.mxu0 0
  %5202 = vmatpush1.bf16.msra.mxu0 %v4896
  %5203 = vmatprep.subr.bf16.mxu0 0
  %5204 = vmatpush1.bf16.msra.mxu0 %v4897
  %5205 = vmatprep.subr.bf16.mxu0 0
  %5206 = vmatpush1.bf16.msra.mxu0 %v4898
  %5207 = vmatprep.subr.bf16.mxu0 0
  %5208 = vmatpush1.bf16.msra.mxu0 %v4899
  %5209 = vmatprep.subr.bf16.mxu0 0
  %5210 = vmatpush1.bf16.msra.mxu0 %v4900
  %5211 = vmatprep.subr.bf16.mxu0 0
  %5212 = vmatpush1.bf16.msra.mxu0 %v4901
  %5213 = vmatprep.subr.bf16.mxu0 0
  %5214 = vmatpush1.bf16.msra.mxu0 %v4902
  %5215 = vmatprep.subr.bf16.mxu0 0
  %5216 = vmatpush1.bf16.msra.mxu0 %v4903
  %5217 = vmatprep.subr.bf16.mxu0 0
  %5218 = vmatpush1.bf16.msra.mxu0 %v4904
  %5219 = vmatprep.subr.bf16.mxu0 0
  %5220 = vmatpush1.bf16.msra.mxu0 %v4905
  %5221 = vmatprep.subr.bf16.mxu0 0
  %5222 = vmatpush1.bf16.msra.mxu0 %v4906
  %5223 = vmatprep.subr.bf16.mxu0 0
  %5224 = vmatpush1.bf16.msra.mxu0 %v4907
  %5225 = vmatprep.subr.bf16.mxu0 0
  %5226 = vmatpush1.bf16.msra.mxu0 %v4908
  %5227 = vmatprep.subr.bf16.mxu0 0
  %5228 = vmatpush1.bf16.msra.mxu0 %v4909
  %5229 = vmatprep.subr.bf16.mxu0 0
  %5230 = vmatpush1.bf16.msra.mxu0 %v4910
  %5231 = vmatprep.subr.bf16.mxu0 0
  %5232 = vmatpush1.bf16.msra.mxu0 %v4911
  %5233 = vmatprep.mubr.bf16.mxu0 %v4245
  %5234 = vmatmul.mubr.bf16.gmra.mrb[0].mxu0 %v4244
  %v5235 = vpop.f32.mrb[0].mxu0
  %v5236 = vadd.f32 %v5187, %v5235
  %v5237 = vpop.f32.mrb[0].mxu0
  %v5238 = vpop.f32.mrb[0].mxu0
  %v5239 = vadd.f32 %v5190, %v5238
  %v5240 = vpop.f32.mrb[0].mxu0
  %5241 = vmatprep.mubr.bf16.mxu0 %v4370
  %5242 = vmatmul.mubr.bf16.gmra.mrb[0].mxu0 %v4369
  %v5243 = vpop.f32.mrb[0].mxu0
  %v5244 = vadd.f32 %v5195, %v5243
  %v5245 = vpop.f32.mrb[0].mxu0
  %v5246 = vpop.f32.mrb[0].mxu0
  %v5247 = vadd.f32 %v5198, %v5246
  %v5248 = vpop.f32.mrb[0].mxu0
  %5249 = vdwg.mxu0
  %5250 = vmatprep.subr.bf16.mxu0 0
  %5251 = vmatpush1.bf16.msra.mxu0 %v4912
  %5252 = vmatprep.subr.bf16.mxu0 0
  %5253 = vmatpush1.bf16.msra.mxu0 %v4913
  %5254 = vmatprep.subr.bf16.mxu0 0
  %5255 = vmatpush1.bf16.msra.mxu0 %v4914
  %5256 = vmatprep.subr.bf16.mxu0 0
  %5257 = vmatpush1.bf16.msra.mxu0 %v4915
  %5258 = vmatprep.subr.bf16.mxu0 0
  %5259 = vmatpush1.bf16.msra.mxu0 %v4916
  %5260 = vmatprep.subr.bf16.mxu0 0
  %5261 = vmatpush1.bf16.msra.mxu0 %v4917
  %5262 = vmatprep.subr.bf16.mxu0 0
  %5263 = vmatpush1.bf16.msra.mxu0 %v4918
  %5264 = vmatprep.subr.bf16.mxu0 0
  %5265 = vmatpush1.bf16.msra.mxu0 %v4919
  %5266 = vmatprep.subr.bf16.mxu0 0
  %5267 = vmatpush1.bf16.msra.mxu0 %v4920
  %5268 = vmatprep.subr.bf16.mxu0 0
  %5269 = vmatpush1.bf16.msra.mxu0 %v4921
  %5270 = vmatprep.subr.bf16.mxu0 0
  %5271 = vmatpush1.bf16.msra.mxu0 %v4922
  %5272 = vmatprep.subr.bf16.mxu0 0
  %5273 = vmatpush1.bf16.msra.mxu0 %v4923
  %5274 = vmatprep.subr.bf16.mxu0 0
  %5275 = vmatpush1.bf16.msra.mxu0 %v4924
  %5276 = vmatprep.subr.bf16.mxu0 0
  %5277 = vmatpush1.bf16.msra.mxu0 %v4925
  %5278 = vmatprep.subr.bf16.mxu0 0
  %5279 = vmatpush1.bf16.msra.mxu0 %v4926
  %5280 = vmatprep.subr.bf16.mxu0 0
  %5281 = vmatpush1.bf16.msra.mxu0 %v4927
  %5282 = vmatprep.mubr.bf16.mxu0 %v4279
  %5283 = vmatmul.mubr.bf16.gmra.mrb[0].mxu0 %v4278
  %v5284 = vpop.f32.mrb[0].mxu0
  %v5285 = vadd.f32 %v5236, %v5284
  %v5286 = vpop.f32.mrb[0].mxu0
  %v5287 = vpop.f32.mrb[0].mxu0
  %v5288 = vadd.f32 %v5239, %v5287
  %v5289 = vpop.f32.mrb[0].mxu0
  %5290 = vmatprep.mubr.bf16.mxu0 %v4404
  %5291 = vmatmul.mubr.bf16.gmra.mrb[0].mxu0 %v4403
  %v5292 = vpop.f32.mrb[0].mxu0
  %v5293 = vadd.f32 %v5244, %v5292
  %v5294 = vpop.f32.mrb[0].mxu0
  %v5295 = vpop.f32.mrb[0].mxu0
  %v5296 = vadd.f32 %v5247, %v5295
  %v5297 = vpop.f32.mrb[0].mxu0
  %5298 = vdwg.mxu0
  %5299 = vmatprep.subr.bf16.mxu0 0
  %5300 = vmatpush1.bf16.msra.mxu0 %v4928
  %5301 = vmatprep.subr.bf16.mxu0 0
  %5302 = vmatpush1.bf16.msra.mxu0 %v4929
  %5303 = vmatprep.subr.bf16.mxu0 0
  %5304 = vmatpush1.bf16.msra.mxu0 %v4930
  %5305 = vmatprep.subr.bf16.mxu0 0
  %5306 = vmatpush1.bf16.msra.mxu0 %v4931
  %5307 = vmatprep.subr.bf16.mxu0 0
  %5308 = vmatpush1.bf16.msra.mxu0 %v4932
  %5309 = vmatprep.subr.bf16.mxu0 0
  %5310 = vmatpush1.bf16.msra.mxu0 %v4933
  %5311 = vmatprep.subr.bf16.mxu0 0
  %5312 = vmatpush1.bf16.msra.mxu0 %v4934
  %5313 = vmatprep.subr.bf16.mxu0 0
  %5314 = vmatpush1.bf16.msra.mxu0 %v4935
  %5315 = vmatprep.subr.bf16.mxu0 0
  %5316 = vmatpush1.bf16.msra.mxu0 %v4936
  %5317 = vmatprep.subr.bf16.mxu0 0
  %5318 = vmatpush1.bf16.msra.mxu0 %v4937
  %5319 = vmatprep.subr.bf16.mxu0 0
  %5320 = vmatpush1.bf16.msra.mxu0 %v4938
  %5321 = vmatprep.subr.bf16.mxu0 0
  %5322 = vmatpush1.bf16.msra.mxu0 %v4939
  %5323 = vmatprep.subr.bf16.mxu0 0
  %5324 = vmatpush1.bf16.msra.mxu0 %v4940
  %5325 = vmatprep.subr.bf16.mxu0 0
  %5326 = vmatpush1.bf16.msra.mxu0 %v4941
  %5327 = vmatprep.subr.bf16.mxu0 0
  %5328 = vmatpush1.bf16.msra.mxu0 %v4942
  %5329 = vmatprep.subr.bf16.mxu0 0
  %5330 = vmatpush1.bf16.msra.mxu0 %v4943
  %5331 = vmatprep.mubr.bf16.mxu0 %v4281
  %5332 = vmatmul.mubr.bf16.gmra.mrb[0].mxu0 %v4280
  %v5333 = vpop.f32.mrb[0].mxu0
  %v5334 = vadd.f32 %v5285, %v5333
  %v5335 = vpop.f32.mrb[0].mxu0
  %v5336 = vpop.f32.mrb[0].mxu0
  %v5337 = vadd.f32 %v5288, %v5336
  %v5338 = vpop.f32.mrb[0].mxu0
  %5339 = vmatprep.mubr.bf16.mxu0 %v4406
  %5340 = vmatmul.mubr.bf16.gmra.mrb[0].mxu0 %v4405
  %v5341 = vpop.f32.mrb[0].mxu0
  %v5342 = vadd.f32 %v5293, %v5341
  %v5343 = vpop.f32.mrb[0].mxu0
  %v5344 = vpop.f32.mrb[0].mxu0
  %v5345 = vadd.f32 %v5296, %v5344
  %v5346 = vpop.f32.mrb[0].mxu0
  %5347 = vdwg.mxu0
  %5348 = vmatprep.subr.bf16.mxu0 0
  %5349 = vmatpush1.bf16.msra.mxu0 %v4944
  %5350 = vmatprep.subr.bf16.mxu0 0
  %5351 = vmatpush1.bf16.msra.mxu0 %v4945
  %5352 = vmatprep.subr.bf16.mxu0 0
  %5353 = vmatpush1.bf16.msra.mxu0 %v4946
  %5354 = vmatprep.subr.bf16.mxu0 0
  %5355 = vmatpush1.bf16.msra.mxu0 %v4947
  %5356 = vmatprep.subr.bf16.mxu0 0
  %5357 = vmatpush1.bf16.msra.mxu0 0
  %5358 = vmatprep.subr.bf16.mxu0 0
  %5359 = vmatpush1.bf16.msra.mxu0 0
  %5360 = vmatprep.subr.bf16.mxu0 0
  %5361 = vmatpush1.bf16.msra.mxu0 0
  %5362 = vmatprep.subr.bf16.mxu0 0
  %5363 = vmatpush1.bf16.msra.mxu0 0
  %5364 = vmatprep.subr.bf16.mxu0 0
  %5365 = vmatpush1.bf16.msra.mxu0 0
  %5366 = vmatprep.subr.bf16.mxu0 0
  %5367 = vmatpush1.bf16.msra.mxu0 0
  %5368 = vmatprep.subr.bf16.mxu0 0
  %5369 = vmatpush1.bf16.msra.mxu0 0
  %5370 = vmatprep.subr.bf16.mxu0 0
  %5371 = vmatpush1.bf16.msra.mxu0 0
  %5372 = vmatprep.subr.bf16.mxu0 0
  %5373 = vmatpush1.bf16.msra.mxu0 0
  %5374 = vmatprep.subr.bf16.mxu0 0
  %5375 = vmatpush1.bf16.msra.mxu0 0
  %5376 = vmatprep.subr.bf16.mxu0 0
  %5377 = vmatpush1.bf16.msra.mxu0 0
  %5378 = vmatprep.subr.bf16.mxu0 0
  %5379 = vmatpush1.bf16.msra.mxu0 0
  %5380 = vmatprep.mubr.bf16.mxu0 0
  %5381 = vmatmul.mubr.bf16.gmra.mrb[0].mxu0 %v5049
  %v5382 = vpop.f32.mrb[0].mxu0
  %v5383 = vadd.f32 %v5334, %v5382
  %v5384 = vpop.f32.mrb[0].mxu0
  %v5385 = vpop.f32.mrb[0].mxu0
  %v5386 = vadd.f32 %v5337, %v5385
  %v5387 = vpop.f32.mrb[0].mxu0
  %5388 = vmatprep.mubr.bf16.mxu0 0
  %5389 = vmatmul.mubr.bf16.gmra.mrb[0].mxu0 %v5052
  %v5390 = vpop.f32.mrb[0].mxu0
  %v5391 = vadd.f32 %v5342, %v5390
  %v5392 = vpop.f32.mrb[0].mxu0
  %v5393 = vpop.f32.mrb[0].mxu0
  %v5394 = vadd.f32 %v5345, %v5393
  %v5395 = vpop.f32.mrb[0].mxu0
  %5396 = vdwg.mxu0
  %v5397 = vadd.f32 %v5383, %v5386
  %v5398 = vrot.slane %v5397, 4
  %v5399 = vadd.f32 %v5397, %v5398
  %v5400 = vrot.slane %v5399, 2
  %v5401 = vadd.f32 %v5399, %v5400
  %v5402 = vrot.slane %v5401, 1
  %v5403 = vadd.f32 %v5401, %v5402
  %v5404 = vadd.f32 %v5391, %v5394
  %v5405 = vrot.slane %v5404, 4
  %v5406 = vadd.f32 %v5404, %v5405
  %v5407 = vrot.slane %v5406, 2
  %v5408 = vadd.f32 %v5406, %v5407
  %v5409 = vrot.slane %v5408, 1
  %v5410 = vadd.f32 %v5408, %v5409
  %v5411 = vmul.f32 %v5383, %v5383
  %v5412 = vmul.f32 %v5386, %v5386
  %v5413 = vmul.f32 %v5391, %v5391
  %v5414 = vmul.f32 %v5394, %v5394
  %v5415 = vadd.f32 %v5411, %v5412
  %v5416 = vrot.slane %v5415, 4
  %v5417 = vadd.f32 %v5415, %v5416
  %v5418 = vrot.slane %v5417, 2
  %v5419 = vadd.f32 %v5417, %v5418
  %v5420 = vrot.slane %v5419, 1
  %v5421 = vadd.f32 %v5419, %v5420
  %v5422 = vadd.f32 %v5413, %v5414
  %v5423 = vrot.slane %v5422, 4
  %v5424 = vadd.f32 %v5422, %v5423
  %v5425 = vrot.slane %v5424, 2
  %v5426 = vadd.f32 %v5424, %v5425
  %v5427 = vrot.slane %v5426, 1
  %v5428 = vadd.f32 %v5426, %v5427
  %v5431 = vsel %vm1137, %v5410, %v5403
  %v5433 = vsel %vm1140, %v5431, 0.0
  %5434 = vadd.xlane.f32.xlu0 %v5433
  %v5435 = vpop.xlane.xlu0 %5434
  %v5436 = vrcp.pop 256.0
  %v5437 = vmul.f32 %v5435, %v5436
  %v5440 = vsel %vm1137, %v5428, %v5421
  %v5442 = vsel %vm1140, %v5440, 0.0
  %5443 = vadd.xlane.f32.xlu0 %v5442
  %v5444 = vpop.xlane.xlu0 %5443
  %v5445 = vmul.f32 %v5444, %v5436
  %v5446 = vmul.f32 %v5437, %v5437
  %v5447 = vsub.f32 %v5445, %v5446
  %v5448 = vadd.f32 %v5447, 1e-05
  %v5449 = vrsqrt.pop %v5448
  %5450 = vrot.lane.b32.xlu0 %v5431, 112
  %v5451 = vpop.permute.xlu0 %5450
  %v5453 = vsel %vm1140, %v5451, 0.0
  %5454 = vadd.xlane.f32.xlu0 %v5453
  %v5455 = vpop.xlane.xlu0 %5454
  %v5456 = vmul.f32 %v5455, %v5436
  %5457 = vrot.lane.b32.xlu0 %v5440, 112
  %v5458 = vpop.permute.xlu0 %5457
  %v5460 = vsel %vm1140, %v5458, 0.0
  %5461 = vadd.xlane.f32.xlu0 %v5460
  %v5462 = vpop.xlane.xlu0 %5461
  %v5463 = vmul.f32 %v5462, %v5436
  %v5464 = vmul.f32 %v5456, %v5456
  %v5465 = vsub.f32 %v5463, %v5464
  %v5466 = vadd.f32 %v5465, 1e-05
  %v5467 = vrsqrt.pop %v5466
  %5468 = vrot.lane.b32.xlu0 %v5431, 96
  %v5469 = vpop.permute.xlu0 %5468
  %v5471 = vsel %vm1140, %v5469, 0.0
  %5472 = vadd.xlane.f32.xlu0 %v5471
  %v5473 = vpop.xlane.xlu0 %5472
  %v5474 = vmul.f32 %v5473, %v5436
  %5475 = vrot.lane.b32.xlu0 %v5440, 96
  %v5476 = vpop.permute.xlu0 %5475
  %v5478 = vsel %vm1140, %v5476, 0.0
  %5479 = vadd.xlane.f32.xlu0 %v5478
  %v5480 = vpop.xlane.xlu0 %5479
  %v5481 = vmul.f32 %v5480, %v5436
  %v5482 = vmul.f32 %v5474, %v5474
  %v5483 = vsub.f32 %v5481, %v5482
  %v5484 = vadd.f32 %v5483, 1e-05
  %v5485 = vrsqrt.pop %v5484
  %5486 = vrot.lane.b32.xlu0 %v5431, 80
  %v5487 = vpop.permute.xlu0 %5486
  %v5489 = vsel %vm1140, %v5487, 0.0
  %5490 = vadd.xlane.f32.xlu0 %v5489
  %v5491 = vpop.xlane.xlu0 %5490
  %v5492 = vmul.f32 %v5491, %v5436
  %5493 = vrot.lane.b32.xlu0 %v5440, 80
  %v5494 = vpop.permute.xlu0 %5493
  %v5496 = vsel %vm1140, %v5494, 0.0
  %5497 = vadd.xlane.f32.xlu0 %v5496
  %v5498 = vpop.xlane.xlu0 %5497
  %v5499 = vmul.f32 %v5498, %v5436
  %v5500 = vmul.f32 %v5492, %v5492
  %v5501 = vsub.f32 %v5499, %v5500
  %v5502 = vadd.f32 %v5501, 1e-05
  %v5503 = vrsqrt.pop %v5502
  %5504 = vrot.lane.b32.xlu0 %v5431, 64
  %v5505 = vpop.permute.xlu0 %5504
  %v5507 = vsel %vm1140, %v5505, 0.0
  %5508 = vadd.xlane.f32.xlu0 %v5507
  %v5509 = vpop.xlane.xlu0 %5508
  %v5510 = vmul.f32 %v5509, %v5436
  %5511 = vrot.lane.b32.xlu0 %v5440, 64
  %v5512 = vpop.permute.xlu0 %5511
  %v5514 = vsel %vm1140, %v5512, 0.0
  %5515 = vadd.xlane.f32.xlu0 %v5514
  %v5516 = vpop.xlane.xlu0 %5515
  %v5517 = vmul.f32 %v5516, %v5436
  %v5518 = vmul.f32 %v5510, %v5510
  %v5519 = vsub.f32 %v5517, %v5518
  %v5520 = vadd.f32 %v5519, 1e-05
  %v5521 = vrsqrt.pop %v5520
  %5522 = vrot.lane.b32.xlu0 %v5431, 48
  %v5523 = vpop.permute.xlu0 %5522
  %v5525 = vsel %vm1140, %v5523, 0.0
  %5526 = vadd.xlane.f32.xlu0 %v5525
  %v5527 = vpop.xlane.xlu0 %5526
  %v5528 = vmul.f32 %v5527, %v5436
  %5529 = vrot.lane.b32.xlu0 %v5440, 48
  %v5530 = vpop.permute.xlu0 %5529
  %v5532 = vsel %vm1140, %v5530, 0.0
  %5533 = vadd.xlane.f32.xlu0 %v5532
  %v5534 = vpop.xlane.xlu0 %5533
  %v5535 = vmul.f32 %v5534, %v5436
  %v5536 = vmul.f32 %v5528, %v5528
  %v5537 = vsub.f32 %v5535, %v5536
  %v5538 = vadd.f32 %v5537, 1e-05
  %v5539 = vrsqrt.pop %v5538
  %5540 = vrot.lane.b32.xlu0 %v5431, 32
  %v5541 = vpop.permute.xlu0 %5540
  %v5543 = vsel %vm1140, %v5541, 0.0
  %5544 = vadd.xlane.f32.xlu0 %v5543
  %v5545 = vpop.xlane.xlu0 %5544
  %v5546 = vmul.f32 %v5545, %v5436
  %5547 = vrot.lane.b32.xlu0 %v5440, 32
  %v5548 = vpop.permute.xlu0 %5547
  %v5550 = vsel %vm1140, %v5548, 0.0
  %5551 = vadd.xlane.f32.xlu0 %v5550
  %v5552 = vpop.xlane.xlu0 %5551
  %v5553 = vmul.f32 %v5552, %v5436
  %v5554 = vmul.f32 %v5546, %v5546
  %v5555 = vsub.f32 %v5553, %v5554
  %v5556 = vadd.f32 %v5555, 1e-05
  %v5557 = vrsqrt.pop %v5556
  %5558 = vrot.lane.b32.xlu0 %v5431, 16
  %v5559 = vpop.permute.xlu0 %5558
  %v5561 = vsel %vm1140, %v5559, 0.0
  %5562 = vadd.xlane.f32.xlu0 %v5561
  %v5563 = vpop.xlane.xlu0 %5562
  %v5564 = vmul.f32 %v5563, %v5436
  %5565 = vrot.lane.b32.xlu0 %v5440, 16
  %v5566 = vpop.permute.xlu0 %5565
  %v5568 = vsel %vm1140, %v5566, 0.0
  %5569 = vadd.xlane.f32.xlu0 %v5568
  %v5570 = vpop.xlane.xlu0 %5569
  %v5571 = vmul.f32 %v5570, %v5436
  %v5572 = vmul.f32 %v5564, %v5564
  %v5573 = vsub.f32 %v5571, %v5572
  %v5574 = vadd.f32 %v5573, 1e-05
  %v5575 = vrsqrt.pop %v5574
  %v5576 = vsel %vm1212, %v5437, %v5456
  %v5577 = vsel %vm1214, %v5576, %v5474
  %v5578 = vsel %vm1216, %v5577, %v5492
  %v5579 = vsel %vm934, %v5578, %v5510
  %vm5580 = vcmask 654336
  %v5581 = vsel %vm5580, %v5579, %v5528
  %vm5582 = vcmask 785408
  %v5583 = vsel %vm5582, %v5581, %v5546
  %vm5584 = vcmask 916480
  %v5585 = vsel %vm5584, %v5583, %v5564
  %v5588 = vunpack.c.l.s4 1966171168
  %v5589 = vunpack.c.0.s8 %v5588
  %v5590 = vlaneseq
  %v5591 = vshrl.u32 %v5590, 7
  %v5592 = vsub.s32 %v5589, %v5591
  %v5593 = vrot.slane %v5585, %v5592
  %v5594 = vcombine.high %v5593, %v5593
  %v5596 = vunpack.c.l.s4 1966171168
  %v5597 = vunpack.c.0.s8 %v5596
  %v5598 = vlaneseq
  %v5599 = vshrl.u32 %v5598, 7
  %v5600 = vsub.s32 %v5597, %v5599
  %v5601 = vrot.slane %v5593, %v5600
  %v5603 = vunpack.c.l.s4 1966171168
  %v5604 = vunpack.c.0.s8 %v5603
  %v5605 = vlaneseq
  %v5606 = vshrl.u32 %v5605, 7
  %v5607 = vsub.s32 %v5604, %v5606
  %v5608 = vrot.slane %v5594, %v5607
  %v5609 = vsel %vm1212, %v5449, %v5467
  %v5610 = vsel %vm1214, %v5609, %v5485
  %v5611 = vsel %vm1216, %v5610, %v5503
  %v5612 = vsel %vm934, %v5611, %v5521
  %v5613 = vsel %vm5580, %v5612, %v5539
  %v5614 = vsel %vm5582, %v5613, %v5557
  %v5615 = vsel %vm5584, %v5614, %v5575
  %v5618 = vunpack.c.l.s4 1966171168
  %v5619 = vunpack.c.0.s8 %v5618
  %v5620 = vlaneseq
  %v5621 = vshrl.u32 %v5620, 7
  %v5622 = vsub.s32 %v5619, %v5621
  %v5623 = vrot.slane %v5615, %v5622
  %v5624 = vcombine.high %v5623, %v5623
  %v5626 = vunpack.c.l.s4 1966171168
  %v5627 = vunpack.c.0.s8 %v5626
  %v5628 = vlaneseq
  %v5629 = vshrl.u32 %v5628, 7
  %v5630 = vsub.s32 %v5627, %v5629
  %v5631 = vrot.slane %v5623, %v5630
  %v5633 = vunpack.c.l.s4 1966171168
  %v5634 = vunpack.c.0.s8 %v5633
  %v5635 = vlaneseq
  %v5636 = vshrl.u32 %v5635, 7
  %v5637 = vsub.s32 %v5634, %v5636
  %v5638 = vrot.slane %v5624, %v5637
  %v5639 = vlaneseq
  %v5640 = vshrl.u32 %v5639, 7
  %v5641 = vsub.s32 0, %v5640
  %v5642 = vrot.slane %v5601, %v5641
  %v5643 = vlaneseq
  %v5644 = vshrl.u32 %v5643, 7
  %v5645 = vsub.s32 0, %v5644
  %v5646 = vrot.slane %v5608, %v5645
  %v5649 = vsub.f32 %v5383, %v5642
  %v5650 = vsub.f32 %v5386, %v5642
  %v5651 = vsub.f32 %v5391, %v5646
  %v5652 = vsub.f32 %v5394, %v5646
  %v5653 = vlaneseq
  %v5654 = vshrl.u32 %v5653, 7
  %v5655 = vsub.s32 0, %v5654
  %v5656 = vrot.slane %v5631, %v5655
  %v5657 = vlaneseq
  %v5658 = vshrl.u32 %v5657, 7
  %v5659 = vsub.s32 0, %v5658
  %v5660 = vrot.slane %v5638, %v5659
  %v5663 = vmul.f32 %v5649, %v5656
  %v5664 = vmul.f32 %v5650, %v5656
  %v5665 = vmul.f32 %v5651, %v5660
  %v5666 = vmul.f32 %v5652, %v5660
  %vm5667 = vcmp.ge.f32.partialorder %v5663, 0.0
  %vm5668 = vcmp.ge.f32.partialorder %v5664, 0.0
  %vm5669 = vcmp.ge.f32.partialorder %v5665, 0.0
  %vm5670 = vcmp.ge.f32.partialorder %v5666, 0.0
  %v5671 = vmul.f32 %v5663, 0.2
  %v5672 = vmul.f32 %v5664, 0.2
  %v5673 = vmul.f32 %v5665, 0.2
  %v5674 = vmul.f32 %v5666, 0.2
  %v5675 = vsel %vm5667, %v5663, %v5671
  %v5676 = vsel %vm5668, %v5664, %v5672
  %v5677 = vsel %vm5669, %v5665, %v5673
  %v5678 = vsel %vm5670, %v5666, %v5674
  %v5679 = vld [vmem:[%s5] sm:$0xff]
  %v5680 = vld [vmem:[%s5 + $0x8] sm:$0xff]
  %v5681 = vmul.f32 %v5675, %v5679
  %v5682 = vmul.f32 %v5676, %v5680
  %v5683 = vmul.f32 %v5677, %v5679
  %v5684 = vmul.f32 %v5678, %v5680
  %5685 = vadd.xlane.f32.xlu0 %v5681
  %v5686 = vpop.xlane.xlu0 %5685
  %5687 = vadd.xlane.f32.xlu0 %v5682
  %v5688 = vpop.xlane.xlu0 %5687
  %5689 = vadd.xlane.f32.xlu0 %v5683
  %v5690 = vpop.xlane.xlu0 %5689
  %5691 = vadd.xlane.f32.xlu0 %v5684
  %v5692 = vpop.xlane.xlu0 %5691
  %v5697 = vlaneseq
  %v5698 = vand.u32 %v5697, 127
  %v5699 = vlaneseq
  %v5700 = vshrl.u32 %v5699, 7
  %v5701 = vsub.s32 %v5698, %v5700
  %v5702 = vrot.slane %v5686, %v5701
  %v5703 = vadd.s32 %v5698, 4294967288
  %v5704 = vlaneseq
  %v5705 = vshrl.u32 %v5704, 7
  %v5706 = vsub.s32 %v5703, %v5705
  %v5707 = vrot.slane %v5688, %v5706
  %vm5708 = vcmask 130112
  %v5709 = vsel %vm5708, %v5707, %v5702
  %v5710 = vlaneseq
  %v5711 = vshrl.u32 %v5710, 7
  %v5712 = vsub.s32 %v5698, %v5711
  %v5713 = vrot.slane %v5690, %v5712
  %v5714 = vlaneseq
  %v5715 = vshrl.u32 %v5714, 7
  %v5716 = vsub.s32 %v5703, %v5715
  %v5717 = vrot.slane %v5692, %v5716
  %v5718 = vsel %vm5708, %v5717, %v5713
  %v5719 = vsel %vm1137, %v5718, %v5709
  %v5721 = vsel %vm1140, %v5719, 0.0
  %5722 = vadd.xlane.f32.xlu0 %v5721
  %v5723 = vpop.xlane.xlu0 %5722
  %v5724 = vld [vmem:[#allocation2] sm:$0x1]
  %v5726 = vlaneseq
  %v5727 = vshrl.u32 %v5726, 7
  %v5728 = vsub.s32 0, %v5727
  %v5729 = vrot.slane %v5724, %v5728
  %v5731 = vadd.f32 %v5723, %v5729
  %v5732 = vxor.u32 %v5731, 2147483648
  %v5733 = vmul.f32 %v5732, 1.442695
  %v5734 = vpow.pop %v5733
  %v5735 = vadd.f32 %v5734, 1.0
  %v5736 = vrcp.pop %v5735
  %v5737 = vmul.f32 1.0, %v5736
  %vm5738 = vcmask 1024
  %5739 = vst.msk [vmem:[%s7] sm:$0x3] %vm5738, %v5737
  // Predicated region
  $region30: #{discriminator_forward.1} parent=0 // pred_check
    _
  $region31: #{discriminator_forward.1} parent=0 // pred_check_branch
    %5741 = sbr.rel (0) target = $region33
  $region32: #{discriminator_forward.1} parent=0 // pred_region
    _
  $region33: #{discriminator_forward.1} parent=0 // pred_fallthru
    _
  // Predicated region
  $region34: #{discriminator_forward.1} parent=0 // pred_check
    _
  $region35: #{discriminator_forward.1} parent=0 // pred_check_branch
    %5743 = sbr.rel (0) target = $region37
  $region36: #{discriminator_forward.1} parent=0 // pred_region
    _
  $region37: #{discriminator_forward.1} parent=0 // pred_fallthru
    _

</llo_original>
